<compile_context>
chip_gen: v6e
topology: v6e:2x2x1
jax: 0.10.0
libtpu: 0.0.40
codegen_flags: <defaults>
</compile_context>

<pallas_src>
import functools

import jax
import jax.numpy as jnp
from jax.experimental import pallas as pl
from jax.experimental.pallas import tpu as pltpu

EPS = 1e-5                      # nn.InstanceNorm2d default eps
_DOT_DTYPE = jnp.bfloat16       # MXU-native dtype for all matmuls


# ----------------------------------------------------------------------------
# In-kernel helpers
# ----------------------------------------------------------------------------
def _instnorm_relu(y, inv_p):
    """InstanceNorm2d (affine=False, biased var, two-pass stats) + ReLU."""
    mean = jnp.sum(y, axis=-1, keepdims=True) * inv_p
    yc = y - mean
    var = jnp.sum(yc * yc, axis=-1, keepdims=True) * inv_p
    return jnp.maximum(yc * jax.lax.rsqrt(var + EPS), 0.0)


def _res_chain_kernel(x_ref, w1_ref, w2_ref, w3_ref, o_ref, zpad_ref, *, width):
    """R chained Residual blocks for ONE sample, activation kept on-core.

    Per block: (1x1 conv -> IN -> ReLU) -> (3x3 'same' conv -> IN -> ReLU)
               -> (1x1 conv -> IN -> ReLU) -> + identity skip.

    The 3x3 conv uses a single stacked channel-mix matmul followed by 9
    lane-shifted reads from a zero-haloed scratch + column masks (the shift
    operator commutes with the per-tap 1x1 channel mix).
    """
    R = w1_ref.shape[0]
    C = x_ref.shape[1]
    P = x_ref.shape[2]
    ch = w1_ref.shape[1]          # C // 2
    W = width
    PADW = W + 1                  # max |dy*W + dx|
    inv_p = 1.0 / float(P)

    # Lane -> column index of the flattened (H, W) spatial layout (hoisted).
    col = jax.lax.broadcasted_iota(jnp.int32, (1, P), 1) % W

    # Zero the halo once; the middle region is overwritten every block.
    zpad_ref[...] = jnp.zeros(zpad_ref.shape, jnp.float32)

    x = x_ref[0]                                           # (C, P) f32

    for r in range(R):                                     # static unroll, R small
        # --- conv1: 1x1, C -> ch -------------------------------------------
        y = jnp.dot(w1_ref[r], x.astype(_DOT_DTYPE),
                    preferred_element_type=jnp.float32)
        y = _instnorm_relu(y, inv_p)                       # (ch, P)

        # --- conv2: 3x3 'same', ch -> ch -------------------------------------
        # One matmul mixes channels for all 9 taps at once ...
        z = jnp.dot(w2_ref[r], y.astype(_DOT_DTYPE),
                    preferred_element_type=jnp.float32)    # (9*ch, P)
        # ... then spatial shifts are cheap haloed reads + masks (no MXU).
        zpad_ref[:, PADW:PADW + P] = z
        acc = None
        t = 0
        for dy in (-1, 0, 1):
            for dx in (-1, 0, 1):
                d = dy * W + dx
                tap = zpad_ref[t * ch:(t + 1) * ch, PADW + d:PADW + d + P]
                if dx != 0:
                    valid = jnp.logical_and(col + dx >= 0, col + dx < W)
                    tap = jnp.where(valid, tap, 0.0)
                acc = tap if acc is None else acc + tap
                t += 1
        y = _instnorm_relu(acc, inv_p)                     # (ch, P)

        # --- conv3: 1x1, ch -> C, + identity skip ----------------------------
        y = jnp.dot(w3_ref[r], y.astype(_DOT_DTYPE),
                    preferred_element_type=jnp.float32)
        y = _instnorm_relu(y, inv_p)                       # (C, P)
        x = x + y

    o_ref[0] = x


# ----------------------------------------------------------------------------
# JAX wrapper: one pallas_call per stage of R residual blocks
# ----------------------------------------------------------------------------
def _chain_cost(N, R, C, P):
    ch = C // 2
    mm = 2 * P * (ch * C + 9 * ch * ch + C * ch)            # matmul flops / block
    vpu = P * (10 * ch + 12 * (2 * ch + C))                 # shifts/masks/IN (rough)
    return pl.CostEstimate(
        flops=int(N * R * (mm + vpu)),
        transcendentals=int(N * R * (2 * ch + C)),          # rsqrt per norm row
        bytes_accessed=int(2 * N * C * P * 4
                           + 2 * R * (ch * C + 9 * ch * ch + C * ch)),
    )


def residual_chain(x, chain):
    """Sequential of R Residual(C, C) blocks, fused into one pallas_call."""
    w1s, w2s, w3s = chain
    N, C, H, W = x.shape
    P = H * W
    R, ch, _ = w1s.shape
    x2 = x.reshape(N, C, P)

    kernel = functools.partial(_res_chain_kernel, width=W)
    out = pl.pallas_call(
        kernel,
        out_shape=jax.ShapeDtypeStruct((N, C, P), jnp.float32),
        grid=(N,),
        in_specs=[
            pl.BlockSpec((1, C, P), lambda n: (n, 0, 0)),        # activations
            pl.BlockSpec((R, ch, C), lambda n: (0, 0, 0)),       # w1 (resident)
            pl.BlockSpec((R, 9 * ch, ch), lambda n: (0, 0, 0)),  # w2 taps
            pl.BlockSpec((R, C, ch), lambda n: (0, 0, 0)),       # w3
        ],
        out_specs=pl.BlockSpec((1, C, P), lambda n: (n, 0, 0)),
        scratch_shapes=[
            # zero-haloed buffer for the 9 lane-shifted tap reads
            pltpu.VMEM((9 * ch, P + 2 * (W + 1)), jnp.float32),
        ],
        compiler_params=pltpu.CompilerParams(
            dimension_semantics=("parallel",)),
        cost_estimate=_chain_cost(N, R, C, P),
    )(x2, w1s, w2s, w3s)
    return out.reshape(N, C, H, W)


def maxpool2(x):
    # nn.MaxPool2d(kernel_size=2, stride=2) -- cheap data-movement glue.
    N, C, H, W = x.shape
    return x.reshape(N, C, H // 2, 2, W // 2, 2).max(axis=(3, 5))


def upsample2(x):
    # nn.Upsample(scale_factor=2, mode='nearest') -- cheap data-movement glue.
    return jnp.repeat(jnp.repeat(x, 2, axis=2), 2, axis=3)


def hourglass_forward(x, params, num_reductions):
    y = maxpool2(x)
    y = residual_chain(y, params["before_mid"])
    if num_reductions > 1:
        y = hourglass_forward(y, params["sub"], num_reductions - 1)
    else:
        y = residual_chain(y, params["mid"])
    y = residual_chain(y, params["end"])
    y = upsample2(y)
    xs = residual_chain(x, params["skip"])
    return xs + y          # final skip add: plain jnp, fused by XLA


# ----------------------------------------------------------------------------
# Deterministic parameter initialization (synthetic weights)
# ----------------------------------------------------------------------------
def init_chain_params(key, c, num_res):
    """Stacked weights for a Sequential of num_res Residual(c, c) blocks."""
    ch = c // 2
    w1s, w2s, w3s = [], [], []
    for k in jax.random.split(key, num_res):
        k1, k2, k3 = jax.random.split(k, 3)
        w1 = jax.random.normal(k1, (ch, c), jnp.float32) / (c ** 0.5)
        w2 = jax.random.normal(k2, (ch, ch, 3, 3), jnp.float32) / ((9 * ch) ** 0.5)
        w3 = jax.random.normal(k3, (c, ch), jnp.float32) / (ch ** 0.5)
        w1s.append(w1)
        # tap-major stacking: row t*ch + o == w2[o, :, ky, kx], t = ky*3 + kx
        w2s.append(jnp.transpose(w2, (2, 3, 0, 1)).reshape(9 * ch, ch))
        w3s.append(w3)
    # Conv biases are omitted: InstanceNorm2d (affine=False) cancels any
    # per-channel bias exactly, so the forward output is unchanged.
    stack = lambda ws: jnp.stack(ws).astype(_DOT_DTYPE)
    return (stack(w1s), stack(w2s), stack(w3s))


def init_hourglass(key, c, num_reductions, num_res):
    k_skip, k_before, k_mid, k_end, k_sub = jax.random.split(key, 5)
    p = {
        "skip": init_chain_params(k_skip, c, num_res),
        "before_mid": init_chain_params(k_before, c, num_res),
        "end": init_chain_params(k_end, c, num_res),
    }
    if num_reductions > 1:
        p["sub"] = init_hourglass(k_sub, c, num_reductions - 1, num_res)
    else:
        p["mid"] = init_chain_params(k_mid, c, num_res)
    return p


# ----------------------------------------------------------------------------
if __name__ == "__main__":
    key = jax.random.PRNGKey(0)
    kx, kp = jax.random.split(key)

    N, C, H, W = 2, 4, 16, 16
    NUM_REDUCTIONS = 2       # spatial must be divisible by 2**NUM_REDUCTIONS
    NUM_RESIDUAL_MODULES = 2
    assert H % (2 ** NUM_REDUCTIONS) == 0 and W % (2 ** NUM_REDUCTIONS) == 0

    x = jax.random.normal(kx, (N, C, H, W), jnp.float32)
    params = init_hourglass(kp, C, NUM_REDUCTIONS, NUM_RESIDUAL_MODULES)

    fwd = jax.jit(functools.partial(hourglass_forward,
                                    num_reductions=NUM_REDUCTIONS))
    out = fwd(x, params)
    jax.block_until_ready(out)
    assert out.shape == (N, C, H, W) and out.dtype == jnp.float32
    assert bool(jnp.all(jnp.isfinite(out)))
    print("KERNEL_OK")
</pallas_src>

<mosaic_0001>
module attributes {stable_mosaic.version = 11 : i64} {
  func.func @_res_chain_kernel(%arg0: i32, %arg1: memref<1x4x64xf32, #tpu.memory_space<vmem>>, %arg2: memref<2x2x4xbf16, #tpu.memory_space<vmem>>, %arg3: memref<2x18x2xbf16, #tpu.memory_space<vmem>>, %arg4: memref<2x4x2xbf16, #tpu.memory_space<vmem>>, %arg5: memref<1x4x64xf32, #tpu.memory_space<vmem>>, %arg6: memref<18x82xf32, #tpu.memory_space<vmem>>) attributes {dimension_semantics = [#tpu.dimension_semantics<parallel>], iteration_bounds = array<i64: 2>, scalar_prefetch = 0 : i64, scratch_operands = 1 : i64, tpu.core_type = #tpu.core_type<tc>, window_params = [{transform_indices = @transform_0, window_bounds = array<i64: 1, 4, 64>}, {pipeline_mode = #tpu.pipeline_mode<synchronous>, transform_indices = @transform_1, window_bounds = array<i64: 2, 2, 4>}, {pipeline_mode = #tpu.pipeline_mode<synchronous>, transform_indices = @transform_2, window_bounds = array<i64: 2, 18, 2>}, {pipeline_mode = #tpu.pipeline_mode<synchronous>, transform_indices = @transform_3, window_bounds = array<i64: 2, 4, 2>}, {transform_indices = @transform_4, window_bounds = array<i64: 1, 4, 64>}]} {
    %0 = tpu.iota {dimensions = array<i32: 1>} : vector<1x64xi32>
    %c8_i32 = arith.constant 8 : i32
    %c0_i32 = arith.constant 0 : i32
    %1 = arith.cmpi eq, %c8_i32, %c0_i32 : i32
    %c1_i32 = arith.constant 1 : i32
    %2 = arith.select %1, %c1_i32, %c8_i32 : i32
    %3 = vector.broadcast %2 : i32 to vector<1x64xi32>
    %4 = arith.remsi %0, %3 : vector<1x64xi32>
    %c0_i32_0 = arith.constant 0 : i32
    %5 = vector.broadcast %c0_i32_0 : i32 to vector<1x64xi32>
    %6 = arith.cmpi ne, %4, %5 : vector<1x64xi32>
    %c0_i32_1 = arith.constant 0 : i32
    %7 = vector.broadcast %c0_i32_1 : i32 to vector<1x64xi32>
    %8 = arith.cmpi slt, %4, %7 : vector<1x64xi32>
    %c0_i32_2 = arith.constant 0 : i32
    %9 = arith.cmpi slt, %2, %c0_i32_2 : i32
    %10 = vector.broadcast %9 : i1 to vector<1x64xi1>
    %11 = vector.broadcast %10 : vector<1x64xi1> to vector<1x64xi1>
    %12 = arith.xori %8, %11 : vector<1x64xi1>
    %13 = arith.andi %12, %6 : vector<1x64xi1>
    %14 = vector.broadcast %2 : i32 to vector<1x64xi32>
    %15 = arith.addi %4, %14 : vector<1x64xi32>
    %16 = arith.select %13, %15, %4 : vector<1x64xi1>, vector<1x64xi32>
    %cst = arith.constant 0.000000e+00 : f32
    %17 = vector.broadcast %cst : f32 to vector<18x82xf32>
    %c0 = arith.constant 0 : index
    %c0_3 = arith.constant 0 : index
    %18 = vector.load %arg6[%c0, %c0_3] : memref<18x82xf32, #tpu.memory_space<vmem>>, vector<18x82xf32>
    tpu.vector_store %arg6[%c0, %c0_3], %17 {strides = array<i32>} : memref<18x82xf32, #tpu.memory_space<vmem>>, vector<18x82xf32>,
    %c0_4 = arith.constant 0 : index
    %c0_5 = arith.constant 0 : index
    %c0_6 = arith.constant 0 : index
    %19 = vector.load %arg1[%c0_4, %c0_5, %c0_6] : memref<1x4x64xf32, #tpu.memory_space<vmem>>, vector<1x4x64xf32>
    %20 = vector.shape_cast %19 : vector<1x4x64xf32> to vector<4x64xf32>
    %c0_7 = arith.constant 0 : index
    %c0_8 = arith.constant 0 : index
    %c0_9 = arith.constant 0 : index
    %21 = vector.load %arg2[%c0_7, %c0_8, %c0_9] : memref<2x2x4xbf16, #tpu.memory_space<vmem>>, vector<1x2x4xbf16>
    %22 = vector.shape_cast %21 : vector<1x2x4xbf16> to vector<2x4xbf16>
    %23 = arith.truncf %20 : vector<4x64xf32> to vector<4x64xbf16>
    %cst_10 = arith.constant dense<0.000000e+00> : vector<2x64xf32>
    %24 = tpu.matmul %22, %23, %cst_10 {dimension_numbers = #tpu.dot_dimension_numbers<[1], [0], [0], [1], [0, 0, 1, 1], [], []>} : vector<2x4xbf16>, vector<4x64xbf16>, vector<2x64xf32> -> vector<2x64xf32>
    %cst_11 = arith.constant dense<0.000000e+00> : vector<2xf32>
    %25 = vector.multi_reduction <add>, %24, %cst_11 [1] : vector<2x64xf32> to vector<2xf32>
    %26 = vector.shape_cast %25 : vector<2xf32> to vector<2x1xf32>
    %cst_12 = arith.constant 1.562500e-02 : f32
    %27 = vector.broadcast %cst_12 : f32 to vector<2x1xf32>
    %28 = arith.mulf %26, %27 : vector<2x1xf32>
    %29 = vector.broadcast %28 : vector<2x1xf32> to vector<2x64xf32>
    %30 = arith.subf %24, %29 : vector<2x64xf32>
    %31 = arith.mulf %30, %30 : vector<2x64xf32>
    %cst_13 = arith.constant dense<0.000000e+00> : vector<2xf32>
    %32 = vector.multi_reduction <add>, %31, %cst_13 [1] : vector<2x64xf32> to vector<2xf32>
    %33 = vector.shape_cast %32 : vector<2xf32> to vector<2x1xf32>
    %cst_14 = arith.constant 1.562500e-02 : f32
    %34 = vector.broadcast %cst_14 : f32 to vector<2x1xf32>
    %35 = arith.mulf %33, %34 : vector<2x1xf32>
    %cst_15 = arith.constant 9.99999974E-6 : f32
    %36 = vector.broadcast %cst_15 : f32 to vector<2x1xf32>
    %37 = arith.addf %35, %36 : vector<2x1xf32>
    %38 = math.rsqrt %37 : vector<2x1xf32>
    %39 = vector.broadcast %38 : vector<2x1xf32> to vector<2x64xf32>
    %40 = arith.mulf %30, %39 : vector<2x64xf32>
    %cst_16 = arith.constant 0.000000e+00 : f32
    %41 = vector.broadcast %cst_16 : f32 to vector<2x64xf32>
    %42 = arith.maximumf %40, %41 : vector<2x64xf32>
    %c0_17 = arith.constant 0 : index
    %c0_18 = arith.constant 0 : index
    %c0_19 = arith.constant 0 : index
    %43 = vector.load %arg3[%c0_17, %c0_18, %c0_19] : memref<2x18x2xbf16, #tpu.memory_space<vmem>>, vector<1x18x2xbf16>
    %44 = vector.shape_cast %43 : vector<1x18x2xbf16> to vector<18x2xbf16>
    %45 = arith.truncf %42 : vector<2x64xf32> to vector<2x64xbf16>
    %cst_20 = arith.constant dense<0.000000e+00> : vector<18x64xf32>
    %46 = tpu.matmul %44, %45, %cst_20 {dimension_numbers = #tpu.dot_dimension_numbers<[1], [0], [0], [1], [0, 0, 1, 1], [], []>} : vector<18x2xbf16>, vector<2x64xbf16>, vector<18x64xf32> -> vector<18x64xf32>
    %c0_21 = arith.constant 0 : index
    %c9 = arith.constant 9 : index
    %47 = vector.load %arg6[%c0_21, %c9] : memref<18x82xf32, #tpu.memory_space<vmem>>, vector<18x64xf32>
    tpu.vector_store %arg6[%c0_21, %c9], %46 {strides = array<i32>} : memref<18x82xf32, #tpu.memory_space<vmem>>, vector<18x64xf32>,
    %c0_22 = arith.constant 0 : index
    %c0_23 = arith.constant 0 : index
    %48 = vector.load %arg6[%c0_22, %c0_23] : memref<18x82xf32, #tpu.memory_space<vmem>>, vector<2x64xf32>
    %c-1_i32 = arith.constant -1 : i32
    %49 = vector.broadcast %c-1_i32 : i32 to vector<1x64xi32>
    %50 = arith.addi %16, %49 : vector<1x64xi32>
    %c0_i32_24 = arith.constant 0 : i32
    %51 = vector.broadcast %c0_i32_24 : i32 to vector<1x64xi32>
    %52 = arith.cmpi sge, %50, %51 : vector<1x64xi32>
    %c-1_i32_25 = arith.constant -1 : i32
    %53 = vector.broadcast %c-1_i32_25 : i32 to vector<1x64xi32>
    %54 = arith.addi %16, %53 : vector<1x64xi32>
    %c8_i32_26 = arith.constant 8 : i32
    %55 = vector.broadcast %c8_i32_26 : i32 to vector<1x64xi32>
    %56 = arith.cmpi slt, %54, %55 : vector<1x64xi32>
    %57 = arith.andi %52, %56 : vector<1x64xi1>
    %cst_27 = arith.constant 0.000000e+00 : f32
    %58 = vector.shape_cast %57 : vector<1x64xi1> to vector<1x64xi1>
    %59 = vector.broadcast %58 : vector<1x64xi1> to vector<2x64xi1>
    %60 = vector.broadcast %cst_27 : f32 to vector<2x64xf32>
    %61 = arith.select %59, %48, %60 : vector<2x64xi1>, vector<2x64xf32>
    %c2 = arith.constant 2 : index
    %c1 = arith.constant 1 : index
    %62 = vector.load %arg6[%c2, %c1] : memref<18x82xf32, #tpu.memory_space<vmem>>, vector<2x64xf32>
    %63 = arith.addf %61, %62 : vector<2x64xf32>
    %c4 = arith.constant 4 : index
    %c2_28 = arith.constant 2 : index
    %64 = vector.load %arg6[%c4, %c2_28] : memref<18x82xf32, #tpu.memory_space<vmem>>, vector<2x64xf32>
    %c1_i32_29 = arith.constant 1 : i32
    %65 = vector.broadcast %c1_i32_29 : i32 to vector<1x64xi32>
    %66 = arith.addi %16, %65 : vector<1x64xi32>
    %c0_i32_30 = arith.constant 0 : i32
    %67 = vector.broadcast %c0_i32_30 : i32 to vector<1x64xi32>
    %68 = arith.cmpi sge, %66, %67 : vector<1x64xi32>
    %c1_i32_31 = arith.constant 1 : i32
    %69 = vector.broadcast %c1_i32_31 : i32 to vector<1x64xi32>
    %70 = arith.addi %16, %69 : vector<1x64xi32>
    %c8_i32_32 = arith.constant 8 : i32
    %71 = vector.broadcast %c8_i32_32 : i32 to vector<1x64xi32>
    %72 = arith.cmpi slt, %70, %71 : vector<1x64xi32>
    %73 = arith.andi %68, %72 : vector<1x64xi1>
    %cst_33 = arith.constant 0.000000e+00 : f32
    %74 = vector.shape_cast %73 : vector<1x64xi1> to vector<1x64xi1>
    %75 = vector.broadcast %74 : vector<1x64xi1> to vector<2x64xi1>
    %76 = vector.broadcast %cst_33 : f32 to vector<2x64xf32>
    %77 = arith.select %75, %64, %76 : vector<2x64xi1>, vector<2x64xf32>
    %78 = arith.addf %63, %77 : vector<2x64xf32>
    %c6 = arith.constant 6 : index
    %c8 = arith.constant 8 : index
    %79 = vector.load %arg6[%c6, %c8] : memref<18x82xf32, #tpu.memory_space<vmem>>, vector<2x64xf32>
    %c-1_i32_34 = arith.constant -1 : i32
    %80 = vector.broadcast %c-1_i32_34 : i32 to vector<1x64xi32>
    %81 = arith.addi %16, %80 : vector<1x64xi32>
    %c0_i32_35 = arith.constant 0 : i32
    %82 = vector.broadcast %c0_i32_35 : i32 to vector<1x64xi32>
    %83 = arith.cmpi sge, %81, %82 : vector<1x64xi32>
    %c-1_i32_36 = arith.constant -1 : i32
    %84 = vector.broadcast %c-1_i32_36 : i32 to vector<1x64xi32>
    %85 = arith.addi %16, %84 : vector<1x64xi32>
    %c8_i32_37 = arith.constant 8 : i32
    %86 = vector.broadcast %c8_i32_37 : i32 to vector<1x64xi32>
    %87 = arith.cmpi slt, %85, %86 : vector<1x64xi32>
    %88 = arith.andi %83, %87 : vector<1x64xi1>
    %cst_38 = arith.constant 0.000000e+00 : f32
    %89 = vector.shape_cast %88 : vector<1x64xi1> to vector<1x64xi1>
    %90 = vector.broadcast %89 : vector<1x64xi1> to vector<2x64xi1>
    %91 = vector.broadcast %cst_38 : f32 to vector<2x64xf32>
    %92 = arith.select %90, %79, %91 : vector<2x64xi1>, vector<2x64xf32>
    %93 = arith.addf %78, %92 : vector<2x64xf32>
    %c8_39 = arith.constant 8 : index
    %c9_40 = arith.constant 9 : index
    %94 = vector.load %arg6[%c8_39, %c9_40] : memref<18x82xf32, #tpu.memory_space<vmem>>, vector<2x64xf32>
    %95 = arith.addf %93, %94 : vector<2x64xf32>
    %c10 = arith.constant 10 : index
    %c10_41 = arith.constant 10 : index
    %96 = vector.load %arg6[%c10, %c10_41] : memref<18x82xf32, #tpu.memory_space<vmem>>, vector<2x64xf32>
    %c1_i32_42 = arith.constant 1 : i32
    %97 = vector.broadcast %c1_i32_42 : i32 to vector<1x64xi32>
    %98 = arith.addi %16, %97 : vector<1x64xi32>
    %c0_i32_43 = arith.constant 0 : i32
    %99 = vector.broadcast %c0_i32_43 : i32 to vector<1x64xi32>
    %100 = arith.cmpi sge, %98, %99 : vector<1x64xi32>
    %c1_i32_44 = arith.constant 1 : i32
    %101 = vector.broadcast %c1_i32_44 : i32 to vector<1x64xi32>
    %102 = arith.addi %16, %101 : vector<1x64xi32>
    %c8_i32_45 = arith.constant 8 : i32
    %103 = vector.broadcast %c8_i32_45 : i32 to vector<1x64xi32>
    %104 = arith.cmpi slt, %102, %103 : vector<1x64xi32>
    %105 = arith.andi %100, %104 : vector<1x64xi1>
    %cst_46 = arith.constant 0.000000e+00 : f32
    %106 = vector.shape_cast %105 : vector<1x64xi1> to vector<1x64xi1>
    %107 = vector.broadcast %106 : vector<1x64xi1> to vector<2x64xi1>
    %108 = vector.broadcast %cst_46 : f32 to vector<2x64xf32>
    %109 = arith.select %107, %96, %108 : vector<2x64xi1>, vector<2x64xf32>
    %110 = arith.addf %95, %109 : vector<2x64xf32>
    %c12 = arith.constant 12 : index
    %c16 = arith.constant 16 : index
    %111 = vector.load %arg6[%c12, %c16] : memref<18x82xf32, #tpu.memory_space<vmem>>, vector<2x64xf32>
    %c-1_i32_47 = arith.constant -1 : i32
    %112 = vector.broadcast %c-1_i32_47 : i32 to vector<1x64xi32>
    %113 = arith.addi %16, %112 : vector<1x64xi32>
    %c0_i32_48 = arith.constant 0 : i32
    %114 = vector.broadcast %c0_i32_48 : i32 to vector<1x64xi32>
    %115 = arith.cmpi sge, %113, %114 : vector<1x64xi32>
    %c-1_i32_49 = arith.constant -1 : i32
    %116 = vector.broadcast %c-1_i32_49 : i32 to vector<1x64xi32>
    %117 = arith.addi %16, %116 : vector<1x64xi32>
    %c8_i32_50 = arith.constant 8 : i32
    %118 = vector.broadcast %c8_i32_50 : i32 to vector<1x64xi32>
    %119 = arith.cmpi slt, %117, %118 : vector<1x64xi32>
    %120 = arith.andi %115, %119 : vector<1x64xi1>
    %cst_51 = arith.constant 0.000000e+00 : f32
    %121 = vector.shape_cast %120 : vector<1x64xi1> to vector<1x64xi1>
    %122 = vector.broadcast %121 : vector<1x64xi1> to vector<2x64xi1>
    %123 = vector.broadcast %cst_51 : f32 to vector<2x64xf32>
    %124 = arith.select %122, %111, %123 : vector<2x64xi1>, vector<2x64xf32>
    %125 = arith.addf %110, %124 : vector<2x64xf32>
    %c14 = arith.constant 14 : index
    %c17 = arith.constant 17 : index
    %126 = vector.load %arg6[%c14, %c17] : memref<18x82xf32, #tpu.memory_space<vmem>>, vector<2x64xf32>
    %127 = arith.addf %125, %126 : vector<2x64xf32>
    %c16_52 = arith.constant 16 : index
    %c18 = arith.constant 18 : index
    %128 = vector.load %arg6[%c16_52, %c18] : memref<18x82xf32, #tpu.memory_space<vmem>>, vector<2x64xf32>
    %c1_i32_53 = arith.constant 1 : i32
    %129 = vector.broadcast %c1_i32_53 : i32 to vector<1x64xi32>
    %130 = arith.addi %16, %129 : vector<1x64xi32>
    %c0_i32_54 = arith.constant 0 : i32
    %131 = vector.broadcast %c0_i32_54 : i32 to vector<1x64xi32>
    %132 = arith.cmpi sge, %130, %131 : vector<1x64xi32>
    %c1_i32_55 = arith.constant 1 : i32
    %133 = vector.broadcast %c1_i32_55 : i32 to vector<1x64xi32>
    %134 = arith.addi %16, %133 : vector<1x64xi32>
    %c8_i32_56 = arith.constant 8 : i32
    %135 = vector.broadcast %c8_i32_56 : i32 to vector<1x64xi32>
    %136 = arith.cmpi slt, %134, %135 : vector<1x64xi32>
    %137 = arith.andi %132, %136 : vector<1x64xi1>
    %cst_57 = arith.constant 0.000000e+00 : f32
    %138 = vector.shape_cast %137 : vector<1x64xi1> to vector<1x64xi1>
    %139 = vector.broadcast %138 : vector<1x64xi1> to vector<2x64xi1>
    %140 = vector.broadcast %cst_57 : f32 to vector<2x64xf32>
    %141 = arith.select %139, %128, %140 : vector<2x64xi1>, vector<2x64xf32>
    %142 = arith.addf %127, %141 : vector<2x64xf32>
    %cst_58 = arith.constant dense<0.000000e+00> : vector<2xf32>
    %143 = vector.multi_reduction <add>, %142, %cst_58 [1] : vector<2x64xf32> to vector<2xf32>
    %144 = vector.shape_cast %143 : vector<2xf32> to vector<2x1xf32>
    %cst_59 = arith.constant 1.562500e-02 : f32
    %145 = vector.broadcast %cst_59 : f32 to vector<2x1xf32>
    %146 = arith.mulf %144, %145 : vector<2x1xf32>
    %147 = vector.broadcast %146 : vector<2x1xf32> to vector<2x64xf32>
    %148 = arith.subf %142, %147 : vector<2x64xf32>
    %149 = arith.mulf %148, %148 : vector<2x64xf32>
    %cst_60 = arith.constant dense<0.000000e+00> : vector<2xf32>
    %150 = vector.multi_reduction <add>, %149, %cst_60 [1] : vector<2x64xf32> to vector<2xf32>
    %151 = vector.shape_cast %150 : vector<2xf32> to vector<2x1xf32>
    %cst_61 = arith.constant 1.562500e-02 : f32
    %152 = vector.broadcast %cst_61 : f32 to vector<2x1xf32>
    %153 = arith.mulf %151, %152 : vector<2x1xf32>
    %cst_62 = arith.constant 9.99999974E-6 : f32
    %154 = vector.broadcast %cst_62 : f32 to vector<2x1xf32>
    %155 = arith.addf %153, %154 : vector<2x1xf32>
    %156 = math.rsqrt %155 : vector<2x1xf32>
    %157 = vector.broadcast %156 : vector<2x1xf32> to vector<2x64xf32>
    %158 = arith.mulf %148, %157 : vector<2x64xf32>
    %cst_63 = arith.constant 0.000000e+00 : f32
    %159 = vector.broadcast %cst_63 : f32 to vector<2x64xf32>
    %160 = arith.maximumf %158, %159 : vector<2x64xf32>
    %c0_64 = arith.constant 0 : index
    %c0_65 = arith.constant 0 : index
    %c0_66 = arith.constant 0 : index
    %161 = vector.load %arg4[%c0_64, %c0_65, %c0_66] : memref<2x4x2xbf16, #tpu.memory_space<vmem>>, vector<1x4x2xbf16>
    %162 = vector.shape_cast %161 : vector<1x4x2xbf16> to vector<4x2xbf16>
    %163 = arith.truncf %160 : vector<2x64xf32> to vector<2x64xbf16>
    %cst_67 = arith.constant dense<0.000000e+00> : vector<4x64xf32>
    %164 = tpu.matmul %162, %163, %cst_67 {dimension_numbers = #tpu.dot_dimension_numbers<[1], [0], [0], [1], [0, 0, 1, 1], [], []>} : vector<4x2xbf16>, vector<2x64xbf16>, vector<4x64xf32> -> vector<4x64xf32>
    %cst_68 = arith.constant dense<0.000000e+00> : vector<4xf32>
    %165 = vector.multi_reduction <add>, %164, %cst_68 [1] : vector<4x64xf32> to vector<4xf32>
    %166 = vector.shape_cast %165 : vector<4xf32> to vector<4x1xf32>
    %cst_69 = arith.constant 1.562500e-02 : f32
    %167 = vector.broadcast %cst_69 : f32 to vector<4x1xf32>
    %168 = arith.mulf %166, %167 : vector<4x1xf32>
    %169 = vector.broadcast %168 : vector<4x1xf32> to vector<4x64xf32>
    %170 = arith.subf %164, %169 : vector<4x64xf32>
    %171 = arith.mulf %170, %170 : vector<4x64xf32>
    %cst_70 = arith.constant dense<0.000000e+00> : vector<4xf32>
    %172 = vector.multi_reduction <add>, %171, %cst_70 [1] : vector<4x64xf32> to vector<4xf32>
    %173 = vector.shape_cast %172 : vector<4xf32> to vector<4x1xf32>
    %cst_71 = arith.constant 1.562500e-02 : f32
    %174 = vector.broadcast %cst_71 : f32 to vector<4x1xf32>
    %175 = arith.mulf %173, %174 : vector<4x1xf32>
    %cst_72 = arith.constant 9.99999974E-6 : f32
    %176 = vector.broadcast %cst_72 : f32 to vector<4x1xf32>
    %177 = arith.addf %175, %176 : vector<4x1xf32>
    %178 = math.rsqrt %177 : vector<4x1xf32>
    %179 = vector.broadcast %178 : vector<4x1xf32> to vector<4x64xf32>
    %180 = arith.mulf %170, %179 : vector<4x64xf32>
    %cst_73 = arith.constant 0.000000e+00 : f32
    %181 = vector.broadcast %cst_73 : f32 to vector<4x64xf32>
    %182 = arith.maximumf %180, %181 : vector<4x64xf32>
    %183 = arith.addf %20, %182 : vector<4x64xf32>
    %c1_74 = arith.constant 1 : index
    %c0_75 = arith.constant 0 : index
    %c0_76 = arith.constant 0 : index
    %184 = vector.load %arg2[%c1_74, %c0_75, %c0_76] : memref<2x2x4xbf16, #tpu.memory_space<vmem>>, vector<1x2x4xbf16>
    %185 = vector.shape_cast %184 : vector<1x2x4xbf16> to vector<2x4xbf16>
    %186 = arith.truncf %183 : vector<4x64xf32> to vector<4x64xbf16>
    %cst_77 = arith.constant dense<0.000000e+00> : vector<2x64xf32>
    %187 = tpu.matmul %185, %186, %cst_77 {dimension_numbers = #tpu.dot_dimension_numbers<[1], [0], [0], [1], [0, 0, 1, 1], [], []>} : vector<2x4xbf16>, vector<4x64xbf16>, vector<2x64xf32> -> vector<2x64xf32>
    %cst_78 = arith.constant dense<0.000000e+00> : vector<2xf32>
    %188 = vector.multi_reduction <add>, %187, %cst_78 [1] : vector<2x64xf32> to vector<2xf32>
    %189 = vector.shape_cast %188 : vector<2xf32> to vector<2x1xf32>
    %cst_79 = arith.constant 1.562500e-02 : f32
    %190 = vector.broadcast %cst_79 : f32 to vector<2x1xf32>
    %191 = arith.mulf %189, %190 : vector<2x1xf32>
    %192 = vector.broadcast %191 : vector<2x1xf32> to vector<2x64xf32>
    %193 = arith.subf %187, %192 : vector<2x64xf32>
    %194 = arith.mulf %193, %193 : vector<2x64xf32>
    %cst_80 = arith.constant dense<0.000000e+00> : vector<2xf32>
    %195 = vector.multi_reduction <add>, %194, %cst_80 [1] : vector<2x64xf32> to vector<2xf32>
    %196 = vector.shape_cast %195 : vector<2xf32> to vector<2x1xf32>
    %cst_81 = arith.constant 1.562500e-02 : f32
    %197 = vector.broadcast %cst_81 : f32 to vector<2x1xf32>
    %198 = arith.mulf %196, %197 : vector<2x1xf32>
    %cst_82 = arith.constant 9.99999974E-6 : f32
    %199 = vector.broadcast %cst_82 : f32 to vector<2x1xf32>
    %200 = arith.addf %198, %199 : vector<2x1xf32>
    %201 = math.rsqrt %200 : vector<2x1xf32>
    %202 = vector.broadcast %201 : vector<2x1xf32> to vector<2x64xf32>
    %203 = arith.mulf %193, %202 : vector<2x64xf32>
    %cst_83 = arith.constant 0.000000e+00 : f32
    %204 = vector.broadcast %cst_83 : f32 to vector<2x64xf32>
    %205 = arith.maximumf %203, %204 : vector<2x64xf32>
    %c1_84 = arith.constant 1 : index
    %c0_85 = arith.constant 0 : index
    %c0_86 = arith.constant 0 : index
    %206 = vector.load %arg3[%c1_84, %c0_85, %c0_86] : memref<2x18x2xbf16, #tpu.memory_space<vmem>>, vector<1x18x2xbf16>
    %207 = vector.shape_cast %206 : vector<1x18x2xbf16> to vector<18x2xbf16>
    %208 = arith.truncf %205 : vector<2x64xf32> to vector<2x64xbf16>
    %cst_87 = arith.constant dense<0.000000e+00> : vector<18x64xf32>
    %209 = tpu.matmul %207, %208, %cst_87 {dimension_numbers = #tpu.dot_dimension_numbers<[1], [0], [0], [1], [0, 0, 1, 1], [], []>} : vector<18x2xbf16>, vector<2x64xbf16>, vector<18x64xf32> -> vector<18x64xf32>
    %c0_88 = arith.constant 0 : index
    %c9_89 = arith.constant 9 : index
    %210 = vector.load %arg6[%c0_88, %c9_89] : memref<18x82xf32, #tpu.memory_space<vmem>>, vector<18x64xf32>
    tpu.vector_store %arg6[%c0_88, %c9_89], %209 {strides = array<i32>} : memref<18x82xf32, #tpu.memory_space<vmem>>, vector<18x64xf32>,
    %c0_90 = arith.constant 0 : index
    %c0_91 = arith.constant 0 : index
    %211 = vector.load %arg6[%c0_90, %c0_91] : memref<18x82xf32, #tpu.memory_space<vmem>>, vector<2x64xf32>
    %c-1_i32_92 = arith.constant -1 : i32
    %212 = vector.broadcast %c-1_i32_92 : i32 to vector<1x64xi32>
    %213 = arith.addi %16, %212 : vector<1x64xi32>
    %c0_i32_93 = arith.constant 0 : i32
    %214 = vector.broadcast %c0_i32_93 : i32 to vector<1x64xi32>
    %215 = arith.cmpi sge, %213, %214 : vector<1x64xi32>
    %c-1_i32_94 = arith.constant -1 : i32
    %216 = vector.broadcast %c-1_i32_94 : i32 to vector<1x64xi32>
    %217 = arith.addi %16, %216 : vector<1x64xi32>
    %c8_i32_95 = arith.constant 8 : i32
    %218 = vector.broadcast %c8_i32_95 : i32 to vector<1x64xi32>
    %219 = arith.cmpi slt, %217, %218 : vector<1x64xi32>
    %220 = arith.andi %215, %219 : vector<1x64xi1>
    %cst_96 = arith.constant 0.000000e+00 : f32
    %221 = vector.shape_cast %220 : vector<1x64xi1> to vector<1x64xi1>
    %222 = vector.broadcast %221 : vector<1x64xi1> to vector<2x64xi1>
    %223 = vector.broadcast %cst_96 : f32 to vector<2x64xf32>
    %224 = arith.select %222, %211, %223 : vector<2x64xi1>, vector<2x64xf32>
    %c2_97 = arith.constant 2 : index
    %c1_98 = arith.constant 1 : index
    %225 = vector.load %arg6[%c2_97, %c1_98] : memref<18x82xf32, #tpu.memory_space<vmem>>, vector<2x64xf32>
    %226 = arith.addf %224, %225 : vector<2x64xf32>
    %c4_99 = arith.constant 4 : index
    %c2_100 = arith.constant 2 : index
    %227 = vector.load %arg6[%c4_99, %c2_100] : memref<18x82xf32, #tpu.memory_space<vmem>>, vector<2x64xf32>
    %c1_i32_101 = arith.constant 1 : i32
    %228 = vector.broadcast %c1_i32_101 : i32 to vector<1x64xi32>
    %229 = arith.addi %16, %228 : vector<1x64xi32>
    %c0_i32_102 = arith.constant 0 : i32
    %230 = vector.broadcast %c0_i32_102 : i32 to vector<1x64xi32>
    %231 = arith.cmpi sge, %229, %230 : vector<1x64xi32>
    %c1_i32_103 = arith.constant 1 : i32
    %232 = vector.broadcast %c1_i32_103 : i32 to vector<1x64xi32>
    %233 = arith.addi %16, %232 : vector<1x64xi32>
    %c8_i32_104 = arith.constant 8 : i32
    %234 = vector.broadcast %c8_i32_104 : i32 to vector<1x64xi32>
    %235 = arith.cmpi slt, %233, %234 : vector<1x64xi32>
    %236 = arith.andi %231, %235 : vector<1x64xi1>
    %cst_105 = arith.constant 0.000000e+00 : f32
    %237 = vector.shape_cast %236 : vector<1x64xi1> to vector<1x64xi1>
    %238 = vector.broadcast %237 : vector<1x64xi1> to vector<2x64xi1>
    %239 = vector.broadcast %cst_105 : f32 to vector<2x64xf32>
    %240 = arith.select %238, %227, %239 : vector<2x64xi1>, vector<2x64xf32>
    %241 = arith.addf %226, %240 : vector<2x64xf32>
    %c6_106 = arith.constant 6 : index
    %c8_107 = arith.constant 8 : index
    %242 = vector.load %arg6[%c6_106, %c8_107] : memref<18x82xf32, #tpu.memory_space<vmem>>, vector<2x64xf32>
    %c-1_i32_108 = arith.constant -1 : i32
    %243 = vector.broadcast %c-1_i32_108 : i32 to vector<1x64xi32>
    %244 = arith.addi %16, %243 : vector<1x64xi32>
    %c0_i32_109 = arith.constant 0 : i32
    %245 = vector.broadcast %c0_i32_109 : i32 to vector<1x64xi32>
    %246 = arith.cmpi sge, %244, %245 : vector<1x64xi32>
    %c-1_i32_110 = arith.constant -1 : i32
    %247 = vector.broadcast %c-1_i32_110 : i32 to vector<1x64xi32>
    %248 = arith.addi %16, %247 : vector<1x64xi32>
    %c8_i32_111 = arith.constant 8 : i32
    %249 = vector.broadcast %c8_i32_111 : i32 to vector<1x64xi32>
    %250 = arith.cmpi slt, %248, %249 : vector<1x64xi32>
    %251 = arith.andi %246, %250 : vector<1x64xi1>
    %cst_112 = arith.constant 0.000000e+00 : f32
    %252 = vector.shape_cast %251 : vector<1x64xi1> to vector<1x64xi1>
    %253 = vector.broadcast %252 : vector<1x64xi1> to vector<2x64xi1>
    %254 = vector.broadcast %cst_112 : f32 to vector<2x64xf32>
    %255 = arith.select %253, %242, %254 : vector<2x64xi1>, vector<2x64xf32>
    %256 = arith.addf %241, %255 : vector<2x64xf32>
    %c8_113 = arith.constant 8 : index
    %c9_114 = arith.constant 9 : index
    %257 = vector.load %arg6[%c8_113, %c9_114] : memref<18x82xf32, #tpu.memory_space<vmem>>, vector<2x64xf32>
    %258 = arith.addf %256, %257 : vector<2x64xf32>
    %c10_115 = arith.constant 10 : index
    %c10_116 = arith.constant 10 : index
    %259 = vector.load %arg6[%c10_115, %c10_116] : memref<18x82xf32, #tpu.memory_space<vmem>>, vector<2x64xf32>
    %c1_i32_117 = arith.constant 1 : i32
    %260 = vector.broadcast %c1_i32_117 : i32 to vector<1x64xi32>
    %261 = arith.addi %16, %260 : vector<1x64xi32>
    %c0_i32_118 = arith.constant 0 : i32
    %262 = vector.broadcast %c0_i32_118 : i32 to vector<1x64xi32>
    %263 = arith.cmpi sge, %261, %262 : vector<1x64xi32>
    %c1_i32_119 = arith.constant 1 : i32
    %264 = vector.broadcast %c1_i32_119 : i32 to vector<1x64xi32>
    %265 = arith.addi %16, %264 : vector<1x64xi32>
    %c8_i32_120 = arith.constant 8 : i32
    %266 = vector.broadcast %c8_i32_120 : i32 to vector<1x64xi32>
    %267 = arith.cmpi slt, %265, %266 : vector<1x64xi32>
    %268 = arith.andi %263, %267 : vector<1x64xi1>
    %cst_121 = arith.constant 0.000000e+00 : f32
    %269 = vector.shape_cast %268 : vector<1x64xi1> to vector<1x64xi1>
    %270 = vector.broadcast %269 : vector<1x64xi1> to vector<2x64xi1>
    %271 = vector.broadcast %cst_121 : f32 to vector<2x64xf32>
    %272 = arith.select %270, %259, %271 : vector<2x64xi1>, vector<2x64xf32>
    %273 = arith.addf %258, %272 : vector<2x64xf32>
    %c12_122 = arith.constant 12 : index
    %c16_123 = arith.constant 16 : index
    %274 = vector.load %arg6[%c12_122, %c16_123] : memref<18x82xf32, #tpu.memory_space<vmem>>, vector<2x64xf32>
    %c-1_i32_124 = arith.constant -1 : i32
    %275 = vector.broadcast %c-1_i32_124 : i32 to vector<1x64xi32>
    %276 = arith.addi %16, %275 : vector<1x64xi32>
    %c0_i32_125 = arith.constant 0 : i32
    %277 = vector.broadcast %c0_i32_125 : i32 to vector<1x64xi32>
    %278 = arith.cmpi sge, %276, %277 : vector<1x64xi32>
    %c-1_i32_126 = arith.constant -1 : i32
    %279 = vector.broadcast %c-1_i32_126 : i32 to vector<1x64xi32>
    %280 = arith.addi %16, %279 : vector<1x64xi32>
    %c8_i32_127 = arith.constant 8 : i32
    %281 = vector.broadcast %c8_i32_127 : i32 to vector<1x64xi32>
    %282 = arith.cmpi slt, %280, %281 : vector<1x64xi32>
    %283 = arith.andi %278, %282 : vector<1x64xi1>
    %cst_128 = arith.constant 0.000000e+00 : f32
    %284 = vector.shape_cast %283 : vector<1x64xi1> to vector<1x64xi1>
    %285 = vector.broadcast %284 : vector<1x64xi1> to vector<2x64xi1>
    %286 = vector.broadcast %cst_128 : f32 to vector<2x64xf32>
    %287 = arith.select %285, %274, %286 : vector<2x64xi1>, vector<2x64xf32>
    %288 = arith.addf %273, %287 : vector<2x64xf32>
    %c14_129 = arith.constant 14 : index
    %c17_130 = arith.constant 17 : index
    %289 = vector.load %arg6[%c14_129, %c17_130] : memref<18x82xf32, #tpu.memory_space<vmem>>, vector<2x64xf32>
    %290 = arith.addf %288, %289 : vector<2x64xf32>
    %c16_131 = arith.constant 16 : index
    %c18_132 = arith.constant 18 : index
    %291 = vector.load %arg6[%c16_131, %c18_132] : memref<18x82xf32, #tpu.memory_space<vmem>>, vector<2x64xf32>
    %c1_i32_133 = arith.constant 1 : i32
    %292 = vector.broadcast %c1_i32_133 : i32 to vector<1x64xi32>
    %293 = arith.addi %16, %292 : vector<1x64xi32>
    %c0_i32_134 = arith.constant 0 : i32
    %294 = vector.broadcast %c0_i32_134 : i32 to vector<1x64xi32>
    %295 = arith.cmpi sge, %293, %294 : vector<1x64xi32>
    %c1_i32_135 = arith.constant 1 : i32
    %296 = vector.broadcast %c1_i32_135 : i32 to vector<1x64xi32>
    %297 = arith.addi %16, %296 : vector<1x64xi32>
    %c8_i32_136 = arith.constant 8 : i32
    %298 = vector.broadcast %c8_i32_136 : i32 to vector<1x64xi32>
    %299 = arith.cmpi slt, %297, %298 : vector<1x64xi32>
    %300 = arith.andi %295, %299 : vector<1x64xi1>
    %cst_137 = arith.constant 0.000000e+00 : f32
    %301 = vector.shape_cast %300 : vector<1x64xi1> to vector<1x64xi1>
    %302 = vector.broadcast %301 : vector<1x64xi1> to vector<2x64xi1>
    %303 = vector.broadcast %cst_137 : f32 to vector<2x64xf32>
    %304 = arith.select %302, %291, %303 : vector<2x64xi1>, vector<2x64xf32>
    %305 = arith.addf %290, %304 : vector<2x64xf32>
    %cst_138 = arith.constant dense<0.000000e+00> : vector<2xf32>
    %306 = vector.multi_reduction <add>, %305, %cst_138 [1] : vector<2x64xf32> to vector<2xf32>
    %307 = vector.shape_cast %306 : vector<2xf32> to vector<2x1xf32>
    %cst_139 = arith.constant 1.562500e-02 : f32
    %308 = vector.broadcast %cst_139 : f32 to vector<2x1xf32>
    %309 = arith.mulf %307, %308 : vector<2x1xf32>
    %310 = vector.broadcast %309 : vector<2x1xf32> to vector<2x64xf32>
    %311 = arith.subf %305, %310 : vector<2x64xf32>
    %312 = arith.mulf %311, %311 : vector<2x64xf32>
    %cst_140 = arith.constant dense<0.000000e+00> : vector<2xf32>
    %313 = vector.multi_reduction <add>, %312, %cst_140 [1] : vector<2x64xf32> to vector<2xf32>
    %314 = vector.shape_cast %313 : vector<2xf32> to vector<2x1xf32>
    %cst_141 = arith.constant 1.562500e-02 : f32
    %315 = vector.broadcast %cst_141 : f32 to vector<2x1xf32>
    %316 = arith.mulf %314, %315 : vector<2x1xf32>
    %cst_142 = arith.constant 9.99999974E-6 : f32
    %317 = vector.broadcast %cst_142 : f32 to vector<2x1xf32>
    %318 = arith.addf %316, %317 : vector<2x1xf32>
    %319 = math.rsqrt %318 : vector<2x1xf32>
    %320 = vector.broadcast %319 : vector<2x1xf32> to vector<2x64xf32>
    %321 = arith.mulf %311, %320 : vector<2x64xf32>
    %cst_143 = arith.constant 0.000000e+00 : f32
    %322 = vector.broadcast %cst_143 : f32 to vector<2x64xf32>
    %323 = arith.maximumf %321, %322 : vector<2x64xf32>
    %c1_144 = arith.constant 1 : index
    %c0_145 = arith.constant 0 : index
    %c0_146 = arith.constant 0 : index
    %324 = vector.load %arg4[%c1_144, %c0_145, %c0_146] : memref<2x4x2xbf16, #tpu.memory_space<vmem>>, vector<1x4x2xbf16>
    %325 = vector.shape_cast %324 : vector<1x4x2xbf16> to vector<4x2xbf16>
    %326 = arith.truncf %323 : vector<2x64xf32> to vector<2x64xbf16>
    %cst_147 = arith.constant dense<0.000000e+00> : vector<4x64xf32>
    %327 = tpu.matmul %325, %326, %cst_147 {dimension_numbers = #tpu.dot_dimension_numbers<[1], [0], [0], [1], [0, 0, 1, 1], [], []>} : vector<4x2xbf16>, vector<2x64xbf16>, vector<4x64xf32> -> vector<4x64xf32>
    %cst_148 = arith.constant dense<0.000000e+00> : vector<4xf32>
    %328 = vector.multi_reduction <add>, %327, %cst_148 [1] : vector<4x64xf32> to vector<4xf32>
    %329 = vector.shape_cast %328 : vector<4xf32> to vector<4x1xf32>
    %cst_149 = arith.constant 1.562500e-02 : f32
    %330 = vector.broadcast %cst_149 : f32 to vector<4x1xf32>
    %331 = arith.mulf %329, %330 : vector<4x1xf32>
    %332 = vector.broadcast %331 : vector<4x1xf32> to vector<4x64xf32>
    %333 = arith.subf %327, %332 : vector<4x64xf32>
    %334 = arith.mulf %333, %333 : vector<4x64xf32>
    %cst_150 = arith.constant dense<0.000000e+00> : vector<4xf32>
    %335 = vector.multi_reduction <add>, %334, %cst_150 [1] : vector<4x64xf32> to vector<4xf32>
    %336 = vector.shape_cast %335 : vector<4xf32> to vector<4x1xf32>
    %cst_151 = arith.constant 1.562500e-02 : f32
    %337 = vector.broadcast %cst_151 : f32 to vector<4x1xf32>
    %338 = arith.mulf %336, %337 : vector<4x1xf32>
    %cst_152 = arith.constant 9.99999974E-6 : f32
    %339 = vector.broadcast %cst_152 : f32 to vector<4x1xf32>
    %340 = arith.addf %338, %339 : vector<4x1xf32>
    %341 = math.rsqrt %340 : vector<4x1xf32>
    %342 = vector.broadcast %341 : vector<4x1xf32> to vector<4x64xf32>
    %343 = arith.mulf %333, %342 : vector<4x64xf32>
    %cst_153 = arith.constant 0.000000e+00 : f32
    %344 = vector.broadcast %cst_153 : f32 to vector<4x64xf32>
    %345 = arith.maximumf %343, %344 : vector<4x64xf32>
    %346 = arith.addf %183, %345 : vector<4x64xf32>
    %c0_154 = arith.constant 0 : index
    %c0_155 = arith.constant 0 : index
    %c0_156 = arith.constant 0 : index
    %347 = vector.load %arg5[%c0_154, %c0_155, %c0_156] : memref<1x4x64xf32, #tpu.memory_space<vmem>>, vector<1x4x64xf32>
    %348 = vector.shape_cast %347 : vector<1x4x64xf32> to vector<4x64xf32>
    %349 = vector.shape_cast %346 : vector<4x64xf32> to vector<1x4x64xf32>
    tpu.vector_store %arg5[%c0_154, %c0_155, %c0_156], %349 {strides = array<i32>} : memref<1x4x64xf32, #tpu.memory_space<vmem>>, vector<1x4x64xf32>,
    return
  }
  func.func @transform_0(%arg0: i32) -> (i32, i32, i32) {
    %c0_i32 = arith.constant 0 : i32
    %c0_i32_0 = arith.constant 0 : i32
    %c0_i32_1 = arith.constant 0 : i32
    return %arg0, %c0_i32, %c0_i32_0 : i32, i32, i32
  }
  func.func @transform_1(%arg0: i32) -> (i32, i32, i32) {
    %c0_i32 = arith.constant 0 : i32
    %c0_i32_0 = arith.constant 0 : i32
    %c0_i32_1 = arith.constant 0 : i32
    %c0_i32_2 = arith.constant 0 : i32
    return %c0_i32, %c0_i32_0, %c0_i32_1 : i32, i32, i32
  }
  func.func @transform_2(%arg0: i32) -> (i32, i32, i32) {
    %c0_i32 = arith.constant 0 : i32
    %c0_i32_0 = arith.constant 0 : i32
    %c0_i32_1 = arith.constant 0 : i32
    %c0_i32_2 = arith.constant 0 : i32
    return %c0_i32, %c0_i32_0, %c0_i32_1 : i32, i32, i32
  }
  func.func @transform_3(%arg0: i32) -> (i32, i32, i32) {
    %c0_i32 = arith.constant 0 : i32
    %c0_i32_0 = arith.constant 0 : i32
    %c0_i32_1 = arith.constant 0 : i32
    %c0_i32_2 = arith.constant 0 : i32
    return %c0_i32, %c0_i32_0, %c0_i32_1 : i32, i32, i32
  }
  func.func @transform_4(%arg0: i32) -> (i32, i32, i32) {
    %c0_i32 = arith.constant 0 : i32
    %c0_i32_0 = arith.constant 0 : i32
    %c0_i32_1 = arith.constant 0 : i32
    return %arg0, %c0_i32, %c0_i32_0 : i32, i32, i32
  }
}

module attributes {stable_mosaic.version = 11 : i64} {
  func.func @_res_chain_kernel(%arg0: i32, %arg1: memref<1x4x16xf32, #tpu.memory_space<vmem>>, %arg2: memref<2x2x4xbf16, #tpu.memory_space<vmem>>, %arg3: memref<2x18x2xbf16, #tpu.memory_space<vmem>>, %arg4: memref<2x4x2xbf16, #tpu.memory_space<vmem>>, %arg5: memref<1x4x16xf32, #tpu.memory_space<vmem>>, %arg6: memref<18x26xf32, #tpu.memory_space<vmem>>) attributes {dimension_semantics = [#tpu.dimension_semantics<parallel>], iteration_bounds = array<i64: 2>, scalar_prefetch = 0 : i64, scratch_operands = 1 : i64, tpu.core_type = #tpu.core_type<tc>, window_params = [{transform_indices = @transform_0, window_bounds = array<i64: 1, 4, 16>}, {pipeline_mode = #tpu.pipeline_mode<synchronous>, transform_indices = @transform_1, window_bounds = array<i64: 2, 2, 4>}, {pipeline_mode = #tpu.pipeline_mode<synchronous>, transform_indices = @transform_2, window_bounds = array<i64: 2, 18, 2>}, {pipeline_mode = #tpu.pipeline_mode<synchronous>, transform_indices = @transform_3, window_bounds = array<i64: 2, 4, 2>}, {transform_indices = @transform_4, window_bounds = array<i64: 1, 4, 16>}]} {
    %0 = tpu.iota {dimensions = array<i32: 1>} : vector<1x16xi32>
    %c4_i32 = arith.constant 4 : i32
    %c0_i32 = arith.constant 0 : i32
    %1 = arith.cmpi eq, %c4_i32, %c0_i32 : i32
    %c1_i32 = arith.constant 1 : i32
    %2 = arith.select %1, %c1_i32, %c4_i32 : i32
    %3 = vector.broadcast %2 : i32 to vector<1x16xi32>
    %4 = arith.remsi %0, %3 : vector<1x16xi32>
    %c0_i32_0 = arith.constant 0 : i32
    %5 = vector.broadcast %c0_i32_0 : i32 to vector<1x16xi32>
    %6 = arith.cmpi ne, %4, %5 : vector<1x16xi32>
    %c0_i32_1 = arith.constant 0 : i32
    %7 = vector.broadcast %c0_i32_1 : i32 to vector<1x16xi32>
    %8 = arith.cmpi slt, %4, %7 : vector<1x16xi32>
    %c0_i32_2 = arith.constant 0 : i32
    %9 = arith.cmpi slt, %2, %c0_i32_2 : i32
    %10 = vector.broadcast %9 : i1 to vector<1x16xi1>
    %11 = vector.broadcast %10 : vector<1x16xi1> to vector<1x16xi1>
    %12 = arith.xori %8, %11 : vector<1x16xi1>
    %13 = arith.andi %12, %6 : vector<1x16xi1>
    %14 = vector.broadcast %2 : i32 to vector<1x16xi32>
    %15 = arith.addi %4, %14 : vector<1x16xi32>
    %16 = arith.select %13, %15, %4 : vector<1x16xi1>, vector<1x16xi32>
    %cst = arith.constant 0.000000e+00 : f32
    %17 = vector.broadcast %cst : f32 to vector<18x26xf32>
    %c0 = arith.constant 0 : index
    %c0_3 = arith.constant 0 : index
    %18 = vector.load %arg6[%c0, %c0_3] : memref<18x26xf32, #tpu.memory_space<vmem>>, vector<18x26xf32>
    tpu.vector_store %arg6[%c0, %c0_3], %17 {strides = array<i32>} : memref<18x26xf32, #tpu.memory_space<vmem>>, vector<18x26xf32>,
    %c0_4 = arith.constant 0 : index
    %c0_5 = arith.constant 0 : index
    %c0_6 = arith.constant 0 : index
    %19 = vector.load %arg1[%c0_4, %c0_5, %c0_6] : memref<1x4x16xf32, #tpu.memory_space<vmem>>, vector<1x4x16xf32>
    %20 = vector.shape_cast %19 : vector<1x4x16xf32> to vector<4x16xf32>
    %c0_7 = arith.constant 0 : index
    %c0_8 = arith.constant 0 : index
    %c0_9 = arith.constant 0 : index
    %21 = vector.load %arg2[%c0_7, %c0_8, %c0_9] : memref<2x2x4xbf16, #tpu.memory_space<vmem>>, vector<1x2x4xbf16>
    %22 = vector.shape_cast %21 : vector<1x2x4xbf16> to vector<2x4xbf16>
    %23 = arith.truncf %20 : vector<4x16xf32> to vector<4x16xbf16>
    %cst_10 = arith.constant dense<0.000000e+00> : vector<2x16xf32>
    %24 = tpu.matmul %22, %23, %cst_10 {dimension_numbers = #tpu.dot_dimension_numbers<[1], [0], [0], [1], [0, 0, 1, 1], [], []>} : vector<2x4xbf16>, vector<4x16xbf16>, vector<2x16xf32> -> vector<2x16xf32>
    %cst_11 = arith.constant dense<0.000000e+00> : vector<2xf32>
    %25 = vector.multi_reduction <add>, %24, %cst_11 [1] : vector<2x16xf32> to vector<2xf32>
    %26 = vector.shape_cast %25 : vector<2xf32> to vector<2x1xf32>
    %cst_12 = arith.constant 6.250000e-02 : f32
    %27 = vector.broadcast %cst_12 : f32 to vector<2x1xf32>
    %28 = arith.mulf %26, %27 : vector<2x1xf32>
    %29 = vector.broadcast %28 : vector<2x1xf32> to vector<2x16xf32>
    %30 = arith.subf %24, %29 : vector<2x16xf32>
    %31 = arith.mulf %30, %30 : vector<2x16xf32>
    %cst_13 = arith.constant dense<0.000000e+00> : vector<2xf32>
    %32 = vector.multi_reduction <add>, %31, %cst_13 [1] : vector<2x16xf32> to vector<2xf32>
    %33 = vector.shape_cast %32 : vector<2xf32> to vector<2x1xf32>
    %cst_14 = arith.constant 6.250000e-02 : f32
    %34 = vector.broadcast %cst_14 : f32 to vector<2x1xf32>
    %35 = arith.mulf %33, %34 : vector<2x1xf32>
    %cst_15 = arith.constant 9.99999974E-6 : f32
    %36 = vector.broadcast %cst_15 : f32 to vector<2x1xf32>
    %37 = arith.addf %35, %36 : vector<2x1xf32>
    %38 = math.rsqrt %37 : vector<2x1xf32>
    %39 = vector.broadcast %38 : vector<2x1xf32> to vector<2x16xf32>
    %40 = arith.mulf %30, %39 : vector<2x16xf32>
    %cst_16 = arith.constant 0.000000e+00 : f32
    %41 = vector.broadcast %cst_16 : f32 to vector<2x16xf32>
    %42 = arith.maximumf %40, %41 : vector<2x16xf32>
    %c0_17 = arith.constant 0 : index
    %c0_18 = arith.constant 0 : index
    %c0_19 = arith.constant 0 : index
    %43 = vector.load %arg3[%c0_17, %c0_18, %c0_19] : memref<2x18x2xbf16, #tpu.memory_space<vmem>>, vector<1x18x2xbf16>
    %44 = vector.shape_cast %43 : vector<1x18x2xbf16> to vector<18x2xbf16>
    %45 = arith.truncf %42 : vector<2x16xf32> to vector<2x16xbf16>
    %cst_20 = arith.constant dense<0.000000e+00> : vector<18x16xf32>
    %46 = tpu.matmul %44, %45, %cst_20 {dimension_numbers = #tpu.dot_dimension_numbers<[1], [0], [0], [1], [0, 0, 1, 1], [], []>} : vector<18x2xbf16>, vector<2x16xbf16>, vector<18x16xf32> -> vector<18x16xf32>
    %c0_21 = arith.constant 0 : index
    %c5 = arith.constant 5 : index
    %47 = vector.load %arg6[%c0_21, %c5] : memref<18x26xf32, #tpu.memory_space<vmem>>, vector<18x16xf32>
    tpu.vector_store %arg6[%c0_21, %c5], %46 {strides = array<i32>} : memref<18x26xf32, #tpu.memory_space<vmem>>, vector<18x16xf32>,
    %c0_22 = arith.constant 0 : index
    %c0_23 = arith.constant 0 : index
    %48 = vector.load %arg6[%c0_22, %c0_23] : memref<18x26xf32, #tpu.memory_space<vmem>>, vector<2x16xf32>
    %c-1_i32 = arith.constant -1 : i32
    %49 = vector.broadcast %c-1_i32 : i32 to vector<1x16xi32>
    %50 = arith.addi %16, %49 : vector<1x16xi32>
    %c0_i32_24 = arith.constant 0 : i32
    %51 = vector.broadcast %c0_i32_24 : i32 to vector<1x16xi32>
    %52 = arith.cmpi sge, %50, %51 : vector<1x16xi32>
    %c-1_i32_25 = arith.constant -1 : i32
    %53 = vector.broadcast %c-1_i32_25 : i32 to vector<1x16xi32>
    %54 = arith.addi %16, %53 : vector<1x16xi32>
    %c4_i32_26 = arith.constant 4 : i32
    %55 = vector.broadcast %c4_i32_26 : i32 to vector<1x16xi32>
    %56 = arith.cmpi slt, %54, %55 : vector<1x16xi32>
    %57 = arith.andi %52, %56 : vector<1x16xi1>
    %cst_27 = arith.constant 0.000000e+00 : f32
    %58 = vector.shape_cast %57 : vector<1x16xi1> to vector<1x16xi1>
    %59 = vector.broadcast %58 : vector<1x16xi1> to vector<2x16xi1>
    %60 = vector.broadcast %cst_27 : f32 to vector<2x16xf32>
    %61 = arith.select %59, %48, %60 : vector<2x16xi1>, vector<2x16xf32>
    %c2 = arith.constant 2 : index
    %c1 = arith.constant 1 : index
    %62 = vector.load %arg6[%c2, %c1] : memref<18x26xf32, #tpu.memory_space<vmem>>, vector<2x16xf32>
    %63 = arith.addf %61, %62 : vector<2x16xf32>
    %c4 = arith.constant 4 : index
    %c2_28 = arith.constant 2 : index
    %64 = vector.load %arg6[%c4, %c2_28] : memref<18x26xf32, #tpu.memory_space<vmem>>, vector<2x16xf32>
    %c1_i32_29 = arith.constant 1 : i32
    %65 = vector.broadcast %c1_i32_29 : i32 to vector<1x16xi32>
    %66 = arith.addi %16, %65 : vector<1x16xi32>
    %c0_i32_30 = arith.constant 0 : i32
    %67 = vector.broadcast %c0_i32_30 : i32 to vector<1x16xi32>
    %68 = arith.cmpi sge, %66, %67 : vector<1x16xi32>
    %c1_i32_31 = arith.constant 1 : i32
    %69 = vector.broadcast %c1_i32_31 : i32 to vector<1x16xi32>
    %70 = arith.addi %16, %69 : vector<1x16xi32>
    %c4_i32_32 = arith.constant 4 : i32
    %71 = vector.broadcast %c4_i32_32 : i32 to vector<1x16xi32>
    %72 = arith.cmpi slt, %70, %71 : vector<1x16xi32>
    %73 = arith.andi %68, %72 : vector<1x16xi1>
    %cst_33 = arith.constant 0.000000e+00 : f32
    %74 = vector.shape_cast %73 : vector<1x16xi1> to vector<1x16xi1>
    %75 = vector.broadcast %74 : vector<1x16xi1> to vector<2x16xi1>
    %76 = vector.broadcast %cst_33 : f32 to vector<2x16xf32>
    %77 = arith.select %75, %64, %76 : vector<2x16xi1>, vector<2x16xf32>
    %78 = arith.addf %63, %77 : vector<2x16xf32>
    %c6 = arith.constant 6 : index
    %c4_34 = arith.constant 4 : index
    %79 = vector.load %arg6[%c6, %c4_34] : memref<18x26xf32, #tpu.memory_space<vmem>>, vector<2x16xf32>
    %c-1_i32_35 = arith.constant -1 : i32
    %80 = vector.broadcast %c-1_i32_35 : i32 to vector<1x16xi32>
    %81 = arith.addi %16, %80 : vector<1x16xi32>
    %c0_i32_36 = arith.constant 0 : i32
    %82 = vector.broadcast %c0_i32_36 : i32 to vector<1x16xi32>
    %83 = arith.cmpi sge, %81, %82 : vector<1x16xi32>
    %c-1_i32_37 = arith.constant -1 : i32
    %84 = vector.broadcast %c-1_i32_37 : i32 to vector<1x16xi32>
    %85 = arith.addi %16, %84 : vector<1x16xi32>
    %c4_i32_38 = arith.constant 4 : i32
    %86 = vector.broadcast %c4_i32_38 : i32 to vector<1x16xi32>
    %87 = arith.cmpi slt, %85, %86 : vector<1x16xi32>
    %88 = arith.andi %83, %87 : vector<1x16xi1>
    %cst_39 = arith.constant 0.000000e+00 : f32
    %89 = vector.shape_cast %88 : vector<1x16xi1> to vector<1x16xi1>
    %90 = vector.broadcast %89 : vector<1x16xi1> to vector<2x16xi1>
    %91 = vector.broadcast %cst_39 : f32 to vector<2x16xf32>
    %92 = arith.select %90, %79, %91 : vector<2x16xi1>, vector<2x16xf32>
    %93 = arith.addf %78, %92 : vector<2x16xf32>
    %c8 = arith.constant 8 : index
    %c5_40 = arith.constant 5 : index
    %94 = vector.load %arg6[%c8, %c5_40] : memref<18x26xf32, #tpu.memory_space<vmem>>, vector<2x16xf32>
    %95 = arith.addf %93, %94 : vector<2x16xf32>
    %c10 = arith.constant 10 : index
    %c6_41 = arith.constant 6 : index
    %96 = vector.load %arg6[%c10, %c6_41] : memref<18x26xf32, #tpu.memory_space<vmem>>, vector<2x16xf32>
    %c1_i32_42 = arith.constant 1 : i32
    %97 = vector.broadcast %c1_i32_42 : i32 to vector<1x16xi32>
    %98 = arith.addi %16, %97 : vector<1x16xi32>
    %c0_i32_43 = arith.constant 0 : i32
    %99 = vector.broadcast %c0_i32_43 : i32 to vector<1x16xi32>
    %100 = arith.cmpi sge, %98, %99 : vector<1x16xi32>
    %c1_i32_44 = arith.constant 1 : i32
    %101 = vector.broadcast %c1_i32_44 : i32 to vector<1x16xi32>
    %102 = arith.addi %16, %101 : vector<1x16xi32>
    %c4_i32_45 = arith.constant 4 : i32
    %103 = vector.broadcast %c4_i32_45 : i32 to vector<1x16xi32>
    %104 = arith.cmpi slt, %102, %103 : vector<1x16xi32>
    %105 = arith.andi %100, %104 : vector<1x16xi1>
    %cst_46 = arith.constant 0.000000e+00 : f32
    %106 = vector.shape_cast %105 : vector<1x16xi1> to vector<1x16xi1>
    %107 = vector.broadcast %106 : vector<1x16xi1> to vector<2x16xi1>
    %108 = vector.broadcast %cst_46 : f32 to vector<2x16xf32>
    %109 = arith.select %107, %96, %108 : vector<2x16xi1>, vector<2x16xf32>
    %110 = arith.addf %95, %109 : vector<2x16xf32>
    %c12 = arith.constant 12 : index
    %c8_47 = arith.constant 8 : index
    %111 = vector.load %arg6[%c12, %c8_47] : memref<18x26xf32, #tpu.memory_space<vmem>>, vector<2x16xf32>
    %c-1_i32_48 = arith.constant -1 : i32
    %112 = vector.broadcast %c-1_i32_48 : i32 to vector<1x16xi32>
    %113 = arith.addi %16, %112 : vector<1x16xi32>
    %c0_i32_49 = arith.constant 0 : i32
    %114 = vector.broadcast %c0_i32_49 : i32 to vector<1x16xi32>
    %115 = arith.cmpi sge, %113, %114 : vector<1x16xi32>
    %c-1_i32_50 = arith.constant -1 : i32
    %116 = vector.broadcast %c-1_i32_50 : i32 to vector<1x16xi32>
    %117 = arith.addi %16, %116 : vector<1x16xi32>
    %c4_i32_51 = arith.constant 4 : i32
    %118 = vector.broadcast %c4_i32_51 : i32 to vector<1x16xi32>
    %119 = arith.cmpi slt, %117, %118 : vector<1x16xi32>
    %120 = arith.andi %115, %119 : vector<1x16xi1>
    %cst_52 = arith.constant 0.000000e+00 : f32
    %121 = vector.shape_cast %120 : vector<1x16xi1> to vector<1x16xi1>
    %122 = vector.broadcast %121 : vector<1x16xi1> to vector<2x16xi1>
    %123 = vector.broadcast %cst_52 : f32 to vector<2x16xf32>
    %124 = arith.select %122, %111, %123 : vector<2x16xi1>, vector<2x16xf32>
    %125 = arith.addf %110, %124 : vector<2x16xf32>
    %c14 = arith.constant 14 : index
    %c9 = arith.constant 9 : index
    %126 = vector.load %arg6[%c14, %c9] : memref<18x26xf32, #tpu.memory_space<vmem>>, vector<2x16xf32>
    %127 = arith.addf %125, %126 : vector<2x16xf32>
    %c16 = arith.constant 16 : index
    %c10_53 = arith.constant 10 : index
    %128 = vector.load %arg6[%c16, %c10_53] : memref<18x26xf32, #tpu.memory_space<vmem>>, vector<2x16xf32>
    %c1_i32_54 = arith.constant 1 : i32
    %129 = vector.broadcast %c1_i32_54 : i32 to vector<1x16xi32>
    %130 = arith.addi %16, %129 : vector<1x16xi32>
    %c0_i32_55 = arith.constant 0 : i32
    %131 = vector.broadcast %c0_i32_55 : i32 to vector<1x16xi32>
    %132 = arith.cmpi sge, %130, %131 : vector<1x16xi32>
    %c1_i32_56 = arith.constant 1 : i32
    %133 = vector.broadcast %c1_i32_56 : i32 to vector<1x16xi32>
    %134 = arith.addi %16, %133 : vector<1x16xi32>
    %c4_i32_57 = arith.constant 4 : i32
    %135 = vector.broadcast %c4_i32_57 : i32 to vector<1x16xi32>
    %136 = arith.cmpi slt, %134, %135 : vector<1x16xi32>
    %137 = arith.andi %132, %136 : vector<1x16xi1>
    %cst_58 = arith.constant 0.000000e+00 : f32
    %138 = vector.shape_cast %137 : vector<1x16xi1> to vector<1x16xi1>
    %139 = vector.broadcast %138 : vector<1x16xi1> to vector<2x16xi1>
    %140 = vector.broadcast %cst_58 : f32 to vector<2x16xf32>
    %141 = arith.select %139, %128, %140 : vector<2x16xi1>, vector<2x16xf32>
    %142 = arith.addf %127, %141 : vector<2x16xf32>
    %cst_59 = arith.constant dense<0.000000e+00> : vector<2xf32>
    %143 = vector.multi_reduction <add>, %142, %cst_59 [1] : vector<2x16xf32> to vector<2xf32>
    %144 = vector.shape_cast %143 : vector<2xf32> to vector<2x1xf32>
    %cst_60 = arith.constant 6.250000e-02 : f32
    %145 = vector.broadcast %cst_60 : f32 to vector<2x1xf32>
    %146 = arith.mulf %144, %145 : vector<2x1xf32>
    %147 = vector.broadcast %146 : vector<2x1xf32> to vector<2x16xf32>
    %148 = arith.subf %142, %147 : vector<2x16xf32>
    %149 = arith.mulf %148, %148 : vector<2x16xf32>
    %cst_61 = arith.constant dense<0.000000e+00> : vector<2xf32>
    %150 = vector.multi_reduction <add>, %149, %cst_61 [1] : vector<2x16xf32> to vector<2xf32>
    %151 = vector.shape_cast %150 : vector<2xf32> to vector<2x1xf32>
    %cst_62 = arith.constant 6.250000e-02 : f32
    %152 = vector.broadcast %cst_62 : f32 to vector<2x1xf32>
    %153 = arith.mulf %151, %152 : vector<2x1xf32>
    %cst_63 = arith.constant 9.99999974E-6 : f32
    %154 = vector.broadcast %cst_63 : f32 to vector<2x1xf32>
    %155 = arith.addf %153, %154 : vector<2x1xf32>
    %156 = math.rsqrt %155 : vector<2x1xf32>
    %157 = vector.broadcast %156 : vector<2x1xf32> to vector<2x16xf32>
    %158 = arith.mulf %148, %157 : vector<2x16xf32>
    %cst_64 = arith.constant 0.000000e+00 : f32
    %159 = vector.broadcast %cst_64 : f32 to vector<2x16xf32>
    %160 = arith.maximumf %158, %159 : vector<2x16xf32>
    %c0_65 = arith.constant 0 : index
    %c0_66 = arith.constant 0 : index
    %c0_67 = arith.constant 0 : index
    %161 = vector.load %arg4[%c0_65, %c0_66, %c0_67] : memref<2x4x2xbf16, #tpu.memory_space<vmem>>, vector<1x4x2xbf16>
    %162 = vector.shape_cast %161 : vector<1x4x2xbf16> to vector<4x2xbf16>
    %163 = arith.truncf %160 : vector<2x16xf32> to vector<2x16xbf16>
    %cst_68 = arith.constant dense<0.000000e+00> : vector<4x16xf32>
    %164 = tpu.matmul %162, %163, %cst_68 {dimension_numbers = #tpu.dot_dimension_numbers<[1], [0], [0], [1], [0, 0, 1, 1], [], []>} : vector<4x2xbf16>, vector<2x16xbf16>, vector<4x16xf32> -> vector<4x16xf32>
    %cst_69 = arith.constant dense<0.000000e+00> : vector<4xf32>
    %165 = vector.multi_reduction <add>, %164, %cst_69 [1] : vector<4x16xf32> to vector<4xf32>
    %166 = vector.shape_cast %165 : vector<4xf32> to vector<4x1xf32>
    %cst_70 = arith.constant 6.250000e-02 : f32
    %167 = vector.broadcast %cst_70 : f32 to vector<4x1xf32>
    %168 = arith.mulf %166, %167 : vector<4x1xf32>
    %169 = vector.broadcast %168 : vector<4x1xf32> to vector<4x16xf32>
    %170 = arith.subf %164, %169 : vector<4x16xf32>
    %171 = arith.mulf %170, %170 : vector<4x16xf32>
    %cst_71 = arith.constant dense<0.000000e+00> : vector<4xf32>
    %172 = vector.multi_reduction <add>, %171, %cst_71 [1] : vector<4x16xf32> to vector<4xf32>
    %173 = vector.shape_cast %172 : vector<4xf32> to vector<4x1xf32>
    %cst_72 = arith.constant 6.250000e-02 : f32
    %174 = vector.broadcast %cst_72 : f32 to vector<4x1xf32>
    %175 = arith.mulf %173, %174 : vector<4x1xf32>
    %cst_73 = arith.constant 9.99999974E-6 : f32
    %176 = vector.broadcast %cst_73 : f32 to vector<4x1xf32>
    %177 = arith.addf %175, %176 : vector<4x1xf32>
    %178 = math.rsqrt %177 : vector<4x1xf32>
    %179 = vector.broadcast %178 : vector<4x1xf32> to vector<4x16xf32>
    %180 = arith.mulf %170, %179 : vector<4x16xf32>
    %cst_74 = arith.constant 0.000000e+00 : f32
    %181 = vector.broadcast %cst_74 : f32 to vector<4x16xf32>
    %182 = arith.maximumf %180, %181 : vector<4x16xf32>
    %183 = arith.addf %20, %182 : vector<4x16xf32>
    %c1_75 = arith.constant 1 : index
    %c0_76 = arith.constant 0 : index
    %c0_77 = arith.constant 0 : index
    %184 = vector.load %arg2[%c1_75, %c0_76, %c0_77] : memref<2x2x4xbf16, #tpu.memory_space<vmem>>, vector<1x2x4xbf16>
    %185 = vector.shape_cast %184 : vector<1x2x4xbf16> to vector<2x4xbf16>
    %186 = arith.truncf %183 : vector<4x16xf32> to vector<4x16xbf16>
    %cst_78 = arith.constant dense<0.000000e+00> : vector<2x16xf32>
    %187 = tpu.matmul %185, %186, %cst_78 {dimension_numbers = #tpu.dot_dimension_numbers<[1], [0], [0], [1], [0, 0, 1, 1], [], []>} : vector<2x4xbf16>, vector<4x16xbf16>, vector<2x16xf32> -> vector<2x16xf32>
    %cst_79 = arith.constant dense<0.000000e+00> : vector<2xf32>
    %188 = vector.multi_reduction <add>, %187, %cst_79 [1] : vector<2x16xf32> to vector<2xf32>
    %189 = vector.shape_cast %188 : vector<2xf32> to vector<2x1xf32>
    %cst_80 = arith.constant 6.250000e-02 : f32
    %190 = vector.broadcast %cst_80 : f32 to vector<2x1xf32>
    %191 = arith.mulf %189, %190 : vector<2x1xf32>
    %192 = vector.broadcast %191 : vector<2x1xf32> to vector<2x16xf32>
    %193 = arith.subf %187, %192 : vector<2x16xf32>
    %194 = arith.mulf %193, %193 : vector<2x16xf32>
    %cst_81 = arith.constant dense<0.000000e+00> : vector<2xf32>
    %195 = vector.multi_reduction <add>, %194, %cst_81 [1] : vector<2x16xf32> to vector<2xf32>
    %196 = vector.shape_cast %195 : vector<2xf32> to vector<2x1xf32>
    %cst_82 = arith.constant 6.250000e-02 : f32
    %197 = vector.broadcast %cst_82 : f32 to vector<2x1xf32>
    %198 = arith.mulf %196, %197 : vector<2x1xf32>
    %cst_83 = arith.constant 9.99999974E-6 : f32
    %199 = vector.broadcast %cst_83 : f32 to vector<2x1xf32>
    %200 = arith.addf %198, %199 : vector<2x1xf32>
    %201 = math.rsqrt %200 : vector<2x1xf32>
    %202 = vector.broadcast %201 : vector<2x1xf32> to vector<2x16xf32>
    %203 = arith.mulf %193, %202 : vector<2x16xf32>
    %cst_84 = arith.constant 0.000000e+00 : f32
    %204 = vector.broadcast %cst_84 : f32 to vector<2x16xf32>
    %205 = arith.maximumf %203, %204 : vector<2x16xf32>
    %c1_85 = arith.constant 1 : index
    %c0_86 = arith.constant 0 : index
    %c0_87 = arith.constant 0 : index
    %206 = vector.load %arg3[%c1_85, %c0_86, %c0_87] : memref<2x18x2xbf16, #tpu.memory_space<vmem>>, vector<1x18x2xbf16>
    %207 = vector.shape_cast %206 : vector<1x18x2xbf16> to vector<18x2xbf16>
    %208 = arith.truncf %205 : vector<2x16xf32> to vector<2x16xbf16>
    %cst_88 = arith.constant dense<0.000000e+00> : vector<18x16xf32>
    %209 = tpu.matmul %207, %208, %cst_88 {dimension_numbers = #tpu.dot_dimension_numbers<[1], [0], [0], [1], [0, 0, 1, 1], [], []>} : vector<18x2xbf16>, vector<2x16xbf16>, vector<18x16xf32> -> vector<18x16xf32>
    %c0_89 = arith.constant 0 : index
    %c5_90 = arith.constant 5 : index
    %210 = vector.load %arg6[%c0_89, %c5_90] : memref<18x26xf32, #tpu.memory_space<vmem>>, vector<18x16xf32>
    tpu.vector_store %arg6[%c0_89, %c5_90], %209 {strides = array<i32>} : memref<18x26xf32, #tpu.memory_space<vmem>>, vector<18x16xf32>,
    %c0_91 = arith.constant 0 : index
    %c0_92 = arith.constant 0 : index
    %211 = vector.load %arg6[%c0_91, %c0_92] : memref<18x26xf32, #tpu.memory_space<vmem>>, vector<2x16xf32>
    %c-1_i32_93 = arith.constant -1 : i32
    %212 = vector.broadcast %c-1_i32_93 : i32 to vector<1x16xi32>
    %213 = arith.addi %16, %212 : vector<1x16xi32>
    %c0_i32_94 = arith.constant 0 : i32
    %214 = vector.broadcast %c0_i32_94 : i32 to vector<1x16xi32>
    %215 = arith.cmpi sge, %213, %214 : vector<1x16xi32>
    %c-1_i32_95 = arith.constant -1 : i32
    %216 = vector.broadcast %c-1_i32_95 : i32 to vector<1x16xi32>
    %217 = arith.addi %16, %216 : vector<1x16xi32>
    %c4_i32_96 = arith.constant 4 : i32
    %218 = vector.broadcast %c4_i32_96 : i32 to vector<1x16xi32>
    %219 = arith.cmpi slt, %217, %218 : vector<1x16xi32>
    %220 = arith.andi %215, %219 : vector<1x16xi1>
    %cst_97 = arith.constant 0.000000e+00 : f32
    %221 = vector.shape_cast %220 : vector<1x16xi1> to vector<1x16xi1>
    %222 = vector.broadcast %221 : vector<1x16xi1> to vector<2x16xi1>
    %223 = vector.broadcast %cst_97 : f32 to vector<2x16xf32>
    %224 = arith.select %222, %211, %223 : vector<2x16xi1>, vector<2x16xf32>
    %c2_98 = arith.constant 2 : index
    %c1_99 = arith.constant 1 : index
    %225 = vector.load %arg6[%c2_98, %c1_99] : memref<18x26xf32, #tpu.memory_space<vmem>>, vector<2x16xf32>
    %226 = arith.addf %224, %225 : vector<2x16xf32>
    %c4_100 = arith.constant 4 : index
    %c2_101 = arith.constant 2 : index
    %227 = vector.load %arg6[%c4_100, %c2_101] : memref<18x26xf32, #tpu.memory_space<vmem>>, vector<2x16xf32>
    %c1_i32_102 = arith.constant 1 : i32
    %228 = vector.broadcast %c1_i32_102 : i32 to vector<1x16xi32>
    %229 = arith.addi %16, %228 : vector<1x16xi32>
    %c0_i32_103 = arith.constant 0 : i32
    %230 = vector.broadcast %c0_i32_103 : i32 to vector<1x16xi32>
    %231 = arith.cmpi sge, %229, %230 : vector<1x16xi32>
    %c1_i32_104 = arith.constant 1 : i32
    %232 = vector.broadcast %c1_i32_104 : i32 to vector<1x16xi32>
    %233 = arith.addi %16, %232 : vector<1x16xi32>
    %c4_i32_105 = arith.constant 4 : i32
    %234 = vector.broadcast %c4_i32_105 : i32 to vector<1x16xi32>
    %235 = arith.cmpi slt, %233, %234 : vector<1x16xi32>
    %236 = arith.andi %231, %235 : vector<1x16xi1>
    %cst_106 = arith.constant 0.000000e+00 : f32
    %237 = vector.shape_cast %236 : vector<1x16xi1> to vector<1x16xi1>
    %238 = vector.broadcast %237 : vector<1x16xi1> to vector<2x16xi1>
    %239 = vector.broadcast %cst_106 : f32 to vector<2x16xf32>
    %240 = arith.select %238, %227, %239 : vector<2x16xi1>, vector<2x16xf32>
    %241 = arith.addf %226, %240 : vector<2x16xf32>
    %c6_107 = arith.constant 6 : index
    %c4_108 = arith.constant 4 : index
    %242 = vector.load %arg6[%c6_107, %c4_108] : memref<18x26xf32, #tpu.memory_space<vmem>>, vector<2x16xf32>
    %c-1_i32_109 = arith.constant -1 : i32
    %243 = vector.broadcast %c-1_i32_109 : i32 to vector<1x16xi32>
    %244 = arith.addi %16, %243 : vector<1x16xi32>
    %c0_i32_110 = arith.constant 0 : i32
    %245 = vector.broadcast %c0_i32_110 : i32 to vector<1x16xi32>
    %246 = arith.cmpi sge, %244, %245 : vector<1x16xi32>
    %c-1_i32_111 = arith.constant -1 : i32
    %247 = vector.broadcast %c-1_i32_111 : i32 to vector<1x16xi32>
    %248 = arith.addi %16, %247 : vector<1x16xi32>
    %c4_i32_112 = arith.constant 4 : i32
    %249 = vector.broadcast %c4_i32_112 : i32 to vector<1x16xi32>
    %250 = arith.cmpi slt, %248, %249 : vector<1x16xi32>
    %251 = arith.andi %246, %250 : vector<1x16xi1>
    %cst_113 = arith.constant 0.000000e+00 : f32
    %252 = vector.shape_cast %251 : vector<1x16xi1> to vector<1x16xi1>
    %253 = vector.broadcast %252 : vector<1x16xi1> to vector<2x16xi1>
    %254 = vector.broadcast %cst_113 : f32 to vector<2x16xf32>
    %255 = arith.select %253, %242, %254 : vector<2x16xi1>, vector<2x16xf32>
    %256 = arith.addf %241, %255 : vector<2x16xf32>
    %c8_114 = arith.constant 8 : index
    %c5_115 = arith.constant 5 : index
    %257 = vector.load %arg6[%c8_114, %c5_115] : memref<18x26xf32, #tpu.memory_space<vmem>>, vector<2x16xf32>
    %258 = arith.addf %256, %257 : vector<2x16xf32>
    %c10_116 = arith.constant 10 : index
    %c6_117 = arith.constant 6 : index
    %259 = vector.load %arg6[%c10_116, %c6_117] : memref<18x26xf32, #tpu.memory_space<vmem>>, vector<2x16xf32>
    %c1_i32_118 = arith.constant 1 : i32
    %260 = vector.broadcast %c1_i32_118 : i32 to vector<1x16xi32>
    %261 = arith.addi %16, %260 : vector<1x16xi32>
    %c0_i32_119 = arith.constant 0 : i32
    %262 = vector.broadcast %c0_i32_119 : i32 to vector<1x16xi32>
    %263 = arith.cmpi sge, %261, %262 : vector<1x16xi32>
    %c1_i32_120 = arith.constant 1 : i32
    %264 = vector.broadcast %c1_i32_120 : i32 to vector<1x16xi32>
    %265 = arith.addi %16, %264 : vector<1x16xi32>
    %c4_i32_121 = arith.constant 4 : i32
    %266 = vector.broadcast %c4_i32_121 : i32 to vector<1x16xi32>
    %267 = arith.cmpi slt, %265, %266 : vector<1x16xi32>
    %268 = arith.andi %263, %267 : vector<1x16xi1>
    %cst_122 = arith.constant 0.000000e+00 : f32
    %269 = vector.shape_cast %268 : vector<1x16xi1> to vector<1x16xi1>
    %270 = vector.broadcast %269 : vector<1x16xi1> to vector<2x16xi1>
    %271 = vector.broadcast %cst_122 : f32 to vector<2x16xf32>
    %272 = arith.select %270, %259, %271 : vector<2x16xi1>, vector<2x16xf32>
    %273 = arith.addf %258, %272 : vector<2x16xf32>
    %c12_123 = arith.constant 12 : index
    %c8_124 = arith.constant 8 : index
    %274 = vector.load %arg6[%c12_123, %c8_124] : memref<18x26xf32, #tpu.memory_space<vmem>>, vector<2x16xf32>
    %c-1_i32_125 = arith.constant -1 : i32
    %275 = vector.broadcast %c-1_i32_125 : i32 to vector<1x16xi32>
    %276 = arith.addi %16, %275 : vector<1x16xi32>
    %c0_i32_126 = arith.constant 0 : i32
    %277 = vector.broadcast %c0_i32_126 : i32 to vector<1x16xi32>
    %278 = arith.cmpi sge, %276, %277 : vector<1x16xi32>
    %c-1_i32_127 = arith.constant -1 : i32
    %279 = vector.broadcast %c-1_i32_127 : i32 to vector<1x16xi32>
    %280 = arith.addi %16, %279 : vector<1x16xi32>
    %c4_i32_128 = arith.constant 4 : i32
    %281 = vector.broadcast %c4_i32_128 : i32 to vector<1x16xi32>
    %282 = arith.cmpi slt, %280, %281 : vector<1x16xi32>
    %283 = arith.andi %278, %282 : vector<1x16xi1>
    %cst_129 = arith.constant 0.000000e+00 : f32
    %284 = vector.shape_cast %283 : vector<1x16xi1> to vector<1x16xi1>
    %285 = vector.broadcast %284 : vector<1x16xi1> to vector<2x16xi1>
    %286 = vector.broadcast %cst_129 : f32 to vector<2x16xf32>
    %287 = arith.select %285, %274, %286 : vector<2x16xi1>, vector<2x16xf32>
    %288 = arith.addf %273, %287 : vector<2x16xf32>
    %c14_130 = arith.constant 14 : index
    %c9_131 = arith.constant 9 : index
    %289 = vector.load %arg6[%c14_130, %c9_131] : memref<18x26xf32, #tpu.memory_space<vmem>>, vector<2x16xf32>
    %290 = arith.addf %288, %289 : vector<2x16xf32>
    %c16_132 = arith.constant 16 : index
    %c10_133 = arith.constant 10 : index
    %291 = vector.load %arg6[%c16_132, %c10_133] : memref<18x26xf32, #tpu.memory_space<vmem>>, vector<2x16xf32>
    %c1_i32_134 = arith.constant 1 : i32
    %292 = vector.broadcast %c1_i32_134 : i32 to vector<1x16xi32>
    %293 = arith.addi %16, %292 : vector<1x16xi32>
    %c0_i32_135 = arith.constant 0 : i32
    %294 = vector.broadcast %c0_i32_135 : i32 to vector<1x16xi32>
    %295 = arith.cmpi sge, %293, %294 : vector<1x16xi32>
    %c1_i32_136 = arith.constant 1 : i32
    %296 = vector.broadcast %c1_i32_136 : i32 to vector<1x16xi32>
    %297 = arith.addi %16, %296 : vector<1x16xi32>
    %c4_i32_137 = arith.constant 4 : i32
    %298 = vector.broadcast %c4_i32_137 : i32 to vector<1x16xi32>
    %299 = arith.cmpi slt, %297, %298 : vector<1x16xi32>
    %300 = arith.andi %295, %299 : vector<1x16xi1>
    %cst_138 = arith.constant 0.000000e+00 : f32
    %301 = vector.shape_cast %300 : vector<1x16xi1> to vector<1x16xi1>
    %302 = vector.broadcast %301 : vector<1x16xi1> to vector<2x16xi1>
    %303 = vector.broadcast %cst_138 : f32 to vector<2x16xf32>
    %304 = arith.select %302, %291, %303 : vector<2x16xi1>, vector<2x16xf32>
    %305 = arith.addf %290, %304 : vector<2x16xf32>
    %cst_139 = arith.constant dense<0.000000e+00> : vector<2xf32>
    %306 = vector.multi_reduction <add>, %305, %cst_139 [1] : vector<2x16xf32> to vector<2xf32>
    %307 = vector.shape_cast %306 : vector<2xf32> to vector<2x1xf32>
    %cst_140 = arith.constant 6.250000e-02 : f32
    %308 = vector.broadcast %cst_140 : f32 to vector<2x1xf32>
    %309 = arith.mulf %307, %308 : vector<2x1xf32>
    %310 = vector.broadcast %309 : vector<2x1xf32> to vector<2x16xf32>
    %311 = arith.subf %305, %310 : vector<2x16xf32>
    %312 = arith.mulf %311, %311 : vector<2x16xf32>
    %cst_141 = arith.constant dense<0.000000e+00> : vector<2xf32>
    %313 = vector.multi_reduction <add>, %312, %cst_141 [1] : vector<2x16xf32> to vector<2xf32>
    %314 = vector.shape_cast %313 : vector<2xf32> to vector<2x1xf32>
    %cst_142 = arith.constant 6.250000e-02 : f32
    %315 = vector.broadcast %cst_142 : f32 to vector<2x1xf32>
    %316 = arith.mulf %314, %315 : vector<2x1xf32>
    %cst_143 = arith.constant 9.99999974E-6 : f32
    %317 = vector.broadcast %cst_143 : f32 to vector<2x1xf32>
    %318 = arith.addf %316, %317 : vector<2x1xf32>
    %319 = math.rsqrt %318 : vector<2x1xf32>
    %320 = vector.broadcast %319 : vector<2x1xf32> to vector<2x16xf32>
    %321 = arith.mulf %311, %320 : vector<2x16xf32>
    %cst_144 = arith.constant 0.000000e+00 : f32
    %322 = vector.broadcast %cst_144 : f32 to vector<2x16xf32>
    %323 = arith.maximumf %321, %322 : vector<2x16xf32>
    %c1_145 = arith.constant 1 : index
    %c0_146 = arith.constant 0 : index
    %c0_147 = arith.constant 0 : index
    %324 = vector.load %arg4[%c1_145, %c0_146, %c0_147] : memref<2x4x2xbf16, #tpu.memory_space<vmem>>, vector<1x4x2xbf16>
    %325 = vector.shape_cast %324 : vector<1x4x2xbf16> to vector<4x2xbf16>
    %326 = arith.truncf %323 : vector<2x16xf32> to vector<2x16xbf16>
    %cst_148 = arith.constant dense<0.000000e+00> : vector<4x16xf32>
    %327 = tpu.matmul %325, %326, %cst_148 {dimension_numbers = #tpu.dot_dimension_numbers<[1], [0], [0], [1], [0, 0, 1, 1], [], []>} : vector<4x2xbf16>, vector<2x16xbf16>, vector<4x16xf32> -> vector<4x16xf32>
    %cst_149 = arith.constant dense<0.000000e+00> : vector<4xf32>
    %328 = vector.multi_reduction <add>, %327, %cst_149 [1] : vector<4x16xf32> to vector<4xf32>
    %329 = vector.shape_cast %328 : vector<4xf32> to vector<4x1xf32>
    %cst_150 = arith.constant 6.250000e-02 : f32
    %330 = vector.broadcast %cst_150 : f32 to vector<4x1xf32>
    %331 = arith.mulf %329, %330 : vector<4x1xf32>
    %332 = vector.broadcast %331 : vector<4x1xf32> to vector<4x16xf32>
    %333 = arith.subf %327, %332 : vector<4x16xf32>
    %334 = arith.mulf %333, %333 : vector<4x16xf32>
    %cst_151 = arith.constant dense<0.000000e+00> : vector<4xf32>
    %335 = vector.multi_reduction <add>, %334, %cst_151 [1] : vector<4x16xf32> to vector<4xf32>
    %336 = vector.shape_cast %335 : vector<4xf32> to vector<4x1xf32>
    %cst_152 = arith.constant 6.250000e-02 : f32
    %337 = vector.broadcast %cst_152 : f32 to vector<4x1xf32>
    %338 = arith.mulf %336, %337 : vector<4x1xf32>
    %cst_153 = arith.constant 9.99999974E-6 : f32
    %339 = vector.broadcast %cst_153 : f32 to vector<4x1xf32>
    %340 = arith.addf %338, %339 : vector<4x1xf32>
    %341 = math.rsqrt %340 : vector<4x1xf32>
    %342 = vector.broadcast %341 : vector<4x1xf32> to vector<4x16xf32>
    %343 = arith.mulf %333, %342 : vector<4x16xf32>
    %cst_154 = arith.constant 0.000000e+00 : f32
    %344 = vector.broadcast %cst_154 : f32 to vector<4x16xf32>
    %345 = arith.maximumf %343, %344 : vector<4x16xf32>
    %346 = arith.addf %183, %345 : vector<4x16xf32>
    %c0_155 = arith.constant 0 : index
    %c0_156 = arith.constant 0 : index
    %c0_157 = arith.constant 0 : index
    %347 = vector.load %arg5[%c0_155, %c0_156, %c0_157] : memref<1x4x16xf32, #tpu.memory_space<vmem>>, vector<1x4x16xf32>
    %348 = vector.shape_cast %347 : vector<1x4x16xf32> to vector<4x16xf32>
    %349 = vector.shape_cast %346 : vector<4x16xf32> to vector<1x4x16xf32>
    tpu.vector_store %arg5[%c0_155, %c0_156, %c0_157], %349 {strides = array<i32>} : memref<1x4x16xf32, #tpu.memory_space<vmem>>, vector<1x4x16xf32>,
    return
  }
  func.func @transform_0(%arg0: i32) -> (i32, i32, i32) {
    %c0_i32 = arith.constant 0 : i32
    %c0_i32_0 = arith.constant 0 : i32
    %c0_i32_1 = arith.constant 0 : i32
    return %arg0, %c0_i32, %c0_i32_0 : i32, i32, i32
  }
  func.func @transform_1(%arg0: i32) -> (i32, i32, i32) {
    %c0_i32 = arith.constant 0 : i32
    %c0_i32_0 = arith.constant 0 : i32
    %c0_i32_1 = arith.constant 0 : i32
    %c0_i32_2 = arith.constant 0 : i32
    return %c0_i32, %c0_i32_0, %c0_i32_1 : i32, i32, i32
  }
  func.func @transform_2(%arg0: i32) -> (i32, i32, i32) {
    %c0_i32 = arith.constant 0 : i32
    %c0_i32_0 = arith.constant 0 : i32
    %c0_i32_1 = arith.constant 0 : i32
    %c0_i32_2 = arith.constant 0 : i32
    return %c0_i32, %c0_i32_0, %c0_i32_1 : i32, i32, i32
  }
  func.func @transform_3(%arg0: i32) -> (i32, i32, i32) {
    %c0_i32 = arith.constant 0 : i32
    %c0_i32_0 = arith.constant 0 : i32
    %c0_i32_1 = arith.constant 0 : i32
    %c0_i32_2 = arith.constant 0 : i32
    return %c0_i32, %c0_i32_0, %c0_i32_1 : i32, i32, i32
  }
  func.func @transform_4(%arg0: i32) -> (i32, i32, i32) {
    %c0_i32 = arith.constant 0 : i32
    %c0_i32_0 = arith.constant 0 : i32
    %c0_i32_1 = arith.constant 0 : i32
    return %arg0, %c0_i32, %c0_i32_0 : i32, i32, i32
  }
}

module attributes {stable_mosaic.version = 11 : i64} {
  func.func @_res_chain_kernel(%arg0: i32, %arg1: memref<1x4x256xf32, #tpu.memory_space<vmem>>, %arg2: memref<2x2x4xbf16, #tpu.memory_space<vmem>>, %arg3: memref<2x18x2xbf16, #tpu.memory_space<vmem>>, %arg4: memref<2x4x2xbf16, #tpu.memory_space<vmem>>, %arg5: memref<1x4x256xf32, #tpu.memory_space<vmem>>, %arg6: memref<18x290xf32, #tpu.memory_space<vmem>>) attributes {dimension_semantics = [#tpu.dimension_semantics<parallel>], iteration_bounds = array<i64: 2>, scalar_prefetch = 0 : i64, scratch_operands = 1 : i64, tpu.core_type = #tpu.core_type<tc>, window_params = [{transform_indices = @transform_0, window_bounds = array<i64: 1, 4, 256>}, {pipeline_mode = #tpu.pipeline_mode<synchronous>, transform_indices = @transform_1, window_bounds = array<i64: 2, 2, 4>}, {pipeline_mode = #tpu.pipeline_mode<synchronous>, transform_indices = @transform_2, window_bounds = array<i64: 2, 18, 2>}, {pipeline_mode = #tpu.pipeline_mode<synchronous>, transform_indices = @transform_3, window_bounds = array<i64: 2, 4, 2>}, {transform_indices = @transform_4, window_bounds = array<i64: 1, 4, 256>}]} {
    %0 = tpu.iota {dimensions = array<i32: 1>} : vector<1x256xi32>
    %c16_i32 = arith.constant 16 : i32
    %c0_i32 = arith.constant 0 : i32
    %1 = arith.cmpi eq, %c16_i32, %c0_i32 : i32
    %c1_i32 = arith.constant 1 : i32
    %2 = arith.select %1, %c1_i32, %c16_i32 : i32
    %3 = vector.broadcast %2 : i32 to vector<1x256xi32>
    %4 = arith.remsi %0, %3 : vector<1x256xi32>
    %c0_i32_0 = arith.constant 0 : i32
    %5 = vector.broadcast %c0_i32_0 : i32 to vector<1x256xi32>
    %6 = arith.cmpi ne, %4, %5 : vector<1x256xi32>
    %c0_i32_1 = arith.constant 0 : i32
    %7 = vector.broadcast %c0_i32_1 : i32 to vector<1x256xi32>
    %8 = arith.cmpi slt, %4, %7 : vector<1x256xi32>
    %c0_i32_2 = arith.constant 0 : i32
    %9 = arith.cmpi slt, %2, %c0_i32_2 : i32
    %10 = vector.broadcast %9 : i1 to vector<1x256xi1>
    %11 = vector.broadcast %10 : vector<1x256xi1> to vector<1x256xi1>
    %12 = arith.xori %8, %11 : vector<1x256xi1>
    %13 = arith.andi %12, %6 : vector<1x256xi1>
    %14 = vector.broadcast %2 : i32 to vector<1x256xi32>
    %15 = arith.addi %4, %14 : vector<1x256xi32>
    %16 = arith.select %13, %15, %4 : vector<1x256xi1>, vector<1x256xi32>
    %cst = arith.constant 0.000000e+00 : f32
    %17 = vector.broadcast %cst : f32 to vector<18x290xf32>
    %c0 = arith.constant 0 : index
    %c0_3 = arith.constant 0 : index
    %18 = vector.load %arg6[%c0, %c0_3] : memref<18x290xf32, #tpu.memory_space<vmem>>, vector<18x290xf32>
    tpu.vector_store %arg6[%c0, %c0_3], %17 {strides = array<i32>} : memref<18x290xf32, #tpu.memory_space<vmem>>, vector<18x290xf32>,
    %c0_4 = arith.constant 0 : index
    %c0_5 = arith.constant 0 : index
    %c0_6 = arith.constant 0 : index
    %19 = vector.load %arg1[%c0_4, %c0_5, %c0_6] : memref<1x4x256xf32, #tpu.memory_space<vmem>>, vector<1x4x256xf32>
    %20 = vector.shape_cast %19 : vector<1x4x256xf32> to vector<4x256xf32>
    %c0_7 = arith.constant 0 : index
    %c0_8 = arith.constant 0 : index
    %c0_9 = arith.constant 0 : index
    %21 = vector.load %arg2[%c0_7, %c0_8, %c0_9] : memref<2x2x4xbf16, #tpu.memory_space<vmem>>, vector<1x2x4xbf16>
    %22 = vector.shape_cast %21 : vector<1x2x4xbf16> to vector<2x4xbf16>
    %23 = arith.truncf %20 : vector<4x256xf32> to vector<4x256xbf16>
    %cst_10 = arith.constant dense<0.000000e+00> : vector<2x256xf32>
    %24 = tpu.matmul %22, %23, %cst_10 {dimension_numbers = #tpu.dot_dimension_numbers<[1], [0], [0], [1], [0, 0, 1, 1], [], []>} : vector<2x4xbf16>, vector<4x256xbf16>, vector<2x256xf32> -> vector<2x256xf32>
    %cst_11 = arith.constant dense<0.000000e+00> : vector<2xf32>
    %25 = vector.multi_reduction <add>, %24, %cst_11 [1] : vector<2x256xf32> to vector<2xf32>
    %26 = vector.shape_cast %25 : vector<2xf32> to vector<2x1xf32>
    %cst_12 = arith.constant 3.906250e-03 : f32
    %27 = vector.broadcast %cst_12 : f32 to vector<2x1xf32>
    %28 = arith.mulf %26, %27 : vector<2x1xf32>
    %29 = vector.broadcast %28 : vector<2x1xf32> to vector<2x256xf32>
    %30 = arith.subf %24, %29 : vector<2x256xf32>
    %31 = arith.mulf %30, %30 : vector<2x256xf32>
    %cst_13 = arith.constant dense<0.000000e+00> : vector<2xf32>
    %32 = vector.multi_reduction <add>, %31, %cst_13 [1] : vector<2x256xf32> to vector<2xf32>
    %33 = vector.shape_cast %32 : vector<2xf32> to vector<2x1xf32>
    %cst_14 = arith.constant 3.906250e-03 : f32
    %34 = vector.broadcast %cst_14 : f32 to vector<2x1xf32>
    %35 = arith.mulf %33, %34 : vector<2x1xf32>
    %cst_15 = arith.constant 9.99999974E-6 : f32
    %36 = vector.broadcast %cst_15 : f32 to vector<2x1xf32>
    %37 = arith.addf %35, %36 : vector<2x1xf32>
    %38 = math.rsqrt %37 : vector<2x1xf32>
    %39 = vector.broadcast %38 : vector<2x1xf32> to vector<2x256xf32>
    %40 = arith.mulf %30, %39 : vector<2x256xf32>
    %cst_16 = arith.constant 0.000000e+00 : f32
    %41 = vector.broadcast %cst_16 : f32 to vector<2x256xf32>
    %42 = arith.maximumf %40, %41 : vector<2x256xf32>
    %c0_17 = arith.constant 0 : index
    %c0_18 = arith.constant 0 : index
    %c0_19 = arith.constant 0 : index
    %43 = vector.load %arg3[%c0_17, %c0_18, %c0_19] : memref<2x18x2xbf16, #tpu.memory_space<vmem>>, vector<1x18x2xbf16>
    %44 = vector.shape_cast %43 : vector<1x18x2xbf16> to vector<18x2xbf16>
    %45 = arith.truncf %42 : vector<2x256xf32> to vector<2x256xbf16>
    %cst_20 = arith.constant dense<0.000000e+00> : vector<18x256xf32>
    %46 = tpu.matmul %44, %45, %cst_20 {dimension_numbers = #tpu.dot_dimension_numbers<[1], [0], [0], [1], [0, 0, 1, 1], [], []>} : vector<18x2xbf16>, vector<2x256xbf16>, vector<18x256xf32> -> vector<18x256xf32>
    %c0_21 = arith.constant 0 : index
    %c17 = arith.constant 17 : index
    %47 = vector.load %arg6[%c0_21, %c17] : memref<18x290xf32, #tpu.memory_space<vmem>>, vector<18x256xf32>
    tpu.vector_store %arg6[%c0_21, %c17], %46 {strides = array<i32>} : memref<18x290xf32, #tpu.memory_space<vmem>>, vector<18x256xf32>,
    %c0_22 = arith.constant 0 : index
    %c0_23 = arith.constant 0 : index
    %48 = vector.load %arg6[%c0_22, %c0_23] : memref<18x290xf32, #tpu.memory_space<vmem>>, vector<2x256xf32>
    %c-1_i32 = arith.constant -1 : i32
    %49 = vector.broadcast %c-1_i32 : i32 to vector<1x256xi32>
    %50 = arith.addi %16, %49 : vector<1x256xi32>
    %c0_i32_24 = arith.constant 0 : i32
    %51 = vector.broadcast %c0_i32_24 : i32 to vector<1x256xi32>
    %52 = arith.cmpi sge, %50, %51 : vector<1x256xi32>
    %c-1_i32_25 = arith.constant -1 : i32
    %53 = vector.broadcast %c-1_i32_25 : i32 to vector<1x256xi32>
    %54 = arith.addi %16, %53 : vector<1x256xi32>
    %c16_i32_26 = arith.constant 16 : i32
    %55 = vector.broadcast %c16_i32_26 : i32 to vector<1x256xi32>
    %56 = arith.cmpi slt, %54, %55 : vector<1x256xi32>
    %57 = arith.andi %52, %56 : vector<1x256xi1>
    %cst_27 = arith.constant 0.000000e+00 : f32
    %58 = vector.shape_cast %57 : vector<1x256xi1> to vector<1x256xi1>
    %59 = vector.broadcast %58 : vector<1x256xi1> to vector<2x256xi1>
    %60 = vector.broadcast %cst_27 : f32 to vector<2x256xf32>
    %61 = arith.select %59, %48, %60 : vector<2x256xi1>, vector<2x256xf32>
    %c2 = arith.constant 2 : index
    %c1 = arith.constant 1 : index
    %62 = vector.load %arg6[%c2, %c1] : memref<18x290xf32, #tpu.memory_space<vmem>>, vector<2x256xf32>
    %63 = arith.addf %61, %62 : vector<2x256xf32>
    %c4 = arith.constant 4 : index
    %c2_28 = arith.constant 2 : index
    %64 = vector.load %arg6[%c4, %c2_28] : memref<18x290xf32, #tpu.memory_space<vmem>>, vector<2x256xf32>
    %c1_i32_29 = arith.constant 1 : i32
    %65 = vector.broadcast %c1_i32_29 : i32 to vector<1x256xi32>
    %66 = arith.addi %16, %65 : vector<1x256xi32>
    %c0_i32_30 = arith.constant 0 : i32
    %67 = vector.broadcast %c0_i32_30 : i32 to vector<1x256xi32>
    %68 = arith.cmpi sge, %66, %67 : vector<1x256xi32>
    %c1_i32_31 = arith.constant 1 : i32
    %69 = vector.broadcast %c1_i32_31 : i32 to vector<1x256xi32>
    %70 = arith.addi %16, %69 : vector<1x256xi32>
    %c16_i32_32 = arith.constant 16 : i32
    %71 = vector.broadcast %c16_i32_32 : i32 to vector<1x256xi32>
    %72 = arith.cmpi slt, %70, %71 : vector<1x256xi32>
    %73 = arith.andi %68, %72 : vector<1x256xi1>
    %cst_33 = arith.constant 0.000000e+00 : f32
    %74 = vector.shape_cast %73 : vector<1x256xi1> to vector<1x256xi1>
    %75 = vector.broadcast %74 : vector<1x256xi1> to vector<2x256xi1>
    %76 = vector.broadcast %cst_33 : f32 to vector<2x256xf32>
    %77 = arith.select %75, %64, %76 : vector<2x256xi1>, vector<2x256xf32>
    %78 = arith.addf %63, %77 : vector<2x256xf32>
    %c6 = arith.constant 6 : index
    %c16 = arith.constant 16 : index
    %79 = vector.load %arg6[%c6, %c16] : memref<18x290xf32, #tpu.memory_space<vmem>>, vector<2x256xf32>
    %c-1_i32_34 = arith.constant -1 : i32
    %80 = vector.broadcast %c-1_i32_34 : i32 to vector<1x256xi32>
    %81 = arith.addi %16, %80 : vector<1x256xi32>
    %c0_i32_35 = arith.constant 0 : i32
    %82 = vector.broadcast %c0_i32_35 : i32 to vector<1x256xi32>
    %83 = arith.cmpi sge, %81, %82 : vector<1x256xi32>
    %c-1_i32_36 = arith.constant -1 : i32
    %84 = vector.broadcast %c-1_i32_36 : i32 to vector<1x256xi32>
    %85 = arith.addi %16, %84 : vector<1x256xi32>
    %c16_i32_37 = arith.constant 16 : i32
    %86 = vector.broadcast %c16_i32_37 : i32 to vector<1x256xi32>
    %87 = arith.cmpi slt, %85, %86 : vector<1x256xi32>
    %88 = arith.andi %83, %87 : vector<1x256xi1>
    %cst_38 = arith.constant 0.000000e+00 : f32
    %89 = vector.shape_cast %88 : vector<1x256xi1> to vector<1x256xi1>
    %90 = vector.broadcast %89 : vector<1x256xi1> to vector<2x256xi1>
    %91 = vector.broadcast %cst_38 : f32 to vector<2x256xf32>
    %92 = arith.select %90, %79, %91 : vector<2x256xi1>, vector<2x256xf32>
    %93 = arith.addf %78, %92 : vector<2x256xf32>
    %c8 = arith.constant 8 : index
    %c17_39 = arith.constant 17 : index
    %94 = vector.load %arg6[%c8, %c17_39] : memref<18x290xf32, #tpu.memory_space<vmem>>, vector<2x256xf32>
    %95 = arith.addf %93, %94 : vector<2x256xf32>
    %c10 = arith.constant 10 : index
    %c18 = arith.constant 18 : index
    %96 = vector.load %arg6[%c10, %c18] : memref<18x290xf32, #tpu.memory_space<vmem>>, vector<2x256xf32>
    %c1_i32_40 = arith.constant 1 : i32
    %97 = vector.broadcast %c1_i32_40 : i32 to vector<1x256xi32>
    %98 = arith.addi %16, %97 : vector<1x256xi32>
    %c0_i32_41 = arith.constant 0 : i32
    %99 = vector.broadcast %c0_i32_41 : i32 to vector<1x256xi32>
    %100 = arith.cmpi sge, %98, %99 : vector<1x256xi32>
    %c1_i32_42 = arith.constant 1 : i32
    %101 = vector.broadcast %c1_i32_42 : i32 to vector<1x256xi32>
    %102 = arith.addi %16, %101 : vector<1x256xi32>
    %c16_i32_43 = arith.constant 16 : i32
    %103 = vector.broadcast %c16_i32_43 : i32 to vector<1x256xi32>
    %104 = arith.cmpi slt, %102, %103 : vector<1x256xi32>
    %105 = arith.andi %100, %104 : vector<1x256xi1>
    %cst_44 = arith.constant 0.000000e+00 : f32
    %106 = vector.shape_cast %105 : vector<1x256xi1> to vector<1x256xi1>
    %107 = vector.broadcast %106 : vector<1x256xi1> to vector<2x256xi1>
    %108 = vector.broadcast %cst_44 : f32 to vector<2x256xf32>
    %109 = arith.select %107, %96, %108 : vector<2x256xi1>, vector<2x256xf32>
    %110 = arith.addf %95, %109 : vector<2x256xf32>
    %c12 = arith.constant 12 : index
    %c32 = arith.constant 32 : index
    %111 = vector.load %arg6[%c12, %c32] : memref<18x290xf32, #tpu.memory_space<vmem>>, vector<2x256xf32>
    %c-1_i32_45 = arith.constant -1 : i32
    %112 = vector.broadcast %c-1_i32_45 : i32 to vector<1x256xi32>
    %113 = arith.addi %16, %112 : vector<1x256xi32>
    %c0_i32_46 = arith.constant 0 : i32
    %114 = vector.broadcast %c0_i32_46 : i32 to vector<1x256xi32>
    %115 = arith.cmpi sge, %113, %114 : vector<1x256xi32>
    %c-1_i32_47 = arith.constant -1 : i32
    %116 = vector.broadcast %c-1_i32_47 : i32 to vector<1x256xi32>
    %117 = arith.addi %16, %116 : vector<1x256xi32>
    %c16_i32_48 = arith.constant 16 : i32
    %118 = vector.broadcast %c16_i32_48 : i32 to vector<1x256xi32>
    %119 = arith.cmpi slt, %117, %118 : vector<1x256xi32>
    %120 = arith.andi %115, %119 : vector<1x256xi1>
    %cst_49 = arith.constant 0.000000e+00 : f32
    %121 = vector.shape_cast %120 : vector<1x256xi1> to vector<1x256xi1>
    %122 = vector.broadcast %121 : vector<1x256xi1> to vector<2x256xi1>
    %123 = vector.broadcast %cst_49 : f32 to vector<2x256xf32>
    %124 = arith.select %122, %111, %123 : vector<2x256xi1>, vector<2x256xf32>
    %125 = arith.addf %110, %124 : vector<2x256xf32>
    %c14 = arith.constant 14 : index
    %c33 = arith.constant 33 : index
    %126 = vector.load %arg6[%c14, %c33] : memref<18x290xf32, #tpu.memory_space<vmem>>, vector<2x256xf32>
    %127 = arith.addf %125, %126 : vector<2x256xf32>
    %c16_50 = arith.constant 16 : index
    %c34 = arith.constant 34 : index
    %128 = vector.load %arg6[%c16_50, %c34] : memref<18x290xf32, #tpu.memory_space<vmem>>, vector<2x256xf32>
    %c1_i32_51 = arith.constant 1 : i32
    %129 = vector.broadcast %c1_i32_51 : i32 to vector<1x256xi32>
    %130 = arith.addi %16, %129 : vector<1x256xi32>
    %c0_i32_52 = arith.constant 0 : i32
    %131 = vector.broadcast %c0_i32_52 : i32 to vector<1x256xi32>
    %132 = arith.cmpi sge, %130, %131 : vector<1x256xi32>
    %c1_i32_53 = arith.constant 1 : i32
    %133 = vector.broadcast %c1_i32_53 : i32 to vector<1x256xi32>
    %134 = arith.addi %16, %133 : vector<1x256xi32>
    %c16_i32_54 = arith.constant 16 : i32
    %135 = vector.broadcast %c16_i32_54 : i32 to vector<1x256xi32>
    %136 = arith.cmpi slt, %134, %135 : vector<1x256xi32>
    %137 = arith.andi %132, %136 : vector<1x256xi1>
    %cst_55 = arith.constant 0.000000e+00 : f32
    %138 = vector.shape_cast %137 : vector<1x256xi1> to vector<1x256xi1>
    %139 = vector.broadcast %138 : vector<1x256xi1> to vector<2x256xi1>
    %140 = vector.broadcast %cst_55 : f32 to vector<2x256xf32>
    %141 = arith.select %139, %128, %140 : vector<2x256xi1>, vector<2x256xf32>
    %142 = arith.addf %127, %141 : vector<2x256xf32>
    %cst_56 = arith.constant dense<0.000000e+00> : vector<2xf32>
    %143 = vector.multi_reduction <add>, %142, %cst_56 [1] : vector<2x256xf32> to vector<2xf32>
    %144 = vector.shape_cast %143 : vector<2xf32> to vector<2x1xf32>
    %cst_57 = arith.constant 3.906250e-03 : f32
    %145 = vector.broadcast %cst_57 : f32 to vector<2x1xf32>
    %146 = arith.mulf %144, %145 : vector<2x1xf32>
    %147 = vector.broadcast %146 : vector<2x1xf32> to vector<2x256xf32>
    %148 = arith.subf %142, %147 : vector<2x256xf32>
    %149 = arith.mulf %148, %148 : vector<2x256xf32>
    %cst_58 = arith.constant dense<0.000000e+00> : vector<2xf32>
    %150 = vector.multi_reduction <add>, %149, %cst_58 [1] : vector<2x256xf32> to vector<2xf32>
    %151 = vector.shape_cast %150 : vector<2xf32> to vector<2x1xf32>
    %cst_59 = arith.constant 3.906250e-03 : f32
    %152 = vector.broadcast %cst_59 : f32 to vector<2x1xf32>
    %153 = arith.mulf %151, %152 : vector<2x1xf32>
    %cst_60 = arith.constant 9.99999974E-6 : f32
    %154 = vector.broadcast %cst_60 : f32 to vector<2x1xf32>
    %155 = arith.addf %153, %154 : vector<2x1xf32>
    %156 = math.rsqrt %155 : vector<2x1xf32>
    %157 = vector.broadcast %156 : vector<2x1xf32> to vector<2x256xf32>
    %158 = arith.mulf %148, %157 : vector<2x256xf32>
    %cst_61 = arith.constant 0.000000e+00 : f32
    %159 = vector.broadcast %cst_61 : f32 to vector<2x256xf32>
    %160 = arith.maximumf %158, %159 : vector<2x256xf32>
    %c0_62 = arith.constant 0 : index
    %c0_63 = arith.constant 0 : index
    %c0_64 = arith.constant 0 : index
    %161 = vector.load %arg4[%c0_62, %c0_63, %c0_64] : memref<2x4x2xbf16, #tpu.memory_space<vmem>>, vector<1x4x2xbf16>
    %162 = vector.shape_cast %161 : vector<1x4x2xbf16> to vector<4x2xbf16>
    %163 = arith.truncf %160 : vector<2x256xf32> to vector<2x256xbf16>
    %cst_65 = arith.constant dense<0.000000e+00> : vector<4x256xf32>
    %164 = tpu.matmul %162, %163, %cst_65 {dimension_numbers = #tpu.dot_dimension_numbers<[1], [0], [0], [1], [0, 0, 1, 1], [], []>} : vector<4x2xbf16>, vector<2x256xbf16>, vector<4x256xf32> -> vector<4x256xf32>
    %cst_66 = arith.constant dense<0.000000e+00> : vector<4xf32>
    %165 = vector.multi_reduction <add>, %164, %cst_66 [1] : vector<4x256xf32> to vector<4xf32>
    %166 = vector.shape_cast %165 : vector<4xf32> to vector<4x1xf32>
    %cst_67 = arith.constant 3.906250e-03 : f32
    %167 = vector.broadcast %cst_67 : f32 to vector<4x1xf32>
    %168 = arith.mulf %166, %167 : vector<4x1xf32>
    %169 = vector.broadcast %168 : vector<4x1xf32> to vector<4x256xf32>
    %170 = arith.subf %164, %169 : vector<4x256xf32>
    %171 = arith.mulf %170, %170 : vector<4x256xf32>
    %cst_68 = arith.constant dense<0.000000e+00> : vector<4xf32>
    %172 = vector.multi_reduction <add>, %171, %cst_68 [1] : vector<4x256xf32> to vector<4xf32>
    %173 = vector.shape_cast %172 : vector<4xf32> to vector<4x1xf32>
    %cst_69 = arith.constant 3.906250e-03 : f32
    %174 = vector.broadcast %cst_69 : f32 to vector<4x1xf32>
    %175 = arith.mulf %173, %174 : vector<4x1xf32>
    %cst_70 = arith.constant 9.99999974E-6 : f32
    %176 = vector.broadcast %cst_70 : f32 to vector<4x1xf32>
    %177 = arith.addf %175, %176 : vector<4x1xf32>
    %178 = math.rsqrt %177 : vector<4x1xf32>
    %179 = vector.broadcast %178 : vector<4x1xf32> to vector<4x256xf32>
    %180 = arith.mulf %170, %179 : vector<4x256xf32>
    %cst_71 = arith.constant 0.000000e+00 : f32
    %181 = vector.broadcast %cst_71 : f32 to vector<4x256xf32>
    %182 = arith.maximumf %180, %181 : vector<4x256xf32>
    %183 = arith.addf %20, %182 : vector<4x256xf32>
    %c1_72 = arith.constant 1 : index
    %c0_73 = arith.constant 0 : index
    %c0_74 = arith.constant 0 : index
    %184 = vector.load %arg2[%c1_72, %c0_73, %c0_74] : memref<2x2x4xbf16, #tpu.memory_space<vmem>>, vector<1x2x4xbf16>
    %185 = vector.shape_cast %184 : vector<1x2x4xbf16> to vector<2x4xbf16>
    %186 = arith.truncf %183 : vector<4x256xf32> to vector<4x256xbf16>
    %cst_75 = arith.constant dense<0.000000e+00> : vector<2x256xf32>
    %187 = tpu.matmul %185, %186, %cst_75 {dimension_numbers = #tpu.dot_dimension_numbers<[1], [0], [0], [1], [0, 0, 1, 1], [], []>} : vector<2x4xbf16>, vector<4x256xbf16>, vector<2x256xf32> -> vector<2x256xf32>
    %cst_76 = arith.constant dense<0.000000e+00> : vector<2xf32>
    %188 = vector.multi_reduction <add>, %187, %cst_76 [1] : vector<2x256xf32> to vector<2xf32>
    %189 = vector.shape_cast %188 : vector<2xf32> to vector<2x1xf32>
    %cst_77 = arith.constant 3.906250e-03 : f32
    %190 = vector.broadcast %cst_77 : f32 to vector<2x1xf32>
    %191 = arith.mulf %189, %190 : vector<2x1xf32>
    %192 = vector.broadcast %191 : vector<2x1xf32> to vector<2x256xf32>
    %193 = arith.subf %187, %192 : vector<2x256xf32>
    %194 = arith.mulf %193, %193 : vector<2x256xf32>
    %cst_78 = arith.constant dense<0.000000e+00> : vector<2xf32>
    %195 = vector.multi_reduction <add>, %194, %cst_78 [1] : vector<2x256xf32> to vector<2xf32>
    %196 = vector.shape_cast %195 : vector<2xf32> to vector<2x1xf32>
    %cst_79 = arith.constant 3.906250e-03 : f32
    %197 = vector.broadcast %cst_79 : f32 to vector<2x1xf32>
    %198 = arith.mulf %196, %197 : vector<2x1xf32>
    %cst_80 = arith.constant 9.99999974E-6 : f32
    %199 = vector.broadcast %cst_80 : f32 to vector<2x1xf32>
    %200 = arith.addf %198, %199 : vector<2x1xf32>
    %201 = math.rsqrt %200 : vector<2x1xf32>
    %202 = vector.broadcast %201 : vector<2x1xf32> to vector<2x256xf32>
    %203 = arith.mulf %193, %202 : vector<2x256xf32>
    %cst_81 = arith.constant 0.000000e+00 : f32
    %204 = vector.broadcast %cst_81 : f32 to vector<2x256xf32>
    %205 = arith.maximumf %203, %204 : vector<2x256xf32>
    %c1_82 = arith.constant 1 : index
    %c0_83 = arith.constant 0 : index
    %c0_84 = arith.constant 0 : index
    %206 = vector.load %arg3[%c1_82, %c0_83, %c0_84] : memref<2x18x2xbf16, #tpu.memory_space<vmem>>, vector<1x18x2xbf16>
    %207 = vector.shape_cast %206 : vector<1x18x2xbf16> to vector<18x2xbf16>
    %208 = arith.truncf %205 : vector<2x256xf32> to vector<2x256xbf16>
    %cst_85 = arith.constant dense<0.000000e+00> : vector<18x256xf32>
    %209 = tpu.matmul %207, %208, %cst_85 {dimension_numbers = #tpu.dot_dimension_numbers<[1], [0], [0], [1], [0, 0, 1, 1], [], []>} : vector<18x2xbf16>, vector<2x256xbf16>, vector<18x256xf32> -> vector<18x256xf32>
    %c0_86 = arith.constant 0 : index
    %c17_87 = arith.constant 17 : index
    %210 = vector.load %arg6[%c0_86, %c17_87] : memref<18x290xf32, #tpu.memory_space<vmem>>, vector<18x256xf32>
    tpu.vector_store %arg6[%c0_86, %c17_87], %209 {strides = array<i32>} : memref<18x290xf32, #tpu.memory_space<vmem>>, vector<18x256xf32>,
    %c0_88 = arith.constant 0 : index
    %c0_89 = arith.constant 0 : index
    %211 = vector.load %arg6[%c0_88, %c0_89] : memref<18x290xf32, #tpu.memory_space<vmem>>, vector<2x256xf32>
    %c-1_i32_90 = arith.constant -1 : i32
    %212 = vector.broadcast %c-1_i32_90 : i32 to vector<1x256xi32>
    %213 = arith.addi %16, %212 : vector<1x256xi32>
    %c0_i32_91 = arith.constant 0 : i32
    %214 = vector.broadcast %c0_i32_91 : i32 to vector<1x256xi32>
    %215 = arith.cmpi sge, %213, %214 : vector<1x256xi32>
    %c-1_i32_92 = arith.constant -1 : i32
    %216 = vector.broadcast %c-1_i32_92 : i32 to vector<1x256xi32>
    %217 = arith.addi %16, %216 : vector<1x256xi32>
    %c16_i32_93 = arith.constant 16 : i32
    %218 = vector.broadcast %c16_i32_93 : i32 to vector<1x256xi32>
    %219 = arith.cmpi slt, %217, %218 : vector<1x256xi32>
    %220 = arith.andi %215, %219 : vector<1x256xi1>
    %cst_94 = arith.constant 0.000000e+00 : f32
    %221 = vector.shape_cast %220 : vector<1x256xi1> to vector<1x256xi1>
    %222 = vector.broadcast %221 : vector<1x256xi1> to vector<2x256xi1>
    %223 = vector.broadcast %cst_94 : f32 to vector<2x256xf32>
    %224 = arith.select %222, %211, %223 : vector<2x256xi1>, vector<2x256xf32>
    %c2_95 = arith.constant 2 : index
    %c1_96 = arith.constant 1 : index
    %225 = vector.load %arg6[%c2_95, %c1_96] : memref<18x290xf32, #tpu.memory_space<vmem>>, vector<2x256xf32>
    %226 = arith.addf %224, %225 : vector<2x256xf32>
    %c4_97 = arith.constant 4 : index
    %c2_98 = arith.constant 2 : index
    %227 = vector.load %arg6[%c4_97, %c2_98] : memref<18x290xf32, #tpu.memory_space<vmem>>, vector<2x256xf32>
    %c1_i32_99 = arith.constant 1 : i32
    %228 = vector.broadcast %c1_i32_99 : i32 to vector<1x256xi32>
    %229 = arith.addi %16, %228 : vector<1x256xi32>
    %c0_i32_100 = arith.constant 0 : i32
    %230 = vector.broadcast %c0_i32_100 : i32 to vector<1x256xi32>
    %231 = arith.cmpi sge, %229, %230 : vector<1x256xi32>
    %c1_i32_101 = arith.constant 1 : i32
    %232 = vector.broadcast %c1_i32_101 : i32 to vector<1x256xi32>
    %233 = arith.addi %16, %232 : vector<1x256xi32>
    %c16_i32_102 = arith.constant 16 : i32
    %234 = vector.broadcast %c16_i32_102 : i32 to vector<1x256xi32>
    %235 = arith.cmpi slt, %233, %234 : vector<1x256xi32>
    %236 = arith.andi %231, %235 : vector<1x256xi1>
    %cst_103 = arith.constant 0.000000e+00 : f32
    %237 = vector.shape_cast %236 : vector<1x256xi1> to vector<1x256xi1>
    %238 = vector.broadcast %237 : vector<1x256xi1> to vector<2x256xi1>
    %239 = vector.broadcast %cst_103 : f32 to vector<2x256xf32>
    %240 = arith.select %238, %227, %239 : vector<2x256xi1>, vector<2x256xf32>
    %241 = arith.addf %226, %240 : vector<2x256xf32>
    %c6_104 = arith.constant 6 : index
    %c16_105 = arith.constant 16 : index
    %242 = vector.load %arg6[%c6_104, %c16_105] : memref<18x290xf32, #tpu.memory_space<vmem>>, vector<2x256xf32>
    %c-1_i32_106 = arith.constant -1 : i32
    %243 = vector.broadcast %c-1_i32_106 : i32 to vector<1x256xi32>
    %244 = arith.addi %16, %243 : vector<1x256xi32>
    %c0_i32_107 = arith.constant 0 : i32
    %245 = vector.broadcast %c0_i32_107 : i32 to vector<1x256xi32>
    %246 = arith.cmpi sge, %244, %245 : vector<1x256xi32>
    %c-1_i32_108 = arith.constant -1 : i32
    %247 = vector.broadcast %c-1_i32_108 : i32 to vector<1x256xi32>
    %248 = arith.addi %16, %247 : vector<1x256xi32>
    %c16_i32_109 = arith.constant 16 : i32
    %249 = vector.broadcast %c16_i32_109 : i32 to vector<1x256xi32>
    %250 = arith.cmpi slt, %248, %249 : vector<1x256xi32>
    %251 = arith.andi %246, %250 : vector<1x256xi1>
    %cst_110 = arith.constant 0.000000e+00 : f32
    %252 = vector.shape_cast %251 : vector<1x256xi1> to vector<1x256xi1>
    %253 = vector.broadcast %252 : vector<1x256xi1> to vector<2x256xi1>
    %254 = vector.broadcast %cst_110 : f32 to vector<2x256xf32>
    %255 = arith.select %253, %242, %254 : vector<2x256xi1>, vector<2x256xf32>
    %256 = arith.addf %241, %255 : vector<2x256xf32>
    %c8_111 = arith.constant 8 : index
    %c17_112 = arith.constant 17 : index
    %257 = vector.load %arg6[%c8_111, %c17_112] : memref<18x290xf32, #tpu.memory_space<vmem>>, vector<2x256xf32>
    %258 = arith.addf %256, %257 : vector<2x256xf32>
    %c10_113 = arith.constant 10 : index
    %c18_114 = arith.constant 18 : index
    %259 = vector.load %arg6[%c10_113, %c18_114] : memref<18x290xf32, #tpu.memory_space<vmem>>, vector<2x256xf32>
    %c1_i32_115 = arith.constant 1 : i32
    %260 = vector.broadcast %c1_i32_115 : i32 to vector<1x256xi32>
    %261 = arith.addi %16, %260 : vector<1x256xi32>
    %c0_i32_116 = arith.constant 0 : i32
    %262 = vector.broadcast %c0_i32_116 : i32 to vector<1x256xi32>
    %263 = arith.cmpi sge, %261, %262 : vector<1x256xi32>
    %c1_i32_117 = arith.constant 1 : i32
    %264 = vector.broadcast %c1_i32_117 : i32 to vector<1x256xi32>
    %265 = arith.addi %16, %264 : vector<1x256xi32>
    %c16_i32_118 = arith.constant 16 : i32
    %266 = vector.broadcast %c16_i32_118 : i32 to vector<1x256xi32>
    %267 = arith.cmpi slt, %265, %266 : vector<1x256xi32>
    %268 = arith.andi %263, %267 : vector<1x256xi1>
    %cst_119 = arith.constant 0.000000e+00 : f32
    %269 = vector.shape_cast %268 : vector<1x256xi1> to vector<1x256xi1>
    %270 = vector.broadcast %269 : vector<1x256xi1> to vector<2x256xi1>
    %271 = vector.broadcast %cst_119 : f32 to vector<2x256xf32>
    %272 = arith.select %270, %259, %271 : vector<2x256xi1>, vector<2x256xf32>
    %273 = arith.addf %258, %272 : vector<2x256xf32>
    %c12_120 = arith.constant 12 : index
    %c32_121 = arith.constant 32 : index
    %274 = vector.load %arg6[%c12_120, %c32_121] : memref<18x290xf32, #tpu.memory_space<vmem>>, vector<2x256xf32>
    %c-1_i32_122 = arith.constant -1 : i32
    %275 = vector.broadcast %c-1_i32_122 : i32 to vector<1x256xi32>
    %276 = arith.addi %16, %275 : vector<1x256xi32>
    %c0_i32_123 = arith.constant 0 : i32
    %277 = vector.broadcast %c0_i32_123 : i32 to vector<1x256xi32>
    %278 = arith.cmpi sge, %276, %277 : vector<1x256xi32>
    %c-1_i32_124 = arith.constant -1 : i32
    %279 = vector.broadcast %c-1_i32_124 : i32 to vector<1x256xi32>
    %280 = arith.addi %16, %279 : vector<1x256xi32>
    %c16_i32_125 = arith.constant 16 : i32
    %281 = vector.broadcast %c16_i32_125 : i32 to vector<1x256xi32>
    %282 = arith.cmpi slt, %280, %281 : vector<1x256xi32>
    %283 = arith.andi %278, %282 : vector<1x256xi1>
    %cst_126 = arith.constant 0.000000e+00 : f32
    %284 = vector.shape_cast %283 : vector<1x256xi1> to vector<1x256xi1>
    %285 = vector.broadcast %284 : vector<1x256xi1> to vector<2x256xi1>
    %286 = vector.broadcast %cst_126 : f32 to vector<2x256xf32>
    %287 = arith.select %285, %274, %286 : vector<2x256xi1>, vector<2x256xf32>
    %288 = arith.addf %273, %287 : vector<2x256xf32>
    %c14_127 = arith.constant 14 : index
    %c33_128 = arith.constant 33 : index
    %289 = vector.load %arg6[%c14_127, %c33_128] : memref<18x290xf32, #tpu.memory_space<vmem>>, vector<2x256xf32>
    %290 = arith.addf %288, %289 : vector<2x256xf32>
    %c16_129 = arith.constant 16 : index
    %c34_130 = arith.constant 34 : index
    %291 = vector.load %arg6[%c16_129, %c34_130] : memref<18x290xf32, #tpu.memory_space<vmem>>, vector<2x256xf32>
    %c1_i32_131 = arith.constant 1 : i32
    %292 = vector.broadcast %c1_i32_131 : i32 to vector<1x256xi32>
    %293 = arith.addi %16, %292 : vector<1x256xi32>
    %c0_i32_132 = arith.constant 0 : i32
    %294 = vector.broadcast %c0_i32_132 : i32 to vector<1x256xi32>
    %295 = arith.cmpi sge, %293, %294 : vector<1x256xi32>
    %c1_i32_133 = arith.constant 1 : i32
    %296 = vector.broadcast %c1_i32_133 : i32 to vector<1x256xi32>
    %297 = arith.addi %16, %296 : vector<1x256xi32>
    %c16_i32_134 = arith.constant 16 : i32
    %298 = vector.broadcast %c16_i32_134 : i32 to vector<1x256xi32>
    %299 = arith.cmpi slt, %297, %298 : vector<1x256xi32>
    %300 = arith.andi %295, %299 : vector<1x256xi1>
    %cst_135 = arith.constant 0.000000e+00 : f32
    %301 = vector.shape_cast %300 : vector<1x256xi1> to vector<1x256xi1>
    %302 = vector.broadcast %301 : vector<1x256xi1> to vector<2x256xi1>
    %303 = vector.broadcast %cst_135 : f32 to vector<2x256xf32>
    %304 = arith.select %302, %291, %303 : vector<2x256xi1>, vector<2x256xf32>
    %305 = arith.addf %290, %304 : vector<2x256xf32>
    %cst_136 = arith.constant dense<0.000000e+00> : vector<2xf32>
    %306 = vector.multi_reduction <add>, %305, %cst_136 [1] : vector<2x256xf32> to vector<2xf32>
    %307 = vector.shape_cast %306 : vector<2xf32> to vector<2x1xf32>
    %cst_137 = arith.constant 3.906250e-03 : f32
    %308 = vector.broadcast %cst_137 : f32 to vector<2x1xf32>
    %309 = arith.mulf %307, %308 : vector<2x1xf32>
    %310 = vector.broadcast %309 : vector<2x1xf32> to vector<2x256xf32>
    %311 = arith.subf %305, %310 : vector<2x256xf32>
    %312 = arith.mulf %311, %311 : vector<2x256xf32>
    %cst_138 = arith.constant dense<0.000000e+00> : vector<2xf32>
    %313 = vector.multi_reduction <add>, %312, %cst_138 [1] : vector<2x256xf32> to vector<2xf32>
    %314 = vector.shape_cast %313 : vector<2xf32> to vector<2x1xf32>
    %cst_139 = arith.constant 3.906250e-03 : f32
    %315 = vector.broadcast %cst_139 : f32 to vector<2x1xf32>
    %316 = arith.mulf %314, %315 : vector<2x1xf32>
    %cst_140 = arith.constant 9.99999974E-6 : f32
    %317 = vector.broadcast %cst_140 : f32 to vector<2x1xf32>
    %318 = arith.addf %316, %317 : vector<2x1xf32>
    %319 = math.rsqrt %318 : vector<2x1xf32>
    %320 = vector.broadcast %319 : vector<2x1xf32> to vector<2x256xf32>
    %321 = arith.mulf %311, %320 : vector<2x256xf32>
    %cst_141 = arith.constant 0.000000e+00 : f32
    %322 = vector.broadcast %cst_141 : f32 to vector<2x256xf32>
    %323 = arith.maximumf %321, %322 : vector<2x256xf32>
    %c1_142 = arith.constant 1 : index
    %c0_143 = arith.constant 0 : index
    %c0_144 = arith.constant 0 : index
    %324 = vector.load %arg4[%c1_142, %c0_143, %c0_144] : memref<2x4x2xbf16, #tpu.memory_space<vmem>>, vector<1x4x2xbf16>
    %325 = vector.shape_cast %324 : vector<1x4x2xbf16> to vector<4x2xbf16>
    %326 = arith.truncf %323 : vector<2x256xf32> to vector<2x256xbf16>
    %cst_145 = arith.constant dense<0.000000e+00> : vector<4x256xf32>
    %327 = tpu.matmul %325, %326, %cst_145 {dimension_numbers = #tpu.dot_dimension_numbers<[1], [0], [0], [1], [0, 0, 1, 1], [], []>} : vector<4x2xbf16>, vector<2x256xbf16>, vector<4x256xf32> -> vector<4x256xf32>
    %cst_146 = arith.constant dense<0.000000e+00> : vector<4xf32>
    %328 = vector.multi_reduction <add>, %327, %cst_146 [1] : vector<4x256xf32> to vector<4xf32>
    %329 = vector.shape_cast %328 : vector<4xf32> to vector<4x1xf32>
    %cst_147 = arith.constant 3.906250e-03 : f32
    %330 = vector.broadcast %cst_147 : f32 to vector<4x1xf32>
    %331 = arith.mulf %329, %330 : vector<4x1xf32>
    %332 = vector.broadcast %331 : vector<4x1xf32> to vector<4x256xf32>
    %333 = arith.subf %327, %332 : vector<4x256xf32>
    %334 = arith.mulf %333, %333 : vector<4x256xf32>
    %cst_148 = arith.constant dense<0.000000e+00> : vector<4xf32>
    %335 = vector.multi_reduction <add>, %334, %cst_148 [1] : vector<4x256xf32> to vector<4xf32>
    %336 = vector.shape_cast %335 : vector<4xf32> to vector<4x1xf32>
    %cst_149 = arith.constant 3.906250e-03 : f32
    %337 = vector.broadcast %cst_149 : f32 to vector<4x1xf32>
    %338 = arith.mulf %336, %337 : vector<4x1xf32>
    %cst_150 = arith.constant 9.99999974E-6 : f32
    %339 = vector.broadcast %cst_150 : f32 to vector<4x1xf32>
    %340 = arith.addf %338, %339 : vector<4x1xf32>
    %341 = math.rsqrt %340 : vector<4x1xf32>
    %342 = vector.broadcast %341 : vector<4x1xf32> to vector<4x256xf32>
    %343 = arith.mulf %333, %342 : vector<4x256xf32>
    %cst_151 = arith.constant 0.000000e+00 : f32
    %344 = vector.broadcast %cst_151 : f32 to vector<4x256xf32>
    %345 = arith.maximumf %343, %344 : vector<4x256xf32>
    %346 = arith.addf %183, %345 : vector<4x256xf32>
    %c0_152 = arith.constant 0 : index
    %c0_153 = arith.constant 0 : index
    %c0_154 = arith.constant 0 : index
    %347 = vector.load %arg5[%c0_152, %c0_153, %c0_154] : memref<1x4x256xf32, #tpu.memory_space<vmem>>, vector<1x4x256xf32>
    %348 = vector.shape_cast %347 : vector<1x4x256xf32> to vector<4x256xf32>
    %349 = vector.shape_cast %346 : vector<4x256xf32> to vector<1x4x256xf32>
    tpu.vector_store %arg5[%c0_152, %c0_153, %c0_154], %349 {strides = array<i32>} : memref<1x4x256xf32, #tpu.memory_space<vmem>>, vector<1x4x256xf32>,
    return
  }
  func.func @transform_0(%arg0: i32) -> (i32, i32, i32) {
    %c0_i32 = arith.constant 0 : i32
    %c0_i32_0 = arith.constant 0 : i32
    %c0_i32_1 = arith.constant 0 : i32
    return %arg0, %c0_i32, %c0_i32_0 : i32, i32, i32
  }
  func.func @transform_1(%arg0: i32) -> (i32, i32, i32) {
    %c0_i32 = arith.constant 0 : i32
    %c0_i32_0 = arith.constant 0 : i32
    %c0_i32_1 = arith.constant 0 : i32
    %c0_i32_2 = arith.constant 0 : i32
    return %c0_i32, %c0_i32_0, %c0_i32_1 : i32, i32, i32
  }
  func.func @transform_2(%arg0: i32) -> (i32, i32, i32) {
    %c0_i32 = arith.constant 0 : i32
    %c0_i32_0 = arith.constant 0 : i32
    %c0_i32_1 = arith.constant 0 : i32
    %c0_i32_2 = arith.constant 0 : i32
    return %c0_i32, %c0_i32_0, %c0_i32_1 : i32, i32, i32
  }
  func.func @transform_3(%arg0: i32) -> (i32, i32, i32) {
    %c0_i32 = arith.constant 0 : i32
    %c0_i32_0 = arith.constant 0 : i32
    %c0_i32_1 = arith.constant 0 : i32
    %c0_i32_2 = arith.constant 0 : i32
    return %c0_i32, %c0_i32_0, %c0_i32_1 : i32, i32, i32
  }
  func.func @transform_4(%arg0: i32) -> (i32, i32, i32) {
    %c0_i32 = arith.constant 0 : i32
    %c0_i32_0 = arith.constant 0 : i32
    %c0_i32_1 = arith.constant 0 : i32
    return %arg0, %c0_i32, %c0_i32_0 : i32, i32, i32
  }
}

</mosaic_0001>

<llo_original>
// kernel: hourglass_forward.8
$region0: #{hourglass_forward.8}
  #allocation0 [shape = 'u32[]', space=smem, size = 0x4, offset = 0x4, fixed_abs, tag = 'smem constant byte address 0x4 - core index']
  #allocation1 [shape = 'u32[144,128]{1,0:T(1,128)}', space=vmem, size = 0x12000, scoped, tag = 'internal scratch']
  #allocation2 [shape = 'f32[18,26]{1,0:T(8,128)}', space=vmem, size = 0x3000, scoped, tag = 'scratch operand']
  %s0 = inlined_call_operand.vmem [shape: f32[2,4,16], index: 0, kind: input, shape index: {}]
  %s1 = inlined_call_operand.vmem [shape: bf16[2,2,4], index: 1, kind: input, shape index: {}]
  %s2 = inlined_call_operand.vmem [shape: bf16[2,18,2], index: 2, kind: input, shape index: {}]
  %s3 = inlined_call_operand.vmem [shape: bf16[2,4,2], index: 3, kind: input, shape index: {}]
  %s4 = inlined_call_operand.vmem [shape: f32[2,4,16], index: 4, kind: output, shape index: {}]
  %s5 = sld [smem:[#allocation0]]
  $region49: #{hourglass_forward.8} parent=0
    _
  %s7 = ssub.s32 1, %s5
  %s8 = scalar_select 0, %s7, %s5
  loop: start=0, step=1, limit=4
  $region2: #{hourglass_forward.8} parent=0 // loop_pre_header
    _
  $region3: #{hourglass_forward.8} parent=0 // loop_header
    %s10 = sphi 0, %s14
    %p11 = scmp.ge.s32.totalorder %s10, 4
    %s20 = sphi 0, %s22
    %s23 = sphi 0, %s20
    %s24 = sphi 0, %s23
    %s40 = sphi 0, %s24
    %s44 = sphi 0, %s44
    %s46 = sphi 0, %s44
    %s47 = sphi 0, %s46
    %s61 = sphi 0, %s47
    %s65 = sphi 0, %s65
    %s67 = sphi 0, %s65
    %s68 = sphi 0, %s67
    %s82 = sphi 0, %s68
    %s86 = sphi 0, %s86
    %s88 = sphi 0, %s86
    %s89 = sphi 0, %s88
    %s103 = sphi 0, %s89
    %s109 = sphi 0, %s111
    %s112 = sphi 0, %s109
    %s113 = sphi 0, %s112
    %s129 = sphi 0, %s113
  $region4: #{hourglass_forward.8} parent=0 // loop_header_branch
    %13 = sbr.rel (%p11) target = $region8
  $region5: #{hourglass_forward.8} parent=0 // loop_body
    %s15 = ssub.s32 %s10, 1
    %s16 = ssub.s32 %s10, 2
    %s17 = sadd.s32 %s10, 1
    %s18 = ssub.s32 %s10, %s17
    %p19 = scmp.eq.s32.totalorder %s18, 0
    %s21 = sadd.s32 %s20, 1
    %s22 = scalar_select %p19, %s20, %s21
    %p25 = pneg %p19
    %p26 = scmp.eq.s32.totalorder %s10, 1
    %p27 = por %p25, %p26
    %p28 = scmp.ne.s32.totalorder %s20, %s23
    %p29 = scmp.eq.s32.totalorder %s10, 0
    %p30 = por %p28, %p29
    %p31 = scmp.ne.s32.totalorder %s20, %s23
    %p32 = scmp.eq.s32.totalorder %s15, 1
    %p33 = por %p31, %p32
    %p34 = scmp.ne.s32.totalorder %s23, %s24
    %p35 = scmp.eq.s32.totalorder %s15, 0
    %p36 = por %p34, %p35
    %p37 = scmp.ne.s32.totalorder %s23, %s24
    %p38 = scmp.eq.s32.totalorder %s16, 1
    %p39 = por %p37, %p38
    %p41 = scmp.ne.s32.totalorder %s24, %s40
    %p42 = scmp.eq.s32.totalorder %s16, 0
    %p43 = por %p41, %p42
    %s45 = sadd.s32 %s44, 1
    %p48 = scmp.eq.s32.totalorder %s10, 1
    %p49 = scmp.ne.s32.totalorder %s44, %s46
    %p50 = scmp.eq.s32.totalorder %s10, 0
    %p51 = por %p49, %p50
    %p52 = scmp.ne.s32.totalorder %s44, %s46
    %p53 = scmp.eq.s32.totalorder %s15, 1
    %p54 = por %p52, %p53
    %p55 = scmp.ne.s32.totalorder %s46, %s47
    %p56 = scmp.eq.s32.totalorder %s15, 0
    %p57 = por %p55, %p56
    %p58 = scmp.ne.s32.totalorder %s46, %s47
    %p59 = scmp.eq.s32.totalorder %s16, 1
    %p60 = por %p58, %p59
    %p62 = scmp.ne.s32.totalorder %s47, %s61
    %p63 = scmp.eq.s32.totalorder %s16, 0
    %p64 = por %p62, %p63
    %s66 = sadd.s32 %s65, 1
    %p69 = scmp.eq.s32.totalorder %s10, 1
    %p70 = scmp.ne.s32.totalorder %s65, %s67
    %p71 = scmp.eq.s32.totalorder %s10, 0
    %p72 = por %p70, %p71
    %p73 = scmp.ne.s32.totalorder %s65, %s67
    %p74 = scmp.eq.s32.totalorder %s15, 1
    %p75 = por %p73, %p74
    %p76 = scmp.ne.s32.totalorder %s67, %s68
    %p77 = scmp.eq.s32.totalorder %s15, 0
    %p78 = por %p76, %p77
    %p79 = scmp.ne.s32.totalorder %s67, %s68
    %p80 = scmp.eq.s32.totalorder %s16, 1
    %p81 = por %p79, %p80
    %p83 = scmp.ne.s32.totalorder %s68, %s82
    %p84 = scmp.eq.s32.totalorder %s16, 0
    %p85 = por %p83, %p84
    %s87 = sadd.s32 %s86, 1
    %p90 = scmp.eq.s32.totalorder %s10, 1
    %p91 = scmp.ne.s32.totalorder %s86, %s88
    %p92 = scmp.eq.s32.totalorder %s10, 0
    %p93 = por %p91, %p92
    %p94 = scmp.ne.s32.totalorder %s86, %s88
    %p95 = scmp.eq.s32.totalorder %s15, 1
    %p96 = por %p94, %p95
    %p97 = scmp.ne.s32.totalorder %s88, %s89
    %p98 = scmp.eq.s32.totalorder %s15, 0
    %p99 = por %p97, %p98
    %p100 = scmp.ne.s32.totalorder %s88, %s89
    %p101 = scmp.eq.s32.totalorder %s16, 1
    %p102 = por %p100, %p101
    %p104 = scmp.ne.s32.totalorder %s89, %s103
    %p105 = scmp.eq.s32.totalorder %s16, 0
    %p106 = por %p104, %p105
    %s107 = ssub.s32 %s10, %s17
    %p108 = scmp.eq.s32.totalorder %s107, 0
    %s110 = sadd.s32 %s109, 1
    %s111 = scalar_select %p108, %s109, %s110
    %p114 = pneg %p108
    %p115 = scmp.eq.s32.totalorder %s10, 1
    %p116 = por %p114, %p115
    %p117 = scmp.ne.s32.totalorder %s109, %s112
    %p118 = scmp.eq.s32.totalorder %s10, 0
    %p119 = por %p117, %p118
    %p120 = scmp.ne.s32.totalorder %s109, %s112
    %p121 = scmp.eq.s32.totalorder %s15, 1
    %p122 = por %p120, %p121
    %p123 = scmp.ne.s32.totalorder %s112, %s113
    %p124 = scmp.eq.s32.totalorder %s15, 0
    %p125 = por %p123, %p124
    %p126 = scmp.ne.s32.totalorder %s112, %s113
    %p127 = scmp.eq.s32.totalorder %s16, 1
    %p128 = por %p126, %p127
    %p130 = scmp.ne.s32.totalorder %s113, %s129
    %p131 = scmp.eq.s32.totalorder %s16, 0
    %p132 = por %p130, %p131
    %p133 = scmp.le.s32.totalorder 1, %s10
    %p134 = scmp.lt.s32.totalorder %s10, 3
    %p135 = pnand %p133, %p134
    %p136 = pneg %p135
    // Predicated region
    $region9: #{hourglass_forward.8} parent=5 // pred_check
      _
    $region10: #{hourglass_forward.8} parent=5 // pred_check_branch
      %138 = sbr.rel (%p135) target = $region12
    $region11: #{hourglass_forward.8} parent=5 // pred_region
      %s139 = ssub.s32 %s10, 1
      // Predicated region
      $region13: #{hourglass_forward.8} parent=11 // pred_check
        %p140 = pneg %p57
      $region14: #{hourglass_forward.8} parent=11 // pred_check_branch
        %142 = sbr.rel (%p140) target = $region16
      $region15: #{hourglass_forward.8} parent=11 // pred_region
        _
      $region16: #{hourglass_forward.8} parent=11 // pred_fallthru
        _
      // Predicated region
      $region17: #{hourglass_forward.8} parent=11 // pred_check
        %p143 = pneg %p78
      $region18: #{hourglass_forward.8} parent=11 // pred_check_branch
        %145 = sbr.rel (%p143) target = $region20
      $region19: #{hourglass_forward.8} parent=11 // pred_region
        _
      $region20: #{hourglass_forward.8} parent=11 // pred_fallthru
        _
      // Predicated region
      $region21: #{hourglass_forward.8} parent=11 // pred_check
        %p146 = pneg %p99
      $region22: #{hourglass_forward.8} parent=11 // pred_check_branch
        %148 = sbr.rel (%p146) target = $region24
      $region23: #{hourglass_forward.8} parent=11 // pred_region
        _
      $region24: #{hourglass_forward.8} parent=11 // pred_fallthru
        _
    $region12: #{hourglass_forward.8} parent=5 // pred_fallthru
      _
    %p149 = scmp.lt.s32.totalorder %s10, 2
    // Predicated region
    $region25: #{hourglass_forward.8} parent=5 // pred_check
      %p150 = pneg %p149
    $region26: #{hourglass_forward.8} parent=5 // pred_check_branch
      %152 = sbr.rel (%p150) target = $region28
    $region27: #{hourglass_forward.8} parent=5 // pred_region
      // Predicated region
      $region29: #{hourglass_forward.8} parent=27 // pred_check
        %p153 = pneg %p30
      $region30: #{hourglass_forward.8} parent=27 // pred_check_branch
        %155 = sbr.rel (%p153) target = $region32
      $region31: #{hourglass_forward.8} parent=27 // pred_region
        %p156 = scmp.lt.s32.totalorder %s10, 1
        %s157 = scalar_select %p156, %s10, 1
        %s158 = smul.addr %s157, 4
        %s159 = scalar_lea.vmem %s0, %s158
      $region32: #{hourglass_forward.8} parent=27 // pred_fallthru
        _
    $region28: #{hourglass_forward.8} parent=5 // pred_fallthru
      _
    %p160 = scmp.le.s32.totalorder 1, %s10
    %p161 = scmp.lt.s32.totalorder %s10, 3
    %p162 = pnand %p160, %p161
    %p163 = pneg %p162
    // Predicated region
    $region33: #{hourglass_forward.8} parent=5 // pred_check
      _
    $region34: #{hourglass_forward.8} parent=5 // pred_check_branch
      %165 = sbr.rel (%p162) target = $region36
    $region35: #{hourglass_forward.8} parent=5 // pred_region
      %s166 = ssub.s32 %s10, 1
      %p167 = scmp.lt.s32.totalorder %s15, 1
      %s168 = scalar_select %p167, %s15, 1
      %s169 = smul.addr %s168, 4
      %s170 = scalar_lea.vmem %s0, %s169
      %p171 = pneg %p36
      %p172 = pneg %p33
      %p173 = pneg %p57
      %p174 = pneg %p54
      %p175 = pneg %p78
      %p176 = pneg %p75
      %p177 = pneg %p99
      %p178 = pneg %p96
      %p179 = pneg %p125
      %p180 = pneg %p122
      %p181 = scmp.lt.s32.totalorder %s15, 1
      %s182 = scalar_select %p181, %s15, 1
      %s183 = smul.addr %s182, 4
      %s184 = scalar_lea.vmem %s4, %s183
      %p185 = scmp.lt.s32.totalorder %s15, 1
      %s186 = scalar_select %p185, %s15, 1
      %s187 = smul.addr %s186, 4
      %s188 = scalar_lea.vmem %s0, %s187
      %p189 = scmp.lt.s32.totalorder %s15, 1
      %s190 = scalar_select %p189, %s15, 1
      %s191 = smul.addr %s190, 4
      %s192 = scalar_lea.vmem %s4, %s191
      %v194 = vlaneseq
      %v195 = vand.u32 %v194, 127
      %vm196 = vcmp.lt.s32.totalorder %v195, 0
      %v197 = vsub.s32 0, %v195
      %v198 = vsel %vm196, %v197, %v195
      %v199 = vshrl.u32 %v198, 2
      %v200 = vand.u32 %v198, 3
      %v201 = vsub.s32 0, %v200
      %v202 = vsel %vm196, %v201, %v200
      %vm203 = vcmp.ne.s32.totalorder %v202, 0
      %vm204 = vcmp.lt.s32.totalorder %v202, 0
      %vm205 = vmand %vm204, %vm203
      %v206 = vadd.s32 %v202, 4
      %v207 = vsel %vm205, %v206, %v202
      %vm208 = vcmask 211968
      %209 = vst.msk [vmem:[#allocation2] sm:$0xff] %vm208, 0.0
      %210 = vst.msk [vmem:[#allocation2 + $0x8] sm:$0xff] %vm208, 0.0
      %vm211 = vcmask 205824
      %212 = vst.msk [vmem:[#allocation2 + $0x10] sm:$0x3] %vm211, 0.0
      %v213 = vld [vmem:[%s188] sm:$0xf]
      %v214 = vld [vmem:[%s1] sm:$0x1]
      %v215 = vpack.c.bf16 %v213, %v213
      %vm216 = vcmask 31744
      %v218 = vsel %vm216, %v214, 0
      %vm220 = vcmask 1041408
      %v222 = vsel %vm220, %v215, 0
      %224 = vmatprep.subr.bf16.mxu0 0
      %225 = vmatpush1.bf16.msra.mxu0 0
      %226 = vmatprep.subr.bf16.mxu0 0
      %227 = vmatpush1.bf16.msra.mxu0 0
      %228 = vmatprep.subr.bf16.mxu0 0
      %229 = vmatpush1.bf16.msra.mxu0 0
      %230 = vmatprep.subr.bf16.mxu0 0
      %231 = vmatpush1.bf16.msra.mxu0 0
      %232 = vmatprep.subr.bf16.mxu0 0
      %233 = vmatpush1.bf16.msra.mxu0 0
      %234 = vmatprep.subr.bf16.mxu0 0
      %235 = vmatpush1.bf16.msra.mxu0 0
      %236 = vmatprep.subr.bf16.mxu0 0
      %237 = vmatpush1.bf16.msra.mxu0 0
      %238 = vmatprep.subr.bf16.mxu0 0
      %239 = vmatpush1.bf16.msra.mxu0 %v222
      %240 = vmatprep.subr.bf16.mxu0 0
      %241 = vmatpush2.bf16.msra.mxu0 0
      %242 = vmatprep.subr.bf16.mxu0 0
      %243 = vmatpush2.bf16.msra.mxu0 0
      %244 = vmatprep.subr.bf16.mxu0 0
      %245 = vmatpush2.bf16.msra.mxu0 0
      %246 = vmatprep.subr.bf16.mxu0 0
      %247 = vmatpush2.bf16.msra.mxu0 0
      %248 = vmatprep.subr.bf16.mxu0 0
      %249 = vmatpush2.bf16.msra.mxu0 0
      %250 = vmatprep.subr.bf16.mxu0 0
      %251 = vmatpush2.bf16.msra.mxu0 0
      %252 = vmatprep.subr.bf16.mxu0 0
      %253 = vmatpush2.bf16.msra.mxu0 0
      %254 = vmatprep.subr.bf16.mxu0 0
      %255 = vmatpush2.bf16.msra.mxu0 0
      %256 = vmatprep.mubr.bf16.mxu0 0
      %257 = vmatmul.mubr.bf16.gmra.mxu0 %v218
      %v258 = vpop.f32.mrf.mxu0
      %v259 = vadd.f32 0.0, %v258
      %v260 = vpop.f32.mrf.mxu0
      %v261 = vpop.f32.mrf.mxu0
      %v262 = vpop.f32.mrf.mxu0
      %263 = vdwg.mxu0
      %vm264 = vcmask 123904
      %v265 = vsel %vm264, %v259, 0.0
      %266 = vadd.xlane.f32.xlu0 %v265
      %v267 = vpop.xlane.xlu0 %266
      %v268 = vmul.f32 %v267, 0.0625
      %v269 = vsub.f32 %v259, %v268
      %v270 = vmul.f32 %v269, %v269
      %v271 = vsel %vm264, %v270, 0.0
      %272 = vadd.xlane.f32.xlu0 %v271
      %v273 = vpop.xlane.xlu0 %272
      %v274 = vmul.f32 %v273, 0.0625
      %v275 = vadd.f32 %v274, 1e-05
      %v276 = vrsqrt.pop %v275
      %v277 = vmul.f32 %v269, %v276
      %v278 = vmax.f32 %v277, 0.0
      %v279 = vld [vmem:[%s2] sm:$0xf]
      %v280 = vld [vmem:[%s2 + $0x4] sm:$0xf]
      %v281 = vld [vmem:[%s2 + $0x8] sm:$0x1]
      %v282 = vpack.c.bf16 %v278, %v278
      %v286 = vunpack.c.l.b16 %v279
      %v287 = vunpack.c.l.b16 %v280
      %v288 = vunpack.c.l.b16 %v281
      %v289 = vpack.c.b16 %v287, %v286
      %v290 = vpack.c.b16 %v288, %v288
      %vm291 = vcmask 15360
      %v293 = vsel %vm291, %v289, 0
      %v296 = vsel %vm291, %v290, 0
      %vm298 = vcmask 1040384
      %v300 = vsel %vm298, %v282, 0
      %302 = vmatprep.subr.bf16.mxu0 0
      %303 = vmatpush1.bf16.msra.mxu0 0
      %304 = vmatprep.subr.bf16.mxu0 0
      %305 = vmatpush1.bf16.msra.mxu0 0
      %306 = vmatprep.subr.bf16.mxu0 0
      %307 = vmatpush1.bf16.msra.mxu0 0
      %308 = vmatprep.subr.bf16.mxu0 0
      %309 = vmatpush1.bf16.msra.mxu0 0
      %310 = vmatprep.subr.bf16.mxu0 0
      %311 = vmatpush1.bf16.msra.mxu0 0
      %312 = vmatprep.subr.bf16.mxu0 0
      %313 = vmatpush1.bf16.msra.mxu0 0
      %314 = vmatprep.subr.bf16.mxu0 0
      %315 = vmatpush1.bf16.msra.mxu0 0
      %316 = vmatprep.subr.bf16.mxu0 0
      %317 = vmatpush1.bf16.msra.mxu0 %v300
      %318 = vmatprep.subr.bf16.mxu0 0
      %319 = vmatpush2.bf16.msra.mxu0 0
      %320 = vmatprep.subr.bf16.mxu0 0
      %321 = vmatpush2.bf16.msra.mxu0 0
      %322 = vmatprep.subr.bf16.mxu0 0
      %323 = vmatpush2.bf16.msra.mxu0 0
      %324 = vmatprep.subr.bf16.mxu0 0
      %325 = vmatpush2.bf16.msra.mxu0 0
      %326 = vmatprep.subr.bf16.mxu0 0
      %327 = vmatpush2.bf16.msra.mxu0 0
      %328 = vmatprep.subr.bf16.mxu0 0
      %329 = vmatpush2.bf16.msra.mxu0 0
      %330 = vmatprep.subr.bf16.mxu0 0
      %331 = vmatpush2.bf16.msra.mxu0 0
      %332 = vmatprep.subr.bf16.mxu0 0
      %333 = vmatpush2.bf16.msra.mxu0 0
      %334 = vmatprep.mubr.bf16.mxu0 0
      %335 = vmatmul.mubr.bf16.gmra.mxu0 %v293
      %v336 = vpop.f32.mrf.mxu0
      %v337 = vadd.f32 0.0, %v336
      %v338 = vpop.f32.mrf.mxu0
      %v339 = vpop.f32.mrf.mxu0
      %v340 = vadd.f32 0.0, %v339
      %v341 = vpop.f32.mrf.mxu0
      %342 = vmatprep.mubr.bf16.mxu0 0
      %343 = vmatmul.mubr.bf16.gmra.mxu0 %v296
      %v344 = vpop.f32.mrf.mxu0
      %v345 = vadd.f32 0.0, %v344
      %v346 = vpop.f32.mrf.mxu0
      %v347 = vpop.f32.mrf.mxu0
      %v348 = vpop.f32.mrf.mxu0
      %349 = vdwg.mxu0
      %353 = vrot.lane.b32.xlu0 %v337, 5
      %v354 = vpop.permute.xlu0 %353
      %355 = vrot.lane.b32.xlu0 %v340, 5
      %v356 = vpop.permute.xlu0 %355
      %357 = vrot.lane.b32.xlu0 %v345, 5
      %v358 = vpop.permute.xlu0 %357
      %vm362 = vcmask 171048
      %363 = vst.msk [vmem:[#allocation2] sm:$0xff] %vm362, %v354
      %364 = vst.msk [vmem:[#allocation2 + $0x8] sm:$0xff] %vm362, %v356
      %vm365 = vcmask 164904
      %366 = vst.msk [vmem:[#allocation2 + $0x10] sm:$0x3] %vm365, %v358
      %v367 = vld [vmem:[#allocation2] sm:$0x3]
      %v368 = vadd.s32 %v207, 4294967295
      %vm369 = vcmp.ge.s32.totalorder %v368, 0
      %vm370 = vcmp.lt.s32.totalorder %v368, 4
      %vm371 = vmand %vm369, %vm370
      %v372 = vsel %vm371, 1, 0
      %vm373 = vcmp.eq.s32.totalorder %v372, 1
      %v374 = vsel %vm373, %v367, 0.0
      %v375 = vld [vmem:[#allocation2 + $0x2] sm:$0x3]
      %377 = vrot.lane.b32.xlu0 %v375, 127
      %v378 = vpop.permute.xlu0 %377
      %v380 = vadd.f32 %v374, %v378
      %v381 = vld [vmem:[#allocation2 + $0x4] sm:$0x3]
      %v382 = vadd.s32 %v207, 1
      %vm383 = vcmp.ge.s32.totalorder %v382, 0
      %vm384 = vcmp.lt.s32.totalorder %v382, 4
      %vm385 = vmand %vm383, %vm384
      %v386 = vsel %vm385, 1, 0
      %vm387 = vcmp.eq.s32.totalorder %v386, 1
      %389 = vrot.lane.b32.xlu0 %v381, 126
      %v390 = vpop.permute.xlu0 %389
      %v392 = vsel %vm387, %v390, 0.0
      %v393 = vadd.f32 %v380, %v392
      %v394 = vld [vmem:[#allocation2 + $0x6] sm:$0x3]
      %396 = vrot.lane.b32.xlu0 %v394, 124
      %v397 = vpop.permute.xlu0 %396
      %v399 = vsel %vm373, %v397, 0.0
      %v400 = vadd.f32 %v393, %v399
      %v401 = vld [vmem:[#allocation2 + $0x8] sm:$0x3]
      %403 = vrot.lane.b32.xlu0 %v401, 123
      %v404 = vpop.permute.xlu0 %403
      %v406 = vadd.f32 %v400, %v404
      %v407 = vld [vmem:[#allocation2 + $0xa] sm:$0x3]
      %409 = vrot.lane.b32.xlu0 %v407, 122
      %v410 = vpop.permute.xlu0 %409
      %v412 = vsel %vm387, %v410, 0.0
      %v413 = vadd.f32 %v406, %v412
      %v414 = vld [vmem:[#allocation2 + $0xc] sm:$0x3]
      %416 = vrot.lane.b32.xlu0 %v414, 120
      %v417 = vpop.permute.xlu0 %416
      %v419 = vsel %vm373, %v417, 0.0
      %v420 = vadd.f32 %v413, %v419
      %v421 = vld [vmem:[#allocation2 + $0xe] sm:$0x3]
      %423 = vrot.lane.b32.xlu0 %v421, 119
      %v424 = vpop.permute.xlu0 %423
      %v426 = vadd.f32 %v420, %v424
      %v427 = vld [vmem:[#allocation2 + $0x10] sm:$0x3]
      %429 = vrot.lane.b32.xlu0 %v427, 118
      %v430 = vpop.permute.xlu0 %429
      %v432 = vsel %vm387, %v430, 0.0
      %v433 = vadd.f32 %v426, %v432
      %v434 = vsel %vm264, %v433, 0.0
      %435 = vadd.xlane.f32.xlu0 %v434
      %v436 = vpop.xlane.xlu0 %435
      %v437 = vmul.f32 %v436, 0.0625
      %v438 = vsub.f32 %v433, %v437
      %v439 = vmul.f32 %v438, %v438
      %v440 = vsel %vm264, %v439, 0.0
      %441 = vadd.xlane.f32.xlu0 %v440
      %v442 = vpop.xlane.xlu0 %441
      %v443 = vmul.f32 %v442, 0.0625
      %v444 = vadd.f32 %v443, 1e-05
      %v445 = vrsqrt.pop %v444
      %v446 = vmul.f32 %v438, %v445
      %v447 = vmax.f32 %v446, 0.0
      %v448 = vld [vmem:[%s3] sm:$0x3]
      %v449 = vpack.c.bf16 %v447, %v447
      %v451 = vsel %vm291, %v448, 0
      %v454 = vsel %vm298, %v449, 0
      %456 = vmatprep.subr.bf16.mxu0 0
      %457 = vmatpush1.bf16.msra.mxu0 0
      %458 = vmatprep.subr.bf16.mxu0 0
      %459 = vmatpush1.bf16.msra.mxu0 0
      %460 = vmatprep.subr.bf16.mxu0 0
      %461 = vmatpush1.bf16.msra.mxu0 0
      %462 = vmatprep.subr.bf16.mxu0 0
      %463 = vmatpush1.bf16.msra.mxu0 0
      %464 = vmatprep.subr.bf16.mxu0 0
      %465 = vmatpush1.bf16.msra.mxu0 0
      %466 = vmatprep.subr.bf16.mxu0 0
      %467 = vmatpush1.bf16.msra.mxu0 0
      %468 = vmatprep.subr.bf16.mxu0 0
      %469 = vmatpush1.bf16.msra.mxu0 0
      %470 = vmatprep.subr.bf16.mxu0 0
      %471 = vmatpush1.bf16.msra.mxu0 %v454
      %472 = vmatprep.subr.bf16.mxu0 0
      %473 = vmatpush2.bf16.msra.mxu0 0
      %474 = vmatprep.subr.bf16.mxu0 0
      %475 = vmatpush2.bf16.msra.mxu0 0
      %476 = vmatprep.subr.bf16.mxu0 0
      %477 = vmatpush2.bf16.msra.mxu0 0
      %478 = vmatprep.subr.bf16.mxu0 0
      %479 = vmatpush2.bf16.msra.mxu0 0
      %480 = vmatprep.subr.bf16.mxu0 0
      %481 = vmatpush2.bf16.msra.mxu0 0
      %482 = vmatprep.subr.bf16.mxu0 0
      %483 = vmatpush2.bf16.msra.mxu0 0
      %484 = vmatprep.subr.bf16.mxu0 0
      %485 = vmatpush2.bf16.msra.mxu0 0
      %486 = vmatprep.subr.bf16.mxu0 0
      %487 = vmatpush2.bf16.msra.mxu0 0
      %488 = vmatprep.mubr.bf16.mxu0 0
      %489 = vmatmul.mubr.bf16.gmra.mxu0 %v451
      %v490 = vpop.f32.mrf.mxu0
      %v491 = vadd.f32 0.0, %v490
      %v492 = vpop.f32.mrf.mxu0
      %v493 = vpop.f32.mrf.mxu0
      %v494 = vpop.f32.mrf.mxu0
      %495 = vdwg.mxu0
      %vm496 = vcmask 125952
      %v497 = vsel %vm496, %v491, 0.0
      %498 = vadd.xlane.f32.xlu0 %v497
      %v499 = vpop.xlane.xlu0 %498
      %v500 = vmul.f32 %v499, 0.0625
      %v501 = vsub.f32 %v491, %v500
      %v502 = vmul.f32 %v501, %v501
      %v503 = vsel %vm496, %v502, 0.0
      %504 = vadd.xlane.f32.xlu0 %v503
      %v505 = vpop.xlane.xlu0 %504
      %v506 = vmul.f32 %v505, 0.0625
      %v507 = vadd.f32 %v506, 1e-05
      %v508 = vrsqrt.pop %v507
      %v509 = vmul.f32 %v501, %v508
      %v510 = vmax.f32 %v509, 0.0
      %v511 = vadd.f32 %v213, %v510
      %s512 = scalar_lea.vmem %s1, 1
      %v513 = vld [vmem:[%s512] sm:$0x1]
      %v514 = vpack.c.bf16 %v511, %v511
      %v516 = vsel %vm216, %v513, 0
      %v519 = vsel %vm220, %v514, 0
      %521 = vmatprep.subr.bf16.mxu0 0
      %522 = vmatpush1.bf16.msra.mxu0 0
      %523 = vmatprep.subr.bf16.mxu0 0
      %524 = vmatpush1.bf16.msra.mxu0 0
      %525 = vmatprep.subr.bf16.mxu0 0
      %526 = vmatpush1.bf16.msra.mxu0 0
      %527 = vmatprep.subr.bf16.mxu0 0
      %528 = vmatpush1.bf16.msra.mxu0 0
      %529 = vmatprep.subr.bf16.mxu0 0
      %530 = vmatpush1.bf16.msra.mxu0 0
      %531 = vmatprep.subr.bf16.mxu0 0
      %532 = vmatpush1.bf16.msra.mxu0 0
      %533 = vmatprep.subr.bf16.mxu0 0
      %534 = vmatpush1.bf16.msra.mxu0 0
      %535 = vmatprep.subr.bf16.mxu0 0
      %536 = vmatpush1.bf16.msra.mxu0 %v519
      %537 = vmatprep.subr.bf16.mxu0 0
      %538 = vmatpush2.bf16.msra.mxu0 0
      %539 = vmatprep.subr.bf16.mxu0 0
      %540 = vmatpush2.bf16.msra.mxu0 0
      %541 = vmatprep.subr.bf16.mxu0 0
      %542 = vmatpush2.bf16.msra.mxu0 0
      %543 = vmatprep.subr.bf16.mxu0 0
      %544 = vmatpush2.bf16.msra.mxu0 0
      %545 = vmatprep.subr.bf16.mxu0 0
      %546 = vmatpush2.bf16.msra.mxu0 0
      %547 = vmatprep.subr.bf16.mxu0 0
      %548 = vmatpush2.bf16.msra.mxu0 0
      %549 = vmatprep.subr.bf16.mxu0 0
      %550 = vmatpush2.bf16.msra.mxu0 0
      %551 = vmatprep.subr.bf16.mxu0 0
      %552 = vmatpush2.bf16.msra.mxu0 0
      %553 = vmatprep.mubr.bf16.mxu0 0
      %554 = vmatmul.mubr.bf16.gmra.mxu0 %v516
      %v555 = vpop.f32.mrf.mxu0
      %v556 = vadd.f32 0.0, %v555
      %v557 = vpop.f32.mrf.mxu0
      %v558 = vpop.f32.mrf.mxu0
      %v559 = vpop.f32.mrf.mxu0
      %560 = vdwg.mxu0
      %v561 = vsel %vm264, %v556, 0.0
      %562 = vadd.xlane.f32.xlu0 %v561
      %v563 = vpop.xlane.xlu0 %562
      %v564 = vmul.f32 %v563, 0.0625
      %v565 = vsub.f32 %v556, %v564
      %v566 = vmul.f32 %v565, %v565
      %v567 = vsel %vm264, %v566, 0.0
      %568 = vadd.xlane.f32.xlu0 %v567
      %v569 = vpop.xlane.xlu0 %568
      %v570 = vmul.f32 %v569, 0.0625
      %v571 = vadd.f32 %v570, 1e-05
      %v572 = vrsqrt.pop %v571
      %v573 = vmul.f32 %v565, %v572
      %v574 = vmax.f32 %v573, 0.0
      %s575 = scalar_lea.vmem %s2, 12
      %v576 = vld [vmem:[%s575] sm:$0xf]
      %v577 = vld [vmem:[%s575 + $0x4] sm:$0xf]
      %v578 = vld [vmem:[%s575 + $0x8] sm:$0x1]
      %v579 = vpack.c.bf16 %v574, %v574
      %v583 = vunpack.c.l.b16 %v576
      %v584 = vunpack.c.l.b16 %v577
      %v585 = vunpack.c.l.b16 %v578
      %v586 = vpack.c.b16 %v584, %v583
      %v587 = vpack.c.b16 %v585, %v585
      %v589 = vsel %vm291, %v586, 0
      %v592 = vsel %vm291, %v587, 0
      %v595 = vsel %vm298, %v579, 0
      %597 = vmatprep.subr.bf16.mxu0 0
      %598 = vmatpush1.bf16.msra.mxu0 0
      %599 = vmatprep.subr.bf16.mxu0 0
      %600 = vmatpush1.bf16.msra.mxu0 0
      %601 = vmatprep.subr.bf16.mxu0 0
      %602 = vmatpush1.bf16.msra.mxu0 0
      %603 = vmatprep.subr.bf16.mxu0 0
      %604 = vmatpush1.bf16.msra.mxu0 0
      %605 = vmatprep.subr.bf16.mxu0 0
      %606 = vmatpush1.bf16.msra.mxu0 0
      %607 = vmatprep.subr.bf16.mxu0 0
      %608 = vmatpush1.bf16.msra.mxu0 0
      %609 = vmatprep.subr.bf16.mxu0 0
      %610 = vmatpush1.bf16.msra.mxu0 0
      %611 = vmatprep.subr.bf16.mxu0 0
      %612 = vmatpush1.bf16.msra.mxu0 %v595
      %613 = vmatprep.subr.bf16.mxu0 0
      %614 = vmatpush2.bf16.msra.mxu0 0
      %615 = vmatprep.subr.bf16.mxu0 0
      %616 = vmatpush2.bf16.msra.mxu0 0
      %617 = vmatprep.subr.bf16.mxu0 0
      %618 = vmatpush2.bf16.msra.mxu0 0
      %619 = vmatprep.subr.bf16.mxu0 0
      %620 = vmatpush2.bf16.msra.mxu0 0
      %621 = vmatprep.subr.bf16.mxu0 0
      %622 = vmatpush2.bf16.msra.mxu0 0
      %623 = vmatprep.subr.bf16.mxu0 0
      %624 = vmatpush2.bf16.msra.mxu0 0
      %625 = vmatprep.subr.bf16.mxu0 0
      %626 = vmatpush2.bf16.msra.mxu0 0
      %627 = vmatprep.subr.bf16.mxu0 0
      %628 = vmatpush2.bf16.msra.mxu0 0
      %629 = vmatprep.mubr.bf16.mxu0 0
      %630 = vmatmul.mubr.bf16.gmra.mxu0 %v589
      %v631 = vpop.f32.mrf.mxu0
      %v632 = vadd.f32 0.0, %v631
      %v633 = vpop.f32.mrf.mxu0
      %v634 = vpop.f32.mrf.mxu0
      %v635 = vadd.f32 0.0, %v634
      %v636 = vpop.f32.mrf.mxu0
      %637 = vmatprep.mubr.bf16.mxu0 0
      %638 = vmatmul.mubr.bf16.gmra.mxu0 %v592
      %v639 = vpop.f32.mrf.mxu0
      %v640 = vadd.f32 0.0, %v639
      %v641 = vpop.f32.mrf.mxu0
      %v642 = vpop.f32.mrf.mxu0
      %v643 = vpop.f32.mrf.mxu0
      %644 = vdwg.mxu0
      %648 = vrot.lane.b32.xlu0 %v632, 5
      %v649 = vpop.permute.xlu0 %648
      %650 = vrot.lane.b32.xlu0 %v635, 5
      %v651 = vpop.permute.xlu0 %650
      %652 = vrot.lane.b32.xlu0 %v640, 5
      %v653 = vpop.permute.xlu0 %652
      %657 = vst.msk [vmem:[#allocation2] sm:$0xff] %vm362, %v649
      %658 = vst.msk [vmem:[#allocation2 + $0x8] sm:$0xff] %vm362, %v651
      %659 = vst.msk [vmem:[#allocation2 + $0x10] sm:$0x3] %vm365, %v653
      %v660 = vld [vmem:[#allocation2] sm:$0x3]
      %v661 = vsel %vm373, %v660, 0.0
      %v662 = vld [vmem:[#allocation2 + $0x2] sm:$0x3]
      %664 = vrot.lane.b32.xlu0 %v662, 127
      %v665 = vpop.permute.xlu0 %664
      %v667 = vadd.f32 %v661, %v665
      %v668 = vld [vmem:[#allocation2 + $0x4] sm:$0x3]
      %670 = vrot.lane.b32.xlu0 %v668, 126
      %v671 = vpop.permute.xlu0 %670
      %v673 = vsel %vm387, %v671, 0.0
      %v674 = vadd.f32 %v667, %v673
      %v675 = vld [vmem:[#allocation2 + $0x6] sm:$0x3]
      %677 = vrot.lane.b32.xlu0 %v675, 124
      %v678 = vpop.permute.xlu0 %677
      %v680 = vsel %vm373, %v678, 0.0
      %v681 = vadd.f32 %v674, %v680
      %v682 = vld [vmem:[#allocation2 + $0x8] sm:$0x3]
      %684 = vrot.lane.b32.xlu0 %v682, 123
      %v685 = vpop.permute.xlu0 %684
      %v687 = vadd.f32 %v681, %v685
      %v688 = vld [vmem:[#allocation2 + $0xa] sm:$0x3]
      %690 = vrot.lane.b32.xlu0 %v688, 122
      %v691 = vpop.permute.xlu0 %690
      %v693 = vsel %vm387, %v691, 0.0
      %v694 = vadd.f32 %v687, %v693
      %v695 = vld [vmem:[#allocation2 + $0xc] sm:$0x3]
      %697 = vrot.lane.b32.xlu0 %v695, 120
      %v698 = vpop.permute.xlu0 %697
      %v700 = vsel %vm373, %v698, 0.0
      %v701 = vadd.f32 %v694, %v700
      %v702 = vld [vmem:[#allocation2 + $0xe] sm:$0x3]
      %704 = vrot.lane.b32.xlu0 %v702, 119
      %v705 = vpop.permute.xlu0 %704
      %v707 = vadd.f32 %v701, %v705
      %v708 = vld [vmem:[#allocation2 + $0x10] sm:$0x3]
      %710 = vrot.lane.b32.xlu0 %v708, 118
      %v711 = vpop.permute.xlu0 %710
      %v713 = vsel %vm387, %v711, 0.0
      %v714 = vadd.f32 %v707, %v713
      %v715 = vsel %vm264, %v714, 0.0
      %716 = vadd.xlane.f32.xlu0 %v715
      %v717 = vpop.xlane.xlu0 %716
      %v718 = vmul.f32 %v717, 0.0625
      %v719 = vsub.f32 %v714, %v718
      %v720 = vmul.f32 %v719, %v719
      %v721 = vsel %vm264, %v720, 0.0
      %722 = vadd.xlane.f32.xlu0 %v721
      %v723 = vpop.xlane.xlu0 %722
      %v724 = vmul.f32 %v723, 0.0625
      %v725 = vadd.f32 %v724, 1e-05
      %v726 = vrsqrt.pop %v725
      %v727 = vmul.f32 %v719, %v726
      %v728 = vmax.f32 %v727, 0.0
      %s729 = scalar_lea.vmem %s3, 2
      %v730 = vld [vmem:[%s729] sm:$0x3]
      %v731 = vpack.c.bf16 %v728, %v728
      %v733 = vsel %vm291, %v730, 0
      %v736 = vsel %vm298, %v731, 0
      %738 = vmatprep.subr.bf16.mxu0 0
      %739 = vmatpush1.bf16.msra.mxu0 0
      %740 = vmatprep.subr.bf16.mxu0 0
      %741 = vmatpush1.bf16.msra.mxu0 0
      %742 = vmatprep.subr.bf16.mxu0 0
      %743 = vmatpush1.bf16.msra.mxu0 0
      %744 = vmatprep.subr.bf16.mxu0 0
      %745 = vmatpush1.bf16.msra.mxu0 0
      %746 = vmatprep.subr.bf16.mxu0 0
      %747 = vmatpush1.bf16.msra.mxu0 0
      %748 = vmatprep.subr.bf16.mxu0 0
      %749 = vmatpush1.bf16.msra.mxu0 0
      %750 = vmatprep.subr.bf16.mxu0 0
      %751 = vmatpush1.bf16.msra.mxu0 0
      %752 = vmatprep.subr.bf16.mxu0 0
      %753 = vmatpush1.bf16.msra.mxu0 %v736
      %754 = vmatprep.subr.bf16.mxu0 0
      %755 = vmatpush2.bf16.msra.mxu0 0
      %756 = vmatprep.subr.bf16.mxu0 0
      %757 = vmatpush2.bf16.msra.mxu0 0
      %758 = vmatprep.subr.bf16.mxu0 0
      %759 = vmatpush2.bf16.msra.mxu0 0
      %760 = vmatprep.subr.bf16.mxu0 0
      %761 = vmatpush2.bf16.msra.mxu0 0
      %762 = vmatprep.subr.bf16.mxu0 0
      %763 = vmatpush2.bf16.msra.mxu0 0
      %764 = vmatprep.subr.bf16.mxu0 0
      %765 = vmatpush2.bf16.msra.mxu0 0
      %766 = vmatprep.subr.bf16.mxu0 0
      %767 = vmatpush2.bf16.msra.mxu0 0
      %768 = vmatprep.subr.bf16.mxu0 0
      %769 = vmatpush2.bf16.msra.mxu0 0
      %770 = vmatprep.mubr.bf16.mxu0 0
      %771 = vmatmul.mubr.bf16.gmra.mxu0 %v733
      %v772 = vpop.f32.mrf.mxu0
      %v773 = vadd.f32 0.0, %v772
      %v774 = vpop.f32.mrf.mxu0
      %v775 = vpop.f32.mrf.mxu0
      %v776 = vpop.f32.mrf.mxu0
      %777 = vdwg.mxu0
      %v778 = vsel %vm496, %v773, 0.0
      %779 = vadd.xlane.f32.xlu0 %v778
      %v780 = vpop.xlane.xlu0 %779
      %v781 = vmul.f32 %v780, 0.0625
      %v782 = vsub.f32 %v773, %v781
      %v783 = vmul.f32 %v782, %v782
      %v784 = vsel %vm496, %v783, 0.0
      %785 = vadd.xlane.f32.xlu0 %v784
      %v786 = vpop.xlane.xlu0 %785
      %v787 = vmul.f32 %v786, 0.0625
      %v788 = vadd.f32 %v787, 1e-05
      %v789 = vrsqrt.pop %v788
      %v790 = vmul.f32 %v782, %v789
      %v791 = vmax.f32 %v790, 0.0
      %v792 = vadd.f32 %v511, %v791
      %793 = vst.msk [vmem:[%s192] sm:$0xf] %vm496, %v792
      %p794 = scmp.lt.s32.totalorder %s15, 1
      %s795 = scalar_select %p794, %s15, 1
      %s796 = smul.addr %s795, 4
      %s797 = scalar_lea.vmem %s4, %s796
      // Predicated region
      $region37: #{hourglass_forward.8} parent=35 // pred_check
        %p798 = pneg %p122
      $region38: #{hourglass_forward.8} parent=35 // pred_check_branch
        %800 = sbr.rel (%p798) target = $region40
      $region39: #{hourglass_forward.8} parent=35 // pred_region
        _
      $region40: #{hourglass_forward.8} parent=35 // pred_fallthru
        _
    $region36: #{hourglass_forward.8} parent=5 // pred_fallthru
      _
    %p801 = scmp.le.s32.totalorder 2, %s10
    // Predicated region
    $region41: #{hourglass_forward.8} parent=5 // pred_check
      %p802 = pneg %p801
    $region42: #{hourglass_forward.8} parent=5 // pred_check_branch
      %804 = sbr.rel (%p802) target = $region44
    $region43: #{hourglass_forward.8} parent=5 // pred_region
      %s805 = ssub.s32 %s10, 2
      // Predicated region
      $region45: #{hourglass_forward.8} parent=43 // pred_check
        %p806 = pneg %p128
      $region46: #{hourglass_forward.8} parent=43 // pred_check_branch
        %808 = sbr.rel (%p806) target = $region48
      $region47: #{hourglass_forward.8} parent=43 // pred_region
        %p809 = scmp.lt.s32.totalorder %s16, 1
        %s810 = scalar_select %p809, %s16, 1
        %s811 = smul.addr %s810, 4
        %s812 = scalar_lea.vmem %s4, %s811
      $region48: #{hourglass_forward.8} parent=43 // pred_fallthru
        _
    $region44: #{hourglass_forward.8} parent=5 // pred_fallthru
      _
  $region6: #{hourglass_forward.8} parent=0 // loop_footer
    %s14 = sadd.s32 1, %s10
  $region7: #{hourglass_forward.8} parent=0 // loop_footer_branch
    %9 = sbr.rel target = $region3
  $region8: #{hourglass_forward.8} parent=0 // loop_exit
    _

// kernel: hourglass_forward.7
$region0: #{hourglass_forward.7}
  #allocation0 [shape = 'u32[]', space=smem, size = 0x4, offset = 0x4, fixed_abs, tag = 'smem constant byte address 0x4 - core index']
  #allocation1 [shape = 'u32[144,128]{1,0:T(1,128)}', space=vmem, size = 0x12000, scoped, tag = 'internal scratch']
  #allocation2 [shape = 'f32[18,82]{1,0:T(8,128)}', space=vmem, size = 0x3000, scoped, tag = 'scratch operand']
  %s0 = inlined_call_operand.vmem [shape: f32[2,4,64], index: 0, kind: input, shape index: {}]
  %s1 = inlined_call_operand.vmem [shape: bf16[2,2,4], index: 1, kind: input, shape index: {}]
  %s2 = inlined_call_operand.vmem [shape: bf16[2,18,2], index: 2, kind: input, shape index: {}]
  %s3 = inlined_call_operand.vmem [shape: bf16[2,4,2], index: 3, kind: input, shape index: {}]
  %s4 = inlined_call_operand.vmem [shape: f32[2,4,64], index: 4, kind: output, shape index: {}]
  %s5 = sld [smem:[#allocation0]]
  $region49: #{hourglass_forward.7} parent=0
    _
  %s7 = ssub.s32 1, %s5
  %s8 = scalar_select 0, %s7, %s5
  loop: start=0, step=1, limit=4
  $region2: #{hourglass_forward.7} parent=0 // loop_pre_header
    _
  $region3: #{hourglass_forward.7} parent=0 // loop_header
    %s10 = sphi 0, %s14
    %p11 = scmp.ge.s32.totalorder %s10, 4
    %s20 = sphi 0, %s22
    %s23 = sphi 0, %s20
    %s24 = sphi 0, %s23
    %s40 = sphi 0, %s24
    %s44 = sphi 0, %s44
    %s46 = sphi 0, %s44
    %s47 = sphi 0, %s46
    %s61 = sphi 0, %s47
    %s65 = sphi 0, %s65
    %s67 = sphi 0, %s65
    %s68 = sphi 0, %s67
    %s82 = sphi 0, %s68
    %s86 = sphi 0, %s86
    %s88 = sphi 0, %s86
    %s89 = sphi 0, %s88
    %s103 = sphi 0, %s89
    %s109 = sphi 0, %s111
    %s112 = sphi 0, %s109
    %s113 = sphi 0, %s112
    %s129 = sphi 0, %s113
  $region4: #{hourglass_forward.7} parent=0 // loop_header_branch
    %13 = sbr.rel (%p11) target = $region8
  $region5: #{hourglass_forward.7} parent=0 // loop_body
    %s15 = ssub.s32 %s10, 1
    %s16 = ssub.s32 %s10, 2
    %s17 = sadd.s32 %s10, 1
    %s18 = ssub.s32 %s10, %s17
    %p19 = scmp.eq.s32.totalorder %s18, 0
    %s21 = sadd.s32 %s20, 1
    %s22 = scalar_select %p19, %s20, %s21
    %p25 = pneg %p19
    %p26 = scmp.eq.s32.totalorder %s10, 1
    %p27 = por %p25, %p26
    %p28 = scmp.ne.s32.totalorder %s20, %s23
    %p29 = scmp.eq.s32.totalorder %s10, 0
    %p30 = por %p28, %p29
    %p31 = scmp.ne.s32.totalorder %s20, %s23
    %p32 = scmp.eq.s32.totalorder %s15, 1
    %p33 = por %p31, %p32
    %p34 = scmp.ne.s32.totalorder %s23, %s24
    %p35 = scmp.eq.s32.totalorder %s15, 0
    %p36 = por %p34, %p35
    %p37 = scmp.ne.s32.totalorder %s23, %s24
    %p38 = scmp.eq.s32.totalorder %s16, 1
    %p39 = por %p37, %p38
    %p41 = scmp.ne.s32.totalorder %s24, %s40
    %p42 = scmp.eq.s32.totalorder %s16, 0
    %p43 = por %p41, %p42
    %s45 = sadd.s32 %s44, 1
    %p48 = scmp.eq.s32.totalorder %s10, 1
    %p49 = scmp.ne.s32.totalorder %s44, %s46
    %p50 = scmp.eq.s32.totalorder %s10, 0
    %p51 = por %p49, %p50
    %p52 = scmp.ne.s32.totalorder %s44, %s46
    %p53 = scmp.eq.s32.totalorder %s15, 1
    %p54 = por %p52, %p53
    %p55 = scmp.ne.s32.totalorder %s46, %s47
    %p56 = scmp.eq.s32.totalorder %s15, 0
    %p57 = por %p55, %p56
    %p58 = scmp.ne.s32.totalorder %s46, %s47
    %p59 = scmp.eq.s32.totalorder %s16, 1
    %p60 = por %p58, %p59
    %p62 = scmp.ne.s32.totalorder %s47, %s61
    %p63 = scmp.eq.s32.totalorder %s16, 0
    %p64 = por %p62, %p63
    %s66 = sadd.s32 %s65, 1
    %p69 = scmp.eq.s32.totalorder %s10, 1
    %p70 = scmp.ne.s32.totalorder %s65, %s67
    %p71 = scmp.eq.s32.totalorder %s10, 0
    %p72 = por %p70, %p71
    %p73 = scmp.ne.s32.totalorder %s65, %s67
    %p74 = scmp.eq.s32.totalorder %s15, 1
    %p75 = por %p73, %p74
    %p76 = scmp.ne.s32.totalorder %s67, %s68
    %p77 = scmp.eq.s32.totalorder %s15, 0
    %p78 = por %p76, %p77
    %p79 = scmp.ne.s32.totalorder %s67, %s68
    %p80 = scmp.eq.s32.totalorder %s16, 1
    %p81 = por %p79, %p80
    %p83 = scmp.ne.s32.totalorder %s68, %s82
    %p84 = scmp.eq.s32.totalorder %s16, 0
    %p85 = por %p83, %p84
    %s87 = sadd.s32 %s86, 1
    %p90 = scmp.eq.s32.totalorder %s10, 1
    %p91 = scmp.ne.s32.totalorder %s86, %s88
    %p92 = scmp.eq.s32.totalorder %s10, 0
    %p93 = por %p91, %p92
    %p94 = scmp.ne.s32.totalorder %s86, %s88
    %p95 = scmp.eq.s32.totalorder %s15, 1
    %p96 = por %p94, %p95
    %p97 = scmp.ne.s32.totalorder %s88, %s89
    %p98 = scmp.eq.s32.totalorder %s15, 0
    %p99 = por %p97, %p98
    %p100 = scmp.ne.s32.totalorder %s88, %s89
    %p101 = scmp.eq.s32.totalorder %s16, 1
    %p102 = por %p100, %p101
    %p104 = scmp.ne.s32.totalorder %s89, %s103
    %p105 = scmp.eq.s32.totalorder %s16, 0
    %p106 = por %p104, %p105
    %s107 = ssub.s32 %s10, %s17
    %p108 = scmp.eq.s32.totalorder %s107, 0
    %s110 = sadd.s32 %s109, 1
    %s111 = scalar_select %p108, %s109, %s110
    %p114 = pneg %p108
    %p115 = scmp.eq.s32.totalorder %s10, 1
    %p116 = por %p114, %p115
    %p117 = scmp.ne.s32.totalorder %s109, %s112
    %p118 = scmp.eq.s32.totalorder %s10, 0
    %p119 = por %p117, %p118
    %p120 = scmp.ne.s32.totalorder %s109, %s112
    %p121 = scmp.eq.s32.totalorder %s15, 1
    %p122 = por %p120, %p121
    %p123 = scmp.ne.s32.totalorder %s112, %s113
    %p124 = scmp.eq.s32.totalorder %s15, 0
    %p125 = por %p123, %p124
    %p126 = scmp.ne.s32.totalorder %s112, %s113
    %p127 = scmp.eq.s32.totalorder %s16, 1
    %p128 = por %p126, %p127
    %p130 = scmp.ne.s32.totalorder %s113, %s129
    %p131 = scmp.eq.s32.totalorder %s16, 0
    %p132 = por %p130, %p131
    %p133 = scmp.le.s32.totalorder 1, %s10
    %p134 = scmp.lt.s32.totalorder %s10, 3
    %p135 = pnand %p133, %p134
    %p136 = pneg %p135
    // Predicated region
    $region9: #{hourglass_forward.7} parent=5 // pred_check
      _
    $region10: #{hourglass_forward.7} parent=5 // pred_check_branch
      %138 = sbr.rel (%p135) target = $region12
    $region11: #{hourglass_forward.7} parent=5 // pred_region
      %s139 = ssub.s32 %s10, 1
      // Predicated region
      $region13: #{hourglass_forward.7} parent=11 // pred_check
        %p140 = pneg %p57
      $region14: #{hourglass_forward.7} parent=11 // pred_check_branch
        %142 = sbr.rel (%p140) target = $region16
      $region15: #{hourglass_forward.7} parent=11 // pred_region
        _
      $region16: #{hourglass_forward.7} parent=11 // pred_fallthru
        _
      // Predicated region
      $region17: #{hourglass_forward.7} parent=11 // pred_check
        %p143 = pneg %p78
      $region18: #{hourglass_forward.7} parent=11 // pred_check_branch
        %145 = sbr.rel (%p143) target = $region20
      $region19: #{hourglass_forward.7} parent=11 // pred_region
        _
      $region20: #{hourglass_forward.7} parent=11 // pred_fallthru
        _
      // Predicated region
      $region21: #{hourglass_forward.7} parent=11 // pred_check
        %p146 = pneg %p99
      $region22: #{hourglass_forward.7} parent=11 // pred_check_branch
        %148 = sbr.rel (%p146) target = $region24
      $region23: #{hourglass_forward.7} parent=11 // pred_region
        _
      $region24: #{hourglass_forward.7} parent=11 // pred_fallthru
        _
    $region12: #{hourglass_forward.7} parent=5 // pred_fallthru
      _
    %p149 = scmp.lt.s32.totalorder %s10, 2
    // Predicated region
    $region25: #{hourglass_forward.7} parent=5 // pred_check
      %p150 = pneg %p149
    $region26: #{hourglass_forward.7} parent=5 // pred_check_branch
      %152 = sbr.rel (%p150) target = $region28
    $region27: #{hourglass_forward.7} parent=5 // pred_region
      // Predicated region
      $region29: #{hourglass_forward.7} parent=27 // pred_check
        %p153 = pneg %p30
      $region30: #{hourglass_forward.7} parent=27 // pred_check_branch
        %155 = sbr.rel (%p153) target = $region32
      $region31: #{hourglass_forward.7} parent=27 // pred_region
        %p156 = scmp.lt.s32.totalorder %s10, 1
        %s157 = scalar_select %p156, %s10, 1
        %s158 = smul.addr %s157, 4
        %s159 = scalar_lea.vmem %s0, %s158
      $region32: #{hourglass_forward.7} parent=27 // pred_fallthru
        _
    $region28: #{hourglass_forward.7} parent=5 // pred_fallthru
      _
    %p160 = scmp.le.s32.totalorder 1, %s10
    %p161 = scmp.lt.s32.totalorder %s10, 3
    %p162 = pnand %p160, %p161
    %p163 = pneg %p162
    // Predicated region
    $region33: #{hourglass_forward.7} parent=5 // pred_check
      _
    $region34: #{hourglass_forward.7} parent=5 // pred_check_branch
      %165 = sbr.rel (%p162) target = $region36
    $region35: #{hourglass_forward.7} parent=5 // pred_region
      %s166 = ssub.s32 %s10, 1
      %p167 = scmp.lt.s32.totalorder %s15, 1
      %s168 = scalar_select %p167, %s15, 1
      %s169 = smul.addr %s168, 4
      %s170 = scalar_lea.vmem %s0, %s169
      %p171 = pneg %p36
      %p172 = pneg %p33
      %p173 = pneg %p57
      %p174 = pneg %p54
      %p175 = pneg %p78
      %p176 = pneg %p75
      %p177 = pneg %p99
      %p178 = pneg %p96
      %p179 = pneg %p125
      %p180 = pneg %p122
      %p181 = scmp.lt.s32.totalorder %s15, 1
      %s182 = scalar_select %p181, %s15, 1
      %s183 = smul.addr %s182, 4
      %s184 = scalar_lea.vmem %s4, %s183
      %p185 = scmp.lt.s32.totalorder %s15, 1
      %s186 = scalar_select %p185, %s15, 1
      %s187 = smul.addr %s186, 4
      %s188 = scalar_lea.vmem %s0, %s187
      %p189 = scmp.lt.s32.totalorder %s15, 1
      %s190 = scalar_select %p189, %s15, 1
      %s191 = smul.addr %s190, 4
      %s192 = scalar_lea.vmem %s4, %s191
      %v194 = vlaneseq
      %v195 = vand.u32 %v194, 127
      %vm196 = vcmp.lt.s32.totalorder %v195, 0
      %v197 = vsub.s32 0, %v195
      %v198 = vsel %vm196, %v197, %v195
      %v199 = vshrl.u32 %v198, 3
      %v200 = vand.u32 %v198, 7
      %v201 = vsub.s32 0, %v200
      %v202 = vsel %vm196, %v201, %v200
      %vm203 = vcmp.ne.s32.totalorder %v202, 0
      %vm204 = vcmp.lt.s32.totalorder %v202, 0
      %vm205 = vmand %vm204, %vm203
      %v206 = vadd.s32 %v202, 8
      %v207 = vsel %vm205, %v206, %v202
      %vm208 = vcmask 670720
      %209 = vst.msk [vmem:[#allocation2] sm:$0xff] %vm208, 0.0
      %210 = vst.msk [vmem:[#allocation2 + $0x8] sm:$0xff] %vm208, 0.0
      %vm211 = vcmask 664576
      %212 = vst.msk [vmem:[#allocation2 + $0x10] sm:$0x3] %vm211, 0.0
      %v213 = vld [vmem:[%s188] sm:$0xf]
      %v214 = vld [vmem:[%s1] sm:$0x1]
      %v215 = vpack.c.bf16 %v213, %v213
      %vm216 = vcmask 31744
      %v218 = vsel %vm216, %v214, 0
      %vm220 = vcmask 1041408
      %v222 = vsel %vm220, %v215, 0
      %224 = vmatprep.subr.bf16.mxu0 0
      %225 = vmatpush1.bf16.msra.mxu0 0
      %226 = vmatprep.subr.bf16.mxu0 0
      %227 = vmatpush1.bf16.msra.mxu0 0
      %228 = vmatprep.subr.bf16.mxu0 0
      %229 = vmatpush1.bf16.msra.mxu0 0
      %230 = vmatprep.subr.bf16.mxu0 0
      %231 = vmatpush1.bf16.msra.mxu0 0
      %232 = vmatprep.subr.bf16.mxu0 0
      %233 = vmatpush1.bf16.msra.mxu0 0
      %234 = vmatprep.subr.bf16.mxu0 0
      %235 = vmatpush1.bf16.msra.mxu0 0
      %236 = vmatprep.subr.bf16.mxu0 0
      %237 = vmatpush1.bf16.msra.mxu0 0
      %238 = vmatprep.subr.bf16.mxu0 0
      %239 = vmatpush1.bf16.msra.mxu0 %v222
      %240 = vmatprep.subr.bf16.mxu0 0
      %241 = vmatpush2.bf16.msra.mxu0 0
      %242 = vmatprep.subr.bf16.mxu0 0
      %243 = vmatpush2.bf16.msra.mxu0 0
      %244 = vmatprep.subr.bf16.mxu0 0
      %245 = vmatpush2.bf16.msra.mxu0 0
      %246 = vmatprep.subr.bf16.mxu0 0
      %247 = vmatpush2.bf16.msra.mxu0 0
      %248 = vmatprep.subr.bf16.mxu0 0
      %249 = vmatpush2.bf16.msra.mxu0 0
      %250 = vmatprep.subr.bf16.mxu0 0
      %251 = vmatpush2.bf16.msra.mxu0 0
      %252 = vmatprep.subr.bf16.mxu0 0
      %253 = vmatpush2.bf16.msra.mxu0 0
      %254 = vmatprep.subr.bf16.mxu0 0
      %255 = vmatpush2.bf16.msra.mxu0 0
      %256 = vmatprep.mubr.bf16.mxu0 0
      %257 = vmatmul.mubr.bf16.gmra.mxu0 %v218
      %v258 = vpop.f32.mrf.mxu0
      %v259 = vadd.f32 0.0, %v258
      %v260 = vpop.f32.mrf.mxu0
      %v261 = vpop.f32.mrf.mxu0
      %v262 = vpop.f32.mrf.mxu0
      %263 = vdwg.mxu0
      %vm264 = vcmask 517120
      %v265 = vsel %vm264, %v259, 0.0
      %266 = vadd.xlane.f32.xlu0 %v265
      %v267 = vpop.xlane.xlu0 %266
      %v268 = vmul.f32 %v267, 0.015625
      %v269 = vsub.f32 %v259, %v268
      %v270 = vmul.f32 %v269, %v269
      %v271 = vsel %vm264, %v270, 0.0
      %272 = vadd.xlane.f32.xlu0 %v271
      %v273 = vpop.xlane.xlu0 %272
      %v274 = vmul.f32 %v273, 0.015625
      %v275 = vadd.f32 %v274, 1e-05
      %v276 = vrsqrt.pop %v275
      %v277 = vmul.f32 %v269, %v276
      %v278 = vmax.f32 %v277, 0.0
      %v279 = vld [vmem:[%s2] sm:$0xf]
      %v280 = vld [vmem:[%s2 + $0x4] sm:$0xf]
      %v281 = vld [vmem:[%s2 + $0x8] sm:$0x1]
      %v282 = vpack.c.bf16 %v278, %v278
      %v286 = vunpack.c.l.b16 %v279
      %v287 = vunpack.c.l.b16 %v280
      %v288 = vunpack.c.l.b16 %v281
      %v289 = vpack.c.b16 %v287, %v286
      %v290 = vpack.c.b16 %v288, %v288
      %vm291 = vcmask 15360
      %v293 = vsel %vm291, %v289, 0
      %v296 = vsel %vm291, %v290, 0
      %vm298 = vcmask 1040384
      %v300 = vsel %vm298, %v282, 0
      %302 = vmatprep.subr.bf16.mxu0 0
      %303 = vmatpush1.bf16.msra.mxu0 0
      %304 = vmatprep.subr.bf16.mxu0 0
      %305 = vmatpush1.bf16.msra.mxu0 0
      %306 = vmatprep.subr.bf16.mxu0 0
      %307 = vmatpush1.bf16.msra.mxu0 0
      %308 = vmatprep.subr.bf16.mxu0 0
      %309 = vmatpush1.bf16.msra.mxu0 0
      %310 = vmatprep.subr.bf16.mxu0 0
      %311 = vmatpush1.bf16.msra.mxu0 0
      %312 = vmatprep.subr.bf16.mxu0 0
      %313 = vmatpush1.bf16.msra.mxu0 0
      %314 = vmatprep.subr.bf16.mxu0 0
      %315 = vmatpush1.bf16.msra.mxu0 0
      %316 = vmatprep.subr.bf16.mxu0 0
      %317 = vmatpush1.bf16.msra.mxu0 %v300
      %318 = vmatprep.subr.bf16.mxu0 0
      %319 = vmatpush2.bf16.msra.mxu0 0
      %320 = vmatprep.subr.bf16.mxu0 0
      %321 = vmatpush2.bf16.msra.mxu0 0
      %322 = vmatprep.subr.bf16.mxu0 0
      %323 = vmatpush2.bf16.msra.mxu0 0
      %324 = vmatprep.subr.bf16.mxu0 0
      %325 = vmatpush2.bf16.msra.mxu0 0
      %326 = vmatprep.subr.bf16.mxu0 0
      %327 = vmatpush2.bf16.msra.mxu0 0
      %328 = vmatprep.subr.bf16.mxu0 0
      %329 = vmatpush2.bf16.msra.mxu0 0
      %330 = vmatprep.subr.bf16.mxu0 0
      %331 = vmatpush2.bf16.msra.mxu0 0
      %332 = vmatprep.subr.bf16.mxu0 0
      %333 = vmatpush2.bf16.msra.mxu0 0
      %334 = vmatprep.mubr.bf16.mxu0 0
      %335 = vmatmul.mubr.bf16.gmra.mxu0 %v293
      %v336 = vpop.f32.mrf.mxu0
      %v337 = vadd.f32 0.0, %v336
      %v338 = vpop.f32.mrf.mxu0
      %v339 = vpop.f32.mrf.mxu0
      %v340 = vadd.f32 0.0, %v339
      %v341 = vpop.f32.mrf.mxu0
      %342 = vmatprep.mubr.bf16.mxu0 0
      %343 = vmatmul.mubr.bf16.gmra.mxu0 %v296
      %v344 = vpop.f32.mrf.mxu0
      %v345 = vadd.f32 0.0, %v344
      %v346 = vpop.f32.mrf.mxu0
      %v347 = vpop.f32.mrf.mxu0
      %v348 = vpop.f32.mrf.mxu0
      %349 = vdwg.mxu0
      %353 = vrot.lane.b32.xlu0 %v337, 9
      %v354 = vpop.permute.xlu0 %353
      %355 = vrot.lane.b32.xlu0 %v340, 9
      %v356 = vpop.permute.xlu0 %355
      %357 = vrot.lane.b32.xlu0 %v345, 9
      %v358 = vpop.permute.xlu0 %357
      %vm362 = vcmask 597064
      %363 = vst.msk [vmem:[#allocation2] sm:$0xff] %vm362, %v354
      %364 = vst.msk [vmem:[#allocation2 + $0x8] sm:$0xff] %vm362, %v356
      %vm365 = vcmask 590920
      %366 = vst.msk [vmem:[#allocation2 + $0x10] sm:$0x3] %vm365, %v358
      %v367 = vld [vmem:[#allocation2] sm:$0x3]
      %v368 = vadd.s32 %v207, 4294967295
      %vm369 = vcmp.ge.s32.totalorder %v368, 0
      %vm370 = vcmp.lt.s32.totalorder %v368, 8
      %vm371 = vmand %vm369, %vm370
      %v372 = vsel %vm371, 1, 0
      %vm373 = vcmp.eq.s32.totalorder %v372, 1
      %v374 = vsel %vm373, %v367, 0.0
      %v375 = vld [vmem:[#allocation2 + $0x2] sm:$0x3]
      %377 = vrot.lane.b32.xlu0 %v375, 127
      %v378 = vpop.permute.xlu0 %377
      %v380 = vadd.f32 %v374, %v378
      %v381 = vld [vmem:[#allocation2 + $0x4] sm:$0x3]
      %v382 = vadd.s32 %v207, 1
      %vm383 = vcmp.ge.s32.totalorder %v382, 0
      %vm384 = vcmp.lt.s32.totalorder %v382, 8
      %vm385 = vmand %vm383, %vm384
      %v386 = vsel %vm385, 1, 0
      %vm387 = vcmp.eq.s32.totalorder %v386, 1
      %389 = vrot.lane.b32.xlu0 %v381, 126
      %v390 = vpop.permute.xlu0 %389
      %v392 = vsel %vm387, %v390, 0.0
      %v393 = vadd.f32 %v380, %v392
      %v394 = vld [vmem:[#allocation2 + $0x6] sm:$0x3]
      %396 = vrot.lane.b32.xlu0 %v394, 120
      %v397 = vpop.permute.xlu0 %396
      %v399 = vsel %vm373, %v397, 0.0
      %v400 = vadd.f32 %v393, %v399
      %v401 = vld [vmem:[#allocation2 + $0x8] sm:$0x3]
      %403 = vrot.lane.b32.xlu0 %v401, 119
      %v404 = vpop.permute.xlu0 %403
      %v406 = vadd.f32 %v400, %v404
      %v407 = vld [vmem:[#allocation2 + $0xa] sm:$0x3]
      %409 = vrot.lane.b32.xlu0 %v407, 118
      %v410 = vpop.permute.xlu0 %409
      %v412 = vsel %vm387, %v410, 0.0
      %v413 = vadd.f32 %v406, %v412
      %v414 = vld [vmem:[#allocation2 + $0xc] sm:$0x3]
      %416 = vrot.lane.b32.xlu0 %v414, 112
      %v417 = vpop.permute.xlu0 %416
      %v419 = vsel %vm373, %v417, 0.0
      %v420 = vadd.f32 %v413, %v419
      %v421 = vld [vmem:[#allocation2 + $0xe] sm:$0x3]
      %423 = vrot.lane.b32.xlu0 %v421, 111
      %v424 = vpop.permute.xlu0 %423
      %v426 = vadd.f32 %v420, %v424
      %v427 = vld [vmem:[#allocation2 + $0x10] sm:$0x3]
      %429 = vrot.lane.b32.xlu0 %v427, 110
      %v430 = vpop.permute.xlu0 %429
      %v432 = vsel %vm387, %v430, 0.0
      %v433 = vadd.f32 %v426, %v432
      %v434 = vsel %vm264, %v433, 0.0
      %435 = vadd.xlane.f32.xlu0 %v434
      %v436 = vpop.xlane.xlu0 %435
      %v437 = vmul.f32 %v436, 0.015625
      %v438 = vsub.f32 %v433, %v437
      %v439 = vmul.f32 %v438, %v438
      %v440 = vsel %vm264, %v439, 0.0
      %441 = vadd.xlane.f32.xlu0 %v440
      %v442 = vpop.xlane.xlu0 %441
      %v443 = vmul.f32 %v442, 0.015625
      %v444 = vadd.f32 %v443, 1e-05
      %v445 = vrsqrt.pop %v444
      %v446 = vmul.f32 %v438, %v445
      %v447 = vmax.f32 %v446, 0.0
      %v448 = vld [vmem:[%s3] sm:$0x3]
      %v449 = vpack.c.bf16 %v447, %v447
      %v451 = vsel %vm291, %v448, 0
      %v454 = vsel %vm298, %v449, 0
      %456 = vmatprep.subr.bf16.mxu0 0
      %457 = vmatpush1.bf16.msra.mxu0 0
      %458 = vmatprep.subr.bf16.mxu0 0
      %459 = vmatpush1.bf16.msra.mxu0 0
      %460 = vmatprep.subr.bf16.mxu0 0
      %461 = vmatpush1.bf16.msra.mxu0 0
      %462 = vmatprep.subr.bf16.mxu0 0
      %463 = vmatpush1.bf16.msra.mxu0 0
      %464 = vmatprep.subr.bf16.mxu0 0
      %465 = vmatpush1.bf16.msra.mxu0 0
      %466 = vmatprep.subr.bf16.mxu0 0
      %467 = vmatpush1.bf16.msra.mxu0 0
      %468 = vmatprep.subr.bf16.mxu0 0
      %469 = vmatpush1.bf16.msra.mxu0 0
      %470 = vmatprep.subr.bf16.mxu0 0
      %471 = vmatpush1.bf16.msra.mxu0 %v454
      %472 = vmatprep.subr.bf16.mxu0 0
      %473 = vmatpush2.bf16.msra.mxu0 0
      %474 = vmatprep.subr.bf16.mxu0 0
      %475 = vmatpush2.bf16.msra.mxu0 0
      %476 = vmatprep.subr.bf16.mxu0 0
      %477 = vmatpush2.bf16.msra.mxu0 0
      %478 = vmatprep.subr.bf16.mxu0 0
      %479 = vmatpush2.bf16.msra.mxu0 0
      %480 = vmatprep.subr.bf16.mxu0 0
      %481 = vmatpush2.bf16.msra.mxu0 0
      %482 = vmatprep.subr.bf16.mxu0 0
      %483 = vmatpush2.bf16.msra.mxu0 0
      %484 = vmatprep.subr.bf16.mxu0 0
      %485 = vmatpush2.bf16.msra.mxu0 0
      %486 = vmatprep.subr.bf16.mxu0 0
      %487 = vmatpush2.bf16.msra.mxu0 0
      %488 = vmatprep.mubr.bf16.mxu0 0
      %489 = vmatmul.mubr.bf16.gmra.mxu0 %v451
      %v490 = vpop.f32.mrf.mxu0
      %v491 = vadd.f32 0.0, %v490
      %v492 = vpop.f32.mrf.mxu0
      %v493 = vpop.f32.mrf.mxu0
      %v494 = vpop.f32.mrf.mxu0
      %495 = vdwg.mxu0
      %vm496 = vcmask 519168
      %v497 = vsel %vm496, %v491, 0.0
      %498 = vadd.xlane.f32.xlu0 %v497
      %v499 = vpop.xlane.xlu0 %498
      %v500 = vmul.f32 %v499, 0.015625
      %v501 = vsub.f32 %v491, %v500
      %v502 = vmul.f32 %v501, %v501
      %v503 = vsel %vm496, %v502, 0.0
      %504 = vadd.xlane.f32.xlu0 %v503
      %v505 = vpop.xlane.xlu0 %504
      %v506 = vmul.f32 %v505, 0.015625
      %v507 = vadd.f32 %v506, 1e-05
      %v508 = vrsqrt.pop %v507
      %v509 = vmul.f32 %v501, %v508
      %v510 = vmax.f32 %v509, 0.0
      %v511 = vadd.f32 %v213, %v510
      %s512 = scalar_lea.vmem %s1, 1
      %v513 = vld [vmem:[%s512] sm:$0x1]
      %v514 = vpack.c.bf16 %v511, %v511
      %v516 = vsel %vm216, %v513, 0
      %v519 = vsel %vm220, %v514, 0
      %521 = vmatprep.subr.bf16.mxu0 0
      %522 = vmatpush1.bf16.msra.mxu0 0
      %523 = vmatprep.subr.bf16.mxu0 0
      %524 = vmatpush1.bf16.msra.mxu0 0
      %525 = vmatprep.subr.bf16.mxu0 0
      %526 = vmatpush1.bf16.msra.mxu0 0
      %527 = vmatprep.subr.bf16.mxu0 0
      %528 = vmatpush1.bf16.msra.mxu0 0
      %529 = vmatprep.subr.bf16.mxu0 0
      %530 = vmatpush1.bf16.msra.mxu0 0
      %531 = vmatprep.subr.bf16.mxu0 0
      %532 = vmatpush1.bf16.msra.mxu0 0
      %533 = vmatprep.subr.bf16.mxu0 0
      %534 = vmatpush1.bf16.msra.mxu0 0
      %535 = vmatprep.subr.bf16.mxu0 0
      %536 = vmatpush1.bf16.msra.mxu0 %v519
      %537 = vmatprep.subr.bf16.mxu0 0
      %538 = vmatpush2.bf16.msra.mxu0 0
      %539 = vmatprep.subr.bf16.mxu0 0
      %540 = vmatpush2.bf16.msra.mxu0 0
      %541 = vmatprep.subr.bf16.mxu0 0
      %542 = vmatpush2.bf16.msra.mxu0 0
      %543 = vmatprep.subr.bf16.mxu0 0
      %544 = vmatpush2.bf16.msra.mxu0 0
      %545 = vmatprep.subr.bf16.mxu0 0
      %546 = vmatpush2.bf16.msra.mxu0 0
      %547 = vmatprep.subr.bf16.mxu0 0
      %548 = vmatpush2.bf16.msra.mxu0 0
      %549 = vmatprep.subr.bf16.mxu0 0
      %550 = vmatpush2.bf16.msra.mxu0 0
      %551 = vmatprep.subr.bf16.mxu0 0
      %552 = vmatpush2.bf16.msra.mxu0 0
      %553 = vmatprep.mubr.bf16.mxu0 0
      %554 = vmatmul.mubr.bf16.gmra.mxu0 %v516
      %v555 = vpop.f32.mrf.mxu0
      %v556 = vadd.f32 0.0, %v555
      %v557 = vpop.f32.mrf.mxu0
      %v558 = vpop.f32.mrf.mxu0
      %v559 = vpop.f32.mrf.mxu0
      %560 = vdwg.mxu0
      %v561 = vsel %vm264, %v556, 0.0
      %562 = vadd.xlane.f32.xlu0 %v561
      %v563 = vpop.xlane.xlu0 %562
      %v564 = vmul.f32 %v563, 0.015625
      %v565 = vsub.f32 %v556, %v564
      %v566 = vmul.f32 %v565, %v565
      %v567 = vsel %vm264, %v566, 0.0
      %568 = vadd.xlane.f32.xlu0 %v567
      %v569 = vpop.xlane.xlu0 %568
      %v570 = vmul.f32 %v569, 0.015625
      %v571 = vadd.f32 %v570, 1e-05
      %v572 = vrsqrt.pop %v571
      %v573 = vmul.f32 %v565, %v572
      %v574 = vmax.f32 %v573, 0.0
      %s575 = scalar_lea.vmem %s2, 12
      %v576 = vld [vmem:[%s575] sm:$0xf]
      %v577 = vld [vmem:[%s575 + $0x4] sm:$0xf]
      %v578 = vld [vmem:[%s575 + $0x8] sm:$0x1]
      %v579 = vpack.c.bf16 %v574, %v574
      %v583 = vunpack.c.l.b16 %v576
      %v584 = vunpack.c.l.b16 %v577
      %v585 = vunpack.c.l.b16 %v578
      %v586 = vpack.c.b16 %v584, %v583
      %v587 = vpack.c.b16 %v585, %v585
      %v589 = vsel %vm291, %v586, 0
      %v592 = vsel %vm291, %v587, 0
      %v595 = vsel %vm298, %v579, 0
      %597 = vmatprep.subr.bf16.mxu0 0
      %598 = vmatpush1.bf16.msra.mxu0 0
      %599 = vmatprep.subr.bf16.mxu0 0
      %600 = vmatpush1.bf16.msra.mxu0 0
      %601 = vmatprep.subr.bf16.mxu0 0
      %602 = vmatpush1.bf16.msra.mxu0 0
      %603 = vmatprep.subr.bf16.mxu0 0
      %604 = vmatpush1.bf16.msra.mxu0 0
      %605 = vmatprep.subr.bf16.mxu0 0
      %606 = vmatpush1.bf16.msra.mxu0 0
      %607 = vmatprep.subr.bf16.mxu0 0
      %608 = vmatpush1.bf16.msra.mxu0 0
      %609 = vmatprep.subr.bf16.mxu0 0
      %610 = vmatpush1.bf16.msra.mxu0 0
      %611 = vmatprep.subr.bf16.mxu0 0
      %612 = vmatpush1.bf16.msra.mxu0 %v595
      %613 = vmatprep.subr.bf16.mxu0 0
      %614 = vmatpush2.bf16.msra.mxu0 0
      %615 = vmatprep.subr.bf16.mxu0 0
      %616 = vmatpush2.bf16.msra.mxu0 0
      %617 = vmatprep.subr.bf16.mxu0 0
      %618 = vmatpush2.bf16.msra.mxu0 0
      %619 = vmatprep.subr.bf16.mxu0 0
      %620 = vmatpush2.bf16.msra.mxu0 0
      %621 = vmatprep.subr.bf16.mxu0 0
      %622 = vmatpush2.bf16.msra.mxu0 0
      %623 = vmatprep.subr.bf16.mxu0 0
      %624 = vmatpush2.bf16.msra.mxu0 0
      %625 = vmatprep.subr.bf16.mxu0 0
      %626 = vmatpush2.bf16.msra.mxu0 0
      %627 = vmatprep.subr.bf16.mxu0 0
      %628 = vmatpush2.bf16.msra.mxu0 0
      %629 = vmatprep.mubr.bf16.mxu0 0
      %630 = vmatmul.mubr.bf16.gmra.mxu0 %v589
      %v631 = vpop.f32.mrf.mxu0
      %v632 = vadd.f32 0.0, %v631
      %v633 = vpop.f32.mrf.mxu0
      %v634 = vpop.f32.mrf.mxu0
      %v635 = vadd.f32 0.0, %v634
      %v636 = vpop.f32.mrf.mxu0
      %637 = vmatprep.mubr.bf16.mxu0 0
      %638 = vmatmul.mubr.bf16.gmra.mxu0 %v592
      %v639 = vpop.f32.mrf.mxu0
      %v640 = vadd.f32 0.0, %v639
      %v641 = vpop.f32.mrf.mxu0
      %v642 = vpop.f32.mrf.mxu0
      %v643 = vpop.f32.mrf.mxu0
      %644 = vdwg.mxu0
      %648 = vrot.lane.b32.xlu0 %v632, 9
      %v649 = vpop.permute.xlu0 %648
      %650 = vrot.lane.b32.xlu0 %v635, 9
      %v651 = vpop.permute.xlu0 %650
      %652 = vrot.lane.b32.xlu0 %v640, 9
      %v653 = vpop.permute.xlu0 %652
      %657 = vst.msk [vmem:[#allocation2] sm:$0xff] %vm362, %v649
      %658 = vst.msk [vmem:[#allocation2 + $0x8] sm:$0xff] %vm362, %v651
      %659 = vst.msk [vmem:[#allocation2 + $0x10] sm:$0x3] %vm365, %v653
      %v660 = vld [vmem:[#allocation2] sm:$0x3]
      %v661 = vsel %vm373, %v660, 0.0
      %v662 = vld [vmem:[#allocation2 + $0x2] sm:$0x3]
      %664 = vrot.lane.b32.xlu0 %v662, 127
      %v665 = vpop.permute.xlu0 %664
      %v667 = vadd.f32 %v661, %v665
      %v668 = vld [vmem:[#allocation2 + $0x4] sm:$0x3]
      %670 = vrot.lane.b32.xlu0 %v668, 126
      %v671 = vpop.permute.xlu0 %670
      %v673 = vsel %vm387, %v671, 0.0
      %v674 = vadd.f32 %v667, %v673
      %v675 = vld [vmem:[#allocation2 + $0x6] sm:$0x3]
      %677 = vrot.lane.b32.xlu0 %v675, 120
      %v678 = vpop.permute.xlu0 %677
      %v680 = vsel %vm373, %v678, 0.0
      %v681 = vadd.f32 %v674, %v680
      %v682 = vld [vmem:[#allocation2 + $0x8] sm:$0x3]
      %684 = vrot.lane.b32.xlu0 %v682, 119
      %v685 = vpop.permute.xlu0 %684
      %v687 = vadd.f32 %v681, %v685
      %v688 = vld [vmem:[#allocation2 + $0xa] sm:$0x3]
      %690 = vrot.lane.b32.xlu0 %v688, 118
      %v691 = vpop.permute.xlu0 %690
      %v693 = vsel %vm387, %v691, 0.0
      %v694 = vadd.f32 %v687, %v693
      %v695 = vld [vmem:[#allocation2 + $0xc] sm:$0x3]
      %697 = vrot.lane.b32.xlu0 %v695, 112
      %v698 = vpop.permute.xlu0 %697
      %v700 = vsel %vm373, %v698, 0.0
      %v701 = vadd.f32 %v694, %v700
      %v702 = vld [vmem:[#allocation2 + $0xe] sm:$0x3]
      %704 = vrot.lane.b32.xlu0 %v702, 111
      %v705 = vpop.permute.xlu0 %704
      %v707 = vadd.f32 %v701, %v705
      %v708 = vld [vmem:[#allocation2 + $0x10] sm:$0x3]
      %710 = vrot.lane.b32.xlu0 %v708, 110
      %v711 = vpop.permute.xlu0 %710
      %v713 = vsel %vm387, %v711, 0.0
      %v714 = vadd.f32 %v707, %v713
      %v715 = vsel %vm264, %v714, 0.0
      %716 = vadd.xlane.f32.xlu0 %v715
      %v717 = vpop.xlane.xlu0 %716
      %v718 = vmul.f32 %v717, 0.015625
      %v719 = vsub.f32 %v714, %v718
      %v720 = vmul.f32 %v719, %v719
      %v721 = vsel %vm264, %v720, 0.0
      %722 = vadd.xlane.f32.xlu0 %v721
      %v723 = vpop.xlane.xlu0 %722
      %v724 = vmul.f32 %v723, 0.015625
      %v725 = vadd.f32 %v724, 1e-05
      %v726 = vrsqrt.pop %v725
      %v727 = vmul.f32 %v719, %v726
      %v728 = vmax.f32 %v727, 0.0
      %s729 = scalar_lea.vmem %s3, 2
      %v730 = vld [vmem:[%s729] sm:$0x3]
      %v731 = vpack.c.bf16 %v728, %v728
      %v733 = vsel %vm291, %v730, 0
      %v736 = vsel %vm298, %v731, 0
      %738 = vmatprep.subr.bf16.mxu0 0
      %739 = vmatpush1.bf16.msra.mxu0 0
      %740 = vmatprep.subr.bf16.mxu0 0
      %741 = vmatpush1.bf16.msra.mxu0 0
      %742 = vmatprep.subr.bf16.mxu0 0
      %743 = vmatpush1.bf16.msra.mxu0 0
      %744 = vmatprep.subr.bf16.mxu0 0
      %745 = vmatpush1.bf16.msra.mxu0 0
      %746 = vmatprep.subr.bf16.mxu0 0
      %747 = vmatpush1.bf16.msra.mxu0 0
      %748 = vmatprep.subr.bf16.mxu0 0
      %749 = vmatpush1.bf16.msra.mxu0 0
      %750 = vmatprep.subr.bf16.mxu0 0
      %751 = vmatpush1.bf16.msra.mxu0 0
      %752 = vmatprep.subr.bf16.mxu0 0
      %753 = vmatpush1.bf16.msra.mxu0 %v736
      %754 = vmatprep.subr.bf16.mxu0 0
      %755 = vmatpush2.bf16.msra.mxu0 0
      %756 = vmatprep.subr.bf16.mxu0 0
      %757 = vmatpush2.bf16.msra.mxu0 0
      %758 = vmatprep.subr.bf16.mxu0 0
      %759 = vmatpush2.bf16.msra.mxu0 0
      %760 = vmatprep.subr.bf16.mxu0 0
      %761 = vmatpush2.bf16.msra.mxu0 0
      %762 = vmatprep.subr.bf16.mxu0 0
      %763 = vmatpush2.bf16.msra.mxu0 0
      %764 = vmatprep.subr.bf16.mxu0 0
      %765 = vmatpush2.bf16.msra.mxu0 0
      %766 = vmatprep.subr.bf16.mxu0 0
      %767 = vmatpush2.bf16.msra.mxu0 0
      %768 = vmatprep.subr.bf16.mxu0 0
      %769 = vmatpush2.bf16.msra.mxu0 0
      %770 = vmatprep.mubr.bf16.mxu0 0
      %771 = vmatmul.mubr.bf16.gmra.mxu0 %v733
      %v772 = vpop.f32.mrf.mxu0
      %v773 = vadd.f32 0.0, %v772
      %v774 = vpop.f32.mrf.mxu0
      %v775 = vpop.f32.mrf.mxu0
      %v776 = vpop.f32.mrf.mxu0
      %777 = vdwg.mxu0
      %v778 = vsel %vm496, %v773, 0.0
      %779 = vadd.xlane.f32.xlu0 %v778
      %v780 = vpop.xlane.xlu0 %779
      %v781 = vmul.f32 %v780, 0.015625
      %v782 = vsub.f32 %v773, %v781
      %v783 = vmul.f32 %v782, %v782
      %v784 = vsel %vm496, %v783, 0.0
      %785 = vadd.xlane.f32.xlu0 %v784
      %v786 = vpop.xlane.xlu0 %785
      %v787 = vmul.f32 %v786, 0.015625
      %v788 = vadd.f32 %v787, 1e-05
      %v789 = vrsqrt.pop %v788
      %v790 = vmul.f32 %v782, %v789
      %v791 = vmax.f32 %v790, 0.0
      %v792 = vadd.f32 %v511, %v791
      %793 = vst.msk [vmem:[%s192] sm:$0xf] %vm496, %v792
      %p794 = scmp.lt.s32.totalorder %s15, 1
      %s795 = scalar_select %p794, %s15, 1
      %s796 = smul.addr %s795, 4
      %s797 = scalar_lea.vmem %s4, %s796
      // Predicated region
      $region37: #{hourglass_forward.7} parent=35 // pred_check
        %p798 = pneg %p122
      $region38: #{hourglass_forward.7} parent=35 // pred_check_branch
        %800 = sbr.rel (%p798) target = $region40
      $region39: #{hourglass_forward.7} parent=35 // pred_region
        _
      $region40: #{hourglass_forward.7} parent=35 // pred_fallthru
        _
    $region36: #{hourglass_forward.7} parent=5 // pred_fallthru
      _
    %p801 = scmp.le.s32.totalorder 2, %s10
    // Predicated region
    $region41: #{hourglass_forward.7} parent=5 // pred_check
      %p802 = pneg %p801
    $region42: #{hourglass_forward.7} parent=5 // pred_check_branch
      %804 = sbr.rel (%p802) target = $region44
    $region43: #{hourglass_forward.7} parent=5 // pred_region
      %s805 = ssub.s32 %s10, 2
      // Predicated region
      $region45: #{hourglass_forward.7} parent=43 // pred_check
        %p806 = pneg %p128
      $region46: #{hourglass_forward.7} parent=43 // pred_check_branch
        %808 = sbr.rel (%p806) target = $region48
      $region47: #{hourglass_forward.7} parent=43 // pred_region
        %p809 = scmp.lt.s32.totalorder %s16, 1
        %s810 = scalar_select %p809, %s16, 1
        %s811 = smul.addr %s810, 4
        %s812 = scalar_lea.vmem %s4, %s811
      $region48: #{hourglass_forward.7} parent=43 // pred_fallthru
        _
    $region44: #{hourglass_forward.7} parent=5 // pred_fallthru
      _
  $region6: #{hourglass_forward.7} parent=0 // loop_footer
    %s14 = sadd.s32 1, %s10
  $region7: #{hourglass_forward.7} parent=0 // loop_footer_branch
    %9 = sbr.rel target = $region3
  $region8: #{hourglass_forward.7} parent=0 // loop_exit
    _

// kernel: hourglass_forward.13
$region0: #{hourglass_forward.13}
  #allocation0 [shape = 'u32[]', space=smem, size = 0x4, offset = 0x4, fixed_abs, tag = 'smem constant byte address 0x4 - core index']
  #allocation1 [shape = 'u32[144,128]{1,0:T(1,128)}', space=vmem, size = 0x12000, scoped, tag = 'internal scratch']
  #allocation2 [shape = 'f32[18,290]{1,0:T(8,128)}', space=vmem, size = 0x9000, scoped, tag = 'scratch operand']
  %s0 = inlined_call_operand.vmem [shape: f32[2,4,256], index: 0, kind: input, shape index: {}]
  %s1 = inlined_call_operand.vmem [shape: bf16[2,2,4], index: 1, kind: input, shape index: {}]
  %s2 = inlined_call_operand.vmem [shape: bf16[2,18,2], index: 2, kind: input, shape index: {}]
  %s3 = inlined_call_operand.vmem [shape: bf16[2,4,2], index: 3, kind: input, shape index: {}]
  %s4 = inlined_call_operand.vmem [shape: f32[2,4,256], index: 4, kind: output, shape index: {}]
  %s5 = sld [smem:[#allocation0]]
  $region49: #{hourglass_forward.13} parent=0
    _
  %s7 = ssub.s32 1, %s5
  %s8 = scalar_select 0, %s7, %s5
  loop: start=0, step=1, limit=4
  $region2: #{hourglass_forward.13} parent=0 // loop_pre_header
    _
  $region3: #{hourglass_forward.13} parent=0 // loop_header
    %s10 = sphi 0, %s14
    %p11 = scmp.ge.s32.totalorder %s10, 4
    %s20 = sphi 0, %s22
    %s23 = sphi 0, %s20
    %s24 = sphi 0, %s23
    %s40 = sphi 0, %s24
    %s44 = sphi 0, %s44
    %s46 = sphi 0, %s44
    %s47 = sphi 0, %s46
    %s61 = sphi 0, %s47
    %s65 = sphi 0, %s65
    %s67 = sphi 0, %s65
    %s68 = sphi 0, %s67
    %s82 = sphi 0, %s68
    %s86 = sphi 0, %s86
    %s88 = sphi 0, %s86
    %s89 = sphi 0, %s88
    %s103 = sphi 0, %s89
    %s109 = sphi 0, %s111
    %s112 = sphi 0, %s109
    %s113 = sphi 0, %s112
    %s129 = sphi 0, %s113
  $region4: #{hourglass_forward.13} parent=0 // loop_header_branch
    %13 = sbr.rel (%p11) target = $region8
  $region5: #{hourglass_forward.13} parent=0 // loop_body
    %s15 = ssub.s32 %s10, 1
    %s16 = ssub.s32 %s10, 2
    %s17 = sadd.s32 %s10, 1
    %s18 = ssub.s32 %s10, %s17
    %p19 = scmp.eq.s32.totalorder %s18, 0
    %s21 = sadd.s32 %s20, 1
    %s22 = scalar_select %p19, %s20, %s21
    %p25 = pneg %p19
    %p26 = scmp.eq.s32.totalorder %s10, 1
    %p27 = por %p25, %p26
    %p28 = scmp.ne.s32.totalorder %s20, %s23
    %p29 = scmp.eq.s32.totalorder %s10, 0
    %p30 = por %p28, %p29
    %p31 = scmp.ne.s32.totalorder %s20, %s23
    %p32 = scmp.eq.s32.totalorder %s15, 1
    %p33 = por %p31, %p32
    %p34 = scmp.ne.s32.totalorder %s23, %s24
    %p35 = scmp.eq.s32.totalorder %s15, 0
    %p36 = por %p34, %p35
    %p37 = scmp.ne.s32.totalorder %s23, %s24
    %p38 = scmp.eq.s32.totalorder %s16, 1
    %p39 = por %p37, %p38
    %p41 = scmp.ne.s32.totalorder %s24, %s40
    %p42 = scmp.eq.s32.totalorder %s16, 0
    %p43 = por %p41, %p42
    %s45 = sadd.s32 %s44, 1
    %p48 = scmp.eq.s32.totalorder %s10, 1
    %p49 = scmp.ne.s32.totalorder %s44, %s46
    %p50 = scmp.eq.s32.totalorder %s10, 0
    %p51 = por %p49, %p50
    %p52 = scmp.ne.s32.totalorder %s44, %s46
    %p53 = scmp.eq.s32.totalorder %s15, 1
    %p54 = por %p52, %p53
    %p55 = scmp.ne.s32.totalorder %s46, %s47
    %p56 = scmp.eq.s32.totalorder %s15, 0
    %p57 = por %p55, %p56
    %p58 = scmp.ne.s32.totalorder %s46, %s47
    %p59 = scmp.eq.s32.totalorder %s16, 1
    %p60 = por %p58, %p59
    %p62 = scmp.ne.s32.totalorder %s47, %s61
    %p63 = scmp.eq.s32.totalorder %s16, 0
    %p64 = por %p62, %p63
    %s66 = sadd.s32 %s65, 1
    %p69 = scmp.eq.s32.totalorder %s10, 1
    %p70 = scmp.ne.s32.totalorder %s65, %s67
    %p71 = scmp.eq.s32.totalorder %s10, 0
    %p72 = por %p70, %p71
    %p73 = scmp.ne.s32.totalorder %s65, %s67
    %p74 = scmp.eq.s32.totalorder %s15, 1
    %p75 = por %p73, %p74
    %p76 = scmp.ne.s32.totalorder %s67, %s68
    %p77 = scmp.eq.s32.totalorder %s15, 0
    %p78 = por %p76, %p77
    %p79 = scmp.ne.s32.totalorder %s67, %s68
    %p80 = scmp.eq.s32.totalorder %s16, 1
    %p81 = por %p79, %p80
    %p83 = scmp.ne.s32.totalorder %s68, %s82
    %p84 = scmp.eq.s32.totalorder %s16, 0
    %p85 = por %p83, %p84
    %s87 = sadd.s32 %s86, 1
    %p90 = scmp.eq.s32.totalorder %s10, 1
    %p91 = scmp.ne.s32.totalorder %s86, %s88
    %p92 = scmp.eq.s32.totalorder %s10, 0
    %p93 = por %p91, %p92
    %p94 = scmp.ne.s32.totalorder %s86, %s88
    %p95 = scmp.eq.s32.totalorder %s15, 1
    %p96 = por %p94, %p95
    %p97 = scmp.ne.s32.totalorder %s88, %s89
    %p98 = scmp.eq.s32.totalorder %s15, 0
    %p99 = por %p97, %p98
    %p100 = scmp.ne.s32.totalorder %s88, %s89
    %p101 = scmp.eq.s32.totalorder %s16, 1
    %p102 = por %p100, %p101
    %p104 = scmp.ne.s32.totalorder %s89, %s103
    %p105 = scmp.eq.s32.totalorder %s16, 0
    %p106 = por %p104, %p105
    %s107 = ssub.s32 %s10, %s17
    %p108 = scmp.eq.s32.totalorder %s107, 0
    %s110 = sadd.s32 %s109, 1
    %s111 = scalar_select %p108, %s109, %s110
    %p114 = pneg %p108
    %p115 = scmp.eq.s32.totalorder %s10, 1
    %p116 = por %p114, %p115
    %p117 = scmp.ne.s32.totalorder %s109, %s112
    %p118 = scmp.eq.s32.totalorder %s10, 0
    %p119 = por %p117, %p118
    %p120 = scmp.ne.s32.totalorder %s109, %s112
    %p121 = scmp.eq.s32.totalorder %s15, 1
    %p122 = por %p120, %p121
    %p123 = scmp.ne.s32.totalorder %s112, %s113
    %p124 = scmp.eq.s32.totalorder %s15, 0
    %p125 = por %p123, %p124
    %p126 = scmp.ne.s32.totalorder %s112, %s113
    %p127 = scmp.eq.s32.totalorder %s16, 1
    %p128 = por %p126, %p127
    %p130 = scmp.ne.s32.totalorder %s113, %s129
    %p131 = scmp.eq.s32.totalorder %s16, 0
    %p132 = por %p130, %p131
    %p133 = scmp.le.s32.totalorder 1, %s10
    %p134 = scmp.lt.s32.totalorder %s10, 3
    %p135 = pnand %p133, %p134
    %p136 = pneg %p135
    // Predicated region
    $region9: #{hourglass_forward.13} parent=5 // pred_check
      _
    $region10: #{hourglass_forward.13} parent=5 // pred_check_branch
      %138 = sbr.rel (%p135) target = $region12
    $region11: #{hourglass_forward.13} parent=5 // pred_region
      %s139 = ssub.s32 %s10, 1
      // Predicated region
      $region13: #{hourglass_forward.13} parent=11 // pred_check
        %p140 = pneg %p57
      $region14: #{hourglass_forward.13} parent=11 // pred_check_branch
        %142 = sbr.rel (%p140) target = $region16
      $region15: #{hourglass_forward.13} parent=11 // pred_region
        _
      $region16: #{hourglass_forward.13} parent=11 // pred_fallthru
        _
      // Predicated region
      $region17: #{hourglass_forward.13} parent=11 // pred_check
        %p143 = pneg %p78
      $region18: #{hourglass_forward.13} parent=11 // pred_check_branch
        %145 = sbr.rel (%p143) target = $region20
      $region19: #{hourglass_forward.13} parent=11 // pred_region
        _
      $region20: #{hourglass_forward.13} parent=11 // pred_fallthru
        _
      // Predicated region
      $region21: #{hourglass_forward.13} parent=11 // pred_check
        %p146 = pneg %p99
      $region22: #{hourglass_forward.13} parent=11 // pred_check_branch
        %148 = sbr.rel (%p146) target = $region24
      $region23: #{hourglass_forward.13} parent=11 // pred_region
        _
      $region24: #{hourglass_forward.13} parent=11 // pred_fallthru
        _
    $region12: #{hourglass_forward.13} parent=5 // pred_fallthru
      _
    %p149 = scmp.lt.s32.totalorder %s10, 2
    // Predicated region
    $region25: #{hourglass_forward.13} parent=5 // pred_check
      %p150 = pneg %p149
    $region26: #{hourglass_forward.13} parent=5 // pred_check_branch
      %152 = sbr.rel (%p150) target = $region28
    $region27: #{hourglass_forward.13} parent=5 // pred_region
      // Predicated region
      $region29: #{hourglass_forward.13} parent=27 // pred_check
        %p153 = pneg %p30
      $region30: #{hourglass_forward.13} parent=27 // pred_check_branch
        %155 = sbr.rel (%p153) target = $region32
      $region31: #{hourglass_forward.13} parent=27 // pred_region
        %p156 = scmp.lt.s32.totalorder %s10, 1
        %s157 = scalar_select %p156, %s10, 1
        %s158 = smul.addr %s157, 2
        %s159 = smul.addr %s158, 4
        %s160 = scalar_lea.vmem %s0, %s159
      $region32: #{hourglass_forward.13} parent=27 // pred_fallthru
        _
    $region28: #{hourglass_forward.13} parent=5 // pred_fallthru
      _
    %p161 = scmp.le.s32.totalorder 1, %s10
    %p162 = scmp.lt.s32.totalorder %s10, 3
    %p163 = pnand %p161, %p162
    %p164 = pneg %p163
    // Predicated region
    $region33: #{hourglass_forward.13} parent=5 // pred_check
      _
    $region34: #{hourglass_forward.13} parent=5 // pred_check_branch
      %166 = sbr.rel (%p163) target = $region36
    $region35: #{hourglass_forward.13} parent=5 // pred_region
      %s167 = ssub.s32 %s10, 1
      %p168 = scmp.lt.s32.totalorder %s15, 1
      %s169 = scalar_select %p168, %s15, 1
      %s170 = smul.addr %s169, 2
      %s171 = smul.addr %s170, 4
      %s172 = scalar_lea.vmem %s0, %s171
      %p173 = pneg %p36
      %p174 = pneg %p33
      %p175 = pneg %p57
      %p176 = pneg %p54
      %p177 = pneg %p78
      %p178 = pneg %p75
      %p179 = pneg %p99
      %p180 = pneg %p96
      %p181 = pneg %p125
      %p182 = pneg %p122
      %p183 = scmp.lt.s32.totalorder %s15, 1
      %s184 = scalar_select %p183, %s15, 1
      %s185 = smul.addr %s184, 2
      %s186 = smul.addr %s185, 4
      %s187 = scalar_lea.vmem %s4, %s186
      %p188 = scmp.lt.s32.totalorder %s15, 1
      %s189 = scalar_select %p188, %s15, 1
      %s190 = smul.addr %s189, 2
      %s191 = smul.addr %s190, 4
      %s192 = scalar_lea.vmem %s0, %s191
      %p193 = scmp.lt.s32.totalorder %s15, 1
      %s194 = scalar_select %p193, %s15, 1
      %s195 = smul.addr %s194, 2
      %s196 = smul.addr %s195, 4
      %s197 = scalar_lea.vmem %s4, %s196
      %v199 = vlaneseq
      %v200 = vand.u32 %v199, 127
      %v201 = vadd.s32 %v200, 128
      %vm202 = vcmp.lt.s32.totalorder %v200, 0
      %v203 = vsub.s32 0, %v200
      %v204 = vsel %vm202, %v203, %v200
      %v205 = vshrl.u32 %v204, 4
      %v206 = vand.u32 %v204, 15
      %v207 = vsub.s32 0, %v206
      %v208 = vsel %vm202, %v207, %v206
      %vm209 = vcmp.lt.s32.totalorder %v201, 0
      %v210 = vsub.s32 0, %v201
      %v211 = vsel %vm209, %v210, %v201
      %v212 = vshrl.u32 %v211, 4
      %v213 = vand.u32 %v211, 15
      %v214 = vsub.s32 0, %v213
      %v215 = vsel %vm209, %v214, %v213
      %vm216 = vcmp.ne.s32.totalorder %v208, 0
      %vm217 = vcmp.ne.s32.totalorder %v215, 0
      %vm218 = vcmp.lt.s32.totalorder %v208, 0
      %vm219 = vcmp.lt.s32.totalorder %v215, 0
      %vm220 = vmand %vm218, %vm216
      %vm221 = vmand %vm219, %vm217
      %v222 = vadd.s32 %v208, 16
      %v223 = vadd.s32 %v215, 16
      %v224 = vsel %vm220, %v222, %v208
      %v225 = vsel %vm221, %v223, %v215
      %226 = vst [vmem:[#allocation2] sm:$0xff] 0.0
      %227 = vst [vmem:[#allocation2 + $0x8] sm:$0xff] 0.0
      %vm228 = vcmask 277504
      %229 = vst.msk [vmem:[#allocation2 + $0x10] sm:$0xff] %vm228, 0.0
      %230 = vst [vmem:[#allocation2 + $0x18] sm:$0xff] 0.0
      %231 = vst [vmem:[#allocation2 + $0x20] sm:$0xff] 0.0
      %232 = vst.msk [vmem:[#allocation2 + $0x28] sm:$0xff] %vm228, 0.0
      %233 = vst [vmem:[#allocation2 + $0x30] sm:$0x3] 0.0
      %234 = vst [vmem:[#allocation2 + $0x38] sm:$0x3] 0.0
      %vm235 = vcmask 271360
      %236 = vst.msk [vmem:[#allocation2 + $0x40] sm:$0x3] %vm235, 0.0
      %v237 = vld [vmem:[%s192] sm:$0xff]
      %v238 = vld [vmem:[%s1] sm:$0x1]
      %v240 = vcombine.high %v237, %v237
      %v242 = vpack.c.bf16 %v237, %v237
      %v243 = vpack.c.bf16 %v240, %v240
      %vm244 = vcmask 31744
      %v246 = vsel %vm244, %v238, 0
      %vm248 = vcmask 1041408
      %v250 = vsel %vm248, %v242, 0
      %v253 = vsel %vm248, %v243, 0
      %255 = vmatprep.subr.bf16.mxu0 0
      %256 = vmatpush1.bf16.msra.mxu0 0
      %257 = vmatprep.subr.bf16.mxu0 0
      %258 = vmatpush1.bf16.msra.mxu0 0
      %259 = vmatprep.subr.bf16.mxu0 0
      %260 = vmatpush1.bf16.msra.mxu0 0
      %261 = vmatprep.subr.bf16.mxu0 0
      %262 = vmatpush1.bf16.msra.mxu0 0
      %263 = vmatprep.subr.bf16.mxu0 0
      %264 = vmatpush1.bf16.msra.mxu0 0
      %265 = vmatprep.subr.bf16.mxu0 0
      %266 = vmatpush1.bf16.msra.mxu0 0
      %267 = vmatprep.subr.bf16.mxu0 0
      %268 = vmatpush1.bf16.msra.mxu0 0
      %269 = vmatprep.subr.bf16.mxu0 %v253
      %270 = vmatpush1.bf16.msra.mxu0 %v250
      %271 = vmatprep.subr.bf16.mxu0 0
      %272 = vmatpush2.bf16.msra.mxu0 0
      %273 = vmatprep.subr.bf16.mxu0 0
      %274 = vmatpush2.bf16.msra.mxu0 0
      %275 = vmatprep.subr.bf16.mxu0 0
      %276 = vmatpush2.bf16.msra.mxu0 0
      %277 = vmatprep.subr.bf16.mxu0 0
      %278 = vmatpush2.bf16.msra.mxu0 0
      %279 = vmatprep.subr.bf16.mxu0 0
      %280 = vmatpush2.bf16.msra.mxu0 0
      %281 = vmatprep.subr.bf16.mxu0 0
      %282 = vmatpush2.bf16.msra.mxu0 0
      %283 = vmatprep.subr.bf16.mxu0 0
      %284 = vmatpush2.bf16.msra.mxu0 0
      %285 = vmatprep.subr.bf16.mxu0 0
      %286 = vmatpush2.bf16.msra.mxu0 0
      %287 = vmatprep.mubr.bf16.mxu0 0
      %288 = vmatmul.mubr.bf16.gmra.mxu0 %v246
      %v289 = vpop.f32.mrf.mxu0
      %v290 = vadd.f32 0.0, %v289
      %v291 = vpop.f32.mrf.mxu0
      %v292 = vadd.f32 0.0, %v291
      %v293 = vpop.f32.mrf.mxu0
      %v294 = vpop.f32.mrf.mxu0
      %295 = vdwg.mxu0
      %v296 = vsel %vm248, %v290, 0.0
      %v297 = vsel %vm248, %v292, 0.0
      %v298 = vadd.f32 %v296, %v297
      %299 = vadd.xlane.f32.xlu0 %v298
      %v300 = vpop.xlane.xlu0 %299
      %v301 = vmul.f32 %v300, 0.00390625
      %v302 = vsub.f32 %v290, %v301
      %v303 = vsub.f32 %v292, %v301
      %v304 = vmul.f32 %v302, %v302
      %v305 = vmul.f32 %v303, %v303
      %v306 = vsel %vm248, %v304, 0.0
      %v307 = vsel %vm248, %v305, 0.0
      %v308 = vadd.f32 %v306, %v307
      %309 = vadd.xlane.f32.xlu0 %v308
      %v310 = vpop.xlane.xlu0 %309
      %v311 = vmul.f32 %v310, 0.00390625
      %v312 = vadd.f32 %v311, 1e-05
      %v313 = vrsqrt.pop %v312
      %v314 = vmul.f32 %v302, %v313
      %v315 = vmul.f32 %v303, %v313
      %v316 = vmax.f32 %v314, 0.0
      %v317 = vmax.f32 %v315, 0.0
      %v318 = vld [vmem:[%s2] sm:$0xf]
      %v319 = vld [vmem:[%s2 + $0x4] sm:$0xf]
      %v320 = vld [vmem:[%s2 + $0x8] sm:$0x1]
      %v321 = vpack.c.bf16 %v316, %v316
      %v322 = vpack.c.bf16 %v317, %v317
      %v326 = vunpack.c.l.b16 %v318
      %v327 = vunpack.c.l.b16 %v319
      %v328 = vunpack.c.l.b16 %v320
      %v329 = vpack.c.b16 %v327, %v326
      %v330 = vpack.c.b16 %v328, %v328
      %vm331 = vcmask 15360
      %v333 = vsel %vm331, %v329, 0
      %v336 = vsel %vm331, %v330, 0
      %vm338 = vcmask 1040384
      %v340 = vsel %vm338, %v321, 0
      %v343 = vsel %vm338, %v322, 0
      %345 = vmatprep.subr.bf16.mxu0 0
      %346 = vmatpush1.bf16.msra.mxu0 0
      %347 = vmatprep.subr.bf16.mxu0 0
      %348 = vmatpush1.bf16.msra.mxu0 0
      %349 = vmatprep.subr.bf16.mxu0 0
      %350 = vmatpush1.bf16.msra.mxu0 0
      %351 = vmatprep.subr.bf16.mxu0 0
      %352 = vmatpush1.bf16.msra.mxu0 0
      %353 = vmatprep.subr.bf16.mxu0 0
      %354 = vmatpush1.bf16.msra.mxu0 0
      %355 = vmatprep.subr.bf16.mxu0 0
      %356 = vmatpush1.bf16.msra.mxu0 0
      %357 = vmatprep.subr.bf16.mxu0 0
      %358 = vmatpush1.bf16.msra.mxu0 0
      %359 = vmatprep.subr.bf16.mxu0 %v343
      %360 = vmatpush1.bf16.msra.mxu0 %v340
      %361 = vmatprep.subr.bf16.mxu0 0
      %362 = vmatpush2.bf16.msra.mxu0 0
      %363 = vmatprep.subr.bf16.mxu0 0
      %364 = vmatpush2.bf16.msra.mxu0 0
      %365 = vmatprep.subr.bf16.mxu0 0
      %366 = vmatpush2.bf16.msra.mxu0 0
      %367 = vmatprep.subr.bf16.mxu0 0
      %368 = vmatpush2.bf16.msra.mxu0 0
      %369 = vmatprep.subr.bf16.mxu0 0
      %370 = vmatpush2.bf16.msra.mxu0 0
      %371 = vmatprep.subr.bf16.mxu0 0
      %372 = vmatpush2.bf16.msra.mxu0 0
      %373 = vmatprep.subr.bf16.mxu0 0
      %374 = vmatpush2.bf16.msra.mxu0 0
      %375 = vmatprep.subr.bf16.mxu0 0
      %376 = vmatpush2.bf16.msra.mxu0 0
      %377 = vmatprep.mubr.bf16.mxu0 0
      %378 = vmatmul.mubr.bf16.gmra.mxu0 %v333
      %v379 = vpop.f32.mrf.mxu0
      %v380 = vadd.f32 0.0, %v379
      %v381 = vpop.f32.mrf.mxu0
      %v382 = vadd.f32 0.0, %v381
      %v383 = vpop.f32.mrf.mxu0
      %v384 = vadd.f32 0.0, %v383
      %v385 = vpop.f32.mrf.mxu0
      %v386 = vadd.f32 0.0, %v385
      %387 = vmatprep.mubr.bf16.mxu0 0
      %388 = vmatmul.mubr.bf16.gmra.mxu0 %v336
      %v389 = vpop.f32.mrf.mxu0
      %v390 = vadd.f32 0.0, %v389
      %v391 = vpop.f32.mrf.mxu0
      %v392 = vadd.f32 0.0, %v391
      %v393 = vpop.f32.mrf.mxu0
      %v394 = vpop.f32.mrf.mxu0
      %395 = vdwg.mxu0
      %402 = vrot.lane.b32.xlu0 %v380, 17
      %v403 = vpop.permute.xlu0 %402
      %404 = vrot.lane.b32.xlu0 %v382, 17
      %v405 = vpop.permute.xlu0 %404
      %406 = vrot.lane.b32.xlu0 %v384, 17
      %v407 = vpop.permute.xlu0 %406
      %408 = vrot.lane.b32.xlu0 %v386, 17
      %v409 = vpop.permute.xlu0 %408
      %410 = vrot.lane.b32.xlu0 %v390, 17
      %v411 = vpop.permute.xlu0 %410
      %412 = vrot.lane.b32.xlu0 %v392, 17
      %v413 = vpop.permute.xlu0 %412
      %vm414 = vcmask 138240
      %v415 = vsel %vm414, %v403, %v405
      %v416 = vsel %vm414, %v407, %v409
      %v417 = vsel %vm414, %v411, %v413
      %vm427 = vcmask 1047688
      %428 = vst.msk [vmem:[#allocation2] sm:$0xff] %vm427, %v403
      %429 = vst [vmem:[#allocation2 + $0x8] sm:$0xff] %v415
      %430 = vst.msk [vmem:[#allocation2 + $0x10] sm:$0xff] %vm414, %v405
      %431 = vst.msk [vmem:[#allocation2 + $0x18] sm:$0xff] %vm427, %v407
      %432 = vst [vmem:[#allocation2 + $0x20] sm:$0xff] %v416
      %433 = vst.msk [vmem:[#allocation2 + $0x28] sm:$0xff] %vm414, %v409
      %vm434 = vcmask 1041544
      %435 = vst.msk [vmem:[#allocation2 + $0x30] sm:$0x3] %vm434, %v411
      %436 = vst [vmem:[#allocation2 + $0x38] sm:$0x3] %v417
      %vm437 = vcmask 132096
      %438 = vst.msk [vmem:[#allocation2 + $0x40] sm:$0x3] %vm437, %v413
      %v439 = vld [vmem:[#allocation2] sm:$0x3]
      %v440 = vld [vmem:[#allocation2 + $0x8] sm:$0x3]
      %v441 = vadd.s32 %v224, 4294967295
      %v442 = vadd.s32 %v225, 4294967295
      %vm443 = vcmp.ge.s32.totalorder %v441, 0
      %vm444 = vcmp.ge.s32.totalorder %v442, 0
      %vm445 = vcmp.lt.s32.totalorder %v441, 16
      %vm446 = vcmp.lt.s32.totalorder %v442, 16
      %vm447 = vmand %vm443, %vm445
      %vm448 = vmand %vm444, %vm446
      %v449 = vsel %vm447, 1, 0
      %v450 = vsel %vm448, 1, 0
      %vm451 = vcmp.eq.s32.totalorder %v449, 1
      %vm452 = vcmp.eq.s32.totalorder %v450, 1
      %v453 = vsel %vm451, %v439, 0.0
      %v454 = vsel %vm452, %v440, 0.0
      %v455 = vld [vmem:[#allocation2] sm:$0xc]
      %v456 = vld [vmem:[#allocation2 + $0x8] sm:$0xc]
      %v457 = vld [vmem:[#allocation2 + $0x10] sm:$0xc]
      %v461 = vrot.slane %v455, 2
      %v462 = vrot.slane %v456, 2
      %v463 = vrot.slane %v457, 2
      %464 = vrot.lane.b32.xlu0 %v461, 127
      %v465 = vpop.permute.xlu0 %464
      %466 = vrot.lane.b32.xlu0 %v462, 127
      %v467 = vpop.permute.xlu0 %466
      %468 = vrot.lane.b32.xlu0 %v463, 127
      %v469 = vpop.permute.xlu0 %468
      %vm470 = vcmask 1039360
      %v471 = vsel %vm470, %v465, %v467
      %v472 = vsel %vm470, %v467, %v469
      %v475 = vadd.f32 %v453, %v471
      %v476 = vadd.f32 %v454, %v472
      %v477 = vld [vmem:[#allocation2] sm:$0x30]
      %v478 = vld [vmem:[#allocation2 + $0x8] sm:$0x30]
      %v479 = vld [vmem:[#allocation2 + $0x10] sm:$0x30]
      %v480 = vadd.s32 %v224, 1
      %v481 = vadd.s32 %v225, 1
      %vm482 = vcmp.ge.s32.totalorder %v480, 0
      %vm483 = vcmp.ge.s32.totalorder %v481, 0
      %vm484 = vcmp.lt.s32.totalorder %v480, 16
      %vm485 = vcmp.lt.s32.totalorder %v481, 16
      %vm486 = vmand %vm482, %vm484
      %vm487 = vmand %vm483, %vm485
      %v488 = vsel %vm486, 1, 0
      %v489 = vsel %vm487, 1, 0
      %vm490 = vcmp.eq.s32.totalorder %v488, 1
      %vm491 = vcmp.eq.s32.totalorder %v489, 1
      %v495 = vrot.slane %v477, 4
      %v496 = vrot.slane %v478, 4
      %v497 = vrot.slane %v479, 4
      %498 = vrot.lane.b32.xlu0 %v495, 126
      %v499 = vpop.permute.xlu0 %498
      %500 = vrot.lane.b32.xlu0 %v496, 126
      %v501 = vpop.permute.xlu0 %500
      %502 = vrot.lane.b32.xlu0 %v497, 126
      %v503 = vpop.permute.xlu0 %502
      %vm504 = vcmask 1031168
      %v505 = vsel %vm504, %v499, %v501
      %v506 = vsel %vm504, %v501, %v503
      %v509 = vsel %vm490, %v505, 0.0
      %v510 = vsel %vm491, %v506, 0.0
      %v511 = vadd.f32 %v475, %v509
      %v512 = vadd.f32 %v476, %v510
      %v513 = vld [vmem:[#allocation2] sm:$0xc0]
      %v514 = vld [vmem:[#allocation2 + $0x8] sm:$0xc0]
      %v515 = vld [vmem:[#allocation2 + $0x10] sm:$0xc0]
      %v519 = vrot.slane %v513, 6
      %v520 = vrot.slane %v514, 6
      %v521 = vrot.slane %v515, 6
      %522 = vrot.lane.b32.xlu0 %v519, 112
      %v523 = vpop.permute.xlu0 %522
      %524 = vrot.lane.b32.xlu0 %v520, 112
      %v525 = vpop.permute.xlu0 %524
      %526 = vrot.lane.b32.xlu0 %v521, 112
      %v527 = vpop.permute.xlu0 %526
      %vm528 = vcmask 916480
      %v529 = vsel %vm528, %v523, %v525
      %v530 = vsel %vm528, %v525, %v527
      %v533 = vsel %vm451, %v529, 0.0
      %v534 = vsel %vm452, %v530, 0.0
      %v535 = vadd.f32 %v511, %v533
      %v536 = vadd.f32 %v512, %v534
      %v537 = vld [vmem:[#allocation2 + $0x18] sm:$0x3]
      %v538 = vld [vmem:[#allocation2 + $0x20] sm:$0x3]
      %v539 = vld [vmem:[#allocation2 + $0x28] sm:$0x3]
      %543 = vrot.lane.b32.xlu0 %v537, 111
      %v544 = vpop.permute.xlu0 %543
      %545 = vrot.lane.b32.xlu0 %v538, 111
      %v546 = vpop.permute.xlu0 %545
      %547 = vrot.lane.b32.xlu0 %v539, 111
      %v548 = vpop.permute.xlu0 %547
      %vm549 = vcmask 908288
      %v550 = vsel %vm549, %v544, %v546
      %v551 = vsel %vm549, %v546, %v548
      %v554 = vadd.f32 %v535, %v550
      %v555 = vadd.f32 %v536, %v551
      %v556 = vld [vmem:[#allocation2 + $0x18] sm:$0xc]
      %v557 = vld [vmem:[#allocation2 + $0x20] sm:$0xc]
      %v558 = vld [vmem:[#allocation2 + $0x28] sm:$0xc]
      %v562 = vrot.slane %v556, 2
      %v563 = vrot.slane %v557, 2
      %v564 = vrot.slane %v558, 2
      %565 = vrot.lane.b32.xlu0 %v562, 110
      %v566 = vpop.permute.xlu0 %565
      %567 = vrot.lane.b32.xlu0 %v563, 110
      %v568 = vpop.permute.xlu0 %567
      %569 = vrot.lane.b32.xlu0 %v564, 110
      %v570 = vpop.permute.xlu0 %569
      %vm571 = vcmask 900096
      %v572 = vsel %vm571, %v566, %v568
      %v573 = vsel %vm571, %v568, %v570
      %v576 = vsel %vm490, %v572, 0.0
      %v577 = vsel %vm491, %v573, 0.0
      %v578 = vadd.f32 %v554, %v576
      %v579 = vadd.f32 %v555, %v577
      %v580 = vld [vmem:[#allocation2 + $0x18] sm:$0x30]
      %v581 = vld [vmem:[#allocation2 + $0x20] sm:$0x30]
      %v582 = vld [vmem:[#allocation2 + $0x28] sm:$0x30]
      %v586 = vrot.slane %v580, 4
      %v587 = vrot.slane %v581, 4
      %v588 = vrot.slane %v582, 4
      %589 = vrot.lane.b32.xlu0 %v586, 96
      %v590 = vpop.permute.xlu0 %589
      %591 = vrot.lane.b32.xlu0 %v587, 96
      %v592 = vpop.permute.xlu0 %591
      %593 = vrot.lane.b32.xlu0 %v588, 96
      %v594 = vpop.permute.xlu0 %593
      %vm595 = vcmask 785408
      %v596 = vsel %vm595, %v590, %v592
      %v597 = vsel %vm595, %v592, %v594
      %v600 = vsel %vm451, %v596, 0.0
      %v601 = vsel %vm452, %v597, 0.0
      %v602 = vadd.f32 %v578, %v600
      %v603 = vadd.f32 %v579, %v601
      %v604 = vld [vmem:[#allocation2 + $0x18] sm:$0xc0]
      %v605 = vld [vmem:[#allocation2 + $0x20] sm:$0xc0]
      %v606 = vld [vmem:[#allocation2 + $0x28] sm:$0xc0]
      %v610 = vrot.slane %v604, 6
      %v611 = vrot.slane %v605, 6
      %v612 = vrot.slane %v606, 6
      %613 = vrot.lane.b32.xlu0 %v610, 95
      %v614 = vpop.permute.xlu0 %613
      %615 = vrot.lane.b32.xlu0 %v611, 95
      %v616 = vpop.permute.xlu0 %615
      %617 = vrot.lane.b32.xlu0 %v612, 95
      %v618 = vpop.permute.xlu0 %617
      %vm619 = vcmask 777216
      %v620 = vsel %vm619, %v614, %v616
      %v621 = vsel %vm619, %v616, %v618
      %v624 = vadd.f32 %v602, %v620
      %v625 = vadd.f32 %v603, %v621
      %v626 = vld [vmem:[#allocation2 + $0x30] sm:$0x3]
      %v627 = vld [vmem:[#allocation2 + $0x38] sm:$0x3]
      %v628 = vld [vmem:[#allocation2 + $0x40] sm:$0x3]
      %632 = vrot.lane.b32.xlu0 %v626, 94
      %v633 = vpop.permute.xlu0 %632
      %634 = vrot.lane.b32.xlu0 %v627, 94
      %v635 = vpop.permute.xlu0 %634
      %636 = vrot.lane.b32.xlu0 %v628, 94
      %v637 = vpop.permute.xlu0 %636
      %vm638 = vcmask 769024
      %v639 = vsel %vm638, %v633, %v635
      %v640 = vsel %vm638, %v635, %v637
      %v643 = vsel %vm490, %v639, 0.0
      %v644 = vsel %vm491, %v640, 0.0
      %v645 = vadd.f32 %v624, %v643
      %v646 = vadd.f32 %v625, %v644
      %v647 = vsel %vm248, %v645, 0.0
      %v648 = vsel %vm248, %v646, 0.0
      %v649 = vadd.f32 %v647, %v648
      %650 = vadd.xlane.f32.xlu0 %v649
      %v651 = vpop.xlane.xlu0 %650
      %v652 = vmul.f32 %v651, 0.00390625
      %v653 = vsub.f32 %v645, %v652
      %v654 = vsub.f32 %v646, %v652
      %v655 = vmul.f32 %v653, %v653
      %v656 = vmul.f32 %v654, %v654
      %v657 = vsel %vm248, %v655, 0.0
      %v658 = vsel %vm248, %v656, 0.0
      %v659 = vadd.f32 %v657, %v658
      %660 = vadd.xlane.f32.xlu0 %v659
      %v661 = vpop.xlane.xlu0 %660
      %v662 = vmul.f32 %v661, 0.00390625
      %v663 = vadd.f32 %v662, 1e-05
      %v664 = vrsqrt.pop %v663
      %v665 = vmul.f32 %v653, %v664
      %v666 = vmul.f32 %v654, %v664
      %v667 = vmax.f32 %v665, 0.0
      %v668 = vmax.f32 %v666, 0.0
      %v669 = vld [vmem:[%s3] sm:$0x3]
      %v670 = vpack.c.bf16 %v667, %v667
      %v671 = vpack.c.bf16 %v668, %v668
      %v673 = vsel %vm331, %v669, 0
      %v676 = vsel %vm338, %v670, 0
      %v679 = vsel %vm338, %v671, 0
      %681 = vmatprep.subr.bf16.mxu0 0
      %682 = vmatpush1.bf16.msra.mxu0 0
      %683 = vmatprep.subr.bf16.mxu0 0
      %684 = vmatpush1.bf16.msra.mxu0 0
      %685 = vmatprep.subr.bf16.mxu0 0
      %686 = vmatpush1.bf16.msra.mxu0 0
      %687 = vmatprep.subr.bf16.mxu0 0
      %688 = vmatpush1.bf16.msra.mxu0 0
      %689 = vmatprep.subr.bf16.mxu0 0
      %690 = vmatpush1.bf16.msra.mxu0 0
      %691 = vmatprep.subr.bf16.mxu0 0
      %692 = vmatpush1.bf16.msra.mxu0 0
      %693 = vmatprep.subr.bf16.mxu0 0
      %694 = vmatpush1.bf16.msra.mxu0 0
      %695 = vmatprep.subr.bf16.mxu0 %v679
      %696 = vmatpush1.bf16.msra.mxu0 %v676
      %697 = vmatprep.subr.bf16.mxu0 0
      %698 = vmatpush2.bf16.msra.mxu0 0
      %699 = vmatprep.subr.bf16.mxu0 0
      %700 = vmatpush2.bf16.msra.mxu0 0
      %701 = vmatprep.subr.bf16.mxu0 0
      %702 = vmatpush2.bf16.msra.mxu0 0
      %703 = vmatprep.subr.bf16.mxu0 0
      %704 = vmatpush2.bf16.msra.mxu0 0
      %705 = vmatprep.subr.bf16.mxu0 0
      %706 = vmatpush2.bf16.msra.mxu0 0
      %707 = vmatprep.subr.bf16.mxu0 0
      %708 = vmatpush2.bf16.msra.mxu0 0
      %709 = vmatprep.subr.bf16.mxu0 0
      %710 = vmatpush2.bf16.msra.mxu0 0
      %711 = vmatprep.subr.bf16.mxu0 0
      %712 = vmatpush2.bf16.msra.mxu0 0
      %713 = vmatprep.mubr.bf16.mxu0 0
      %714 = vmatmul.mubr.bf16.gmra.mxu0 %v673
      %v715 = vpop.f32.mrf.mxu0
      %v716 = vadd.f32 0.0, %v715
      %v717 = vpop.f32.mrf.mxu0
      %v718 = vadd.f32 0.0, %v717
      %v719 = vpop.f32.mrf.mxu0
      %v720 = vpop.f32.mrf.mxu0
      %721 = vdwg.mxu0
      %vm722 = vcmask 1043456
      %v723 = vsel %vm722, %v716, 0.0
      %v724 = vsel %vm722, %v718, 0.0
      %v725 = vadd.f32 %v723, %v724
      %726 = vadd.xlane.f32.xlu0 %v725
      %v727 = vpop.xlane.xlu0 %726
      %v728 = vmul.f32 %v727, 0.00390625
      %v729 = vsub.f32 %v716, %v728
      %v730 = vsub.f32 %v718, %v728
      %v731 = vmul.f32 %v729, %v729
      %v732 = vmul.f32 %v730, %v730
      %v733 = vsel %vm722, %v731, 0.0
      %v734 = vsel %vm722, %v732, 0.0
      %v735 = vadd.f32 %v733, %v734
      %736 = vadd.xlane.f32.xlu0 %v735
      %v737 = vpop.xlane.xlu0 %736
      %v738 = vmul.f32 %v737, 0.00390625
      %v739 = vadd.f32 %v738, 1e-05
      %v740 = vrsqrt.pop %v739
      %v741 = vmul.f32 %v729, %v740
      %v742 = vmul.f32 %v730, %v740
      %v743 = vmax.f32 %v741, 0.0
      %v744 = vmax.f32 %v742, 0.0
      %v747 = vcombine.low %v743, %v744
      %v749 = vadd.f32 %v237, %v747
      %s750 = scalar_lea.vmem %s1, 1
      %v751 = vld [vmem:[%s750] sm:$0x1]
      %v753 = vcombine.high %v749, %v749
      %v755 = vpack.c.bf16 %v749, %v749
      %v756 = vpack.c.bf16 %v753, %v753
      %v758 = vsel %vm244, %v751, 0
      %v761 = vsel %vm248, %v755, 0
      %v764 = vsel %vm248, %v756, 0
      %766 = vmatprep.subr.bf16.mxu0 0
      %767 = vmatpush1.bf16.msra.mxu0 0
      %768 = vmatprep.subr.bf16.mxu0 0
      %769 = vmatpush1.bf16.msra.mxu0 0
      %770 = vmatprep.subr.bf16.mxu0 0
      %771 = vmatpush1.bf16.msra.mxu0 0
      %772 = vmatprep.subr.bf16.mxu0 0
      %773 = vmatpush1.bf16.msra.mxu0 0
      %774 = vmatprep.subr.bf16.mxu0 0
      %775 = vmatpush1.bf16.msra.mxu0 0
      %776 = vmatprep.subr.bf16.mxu0 0
      %777 = vmatpush1.bf16.msra.mxu0 0
      %778 = vmatprep.subr.bf16.mxu0 0
      %779 = vmatpush1.bf16.msra.mxu0 0
      %780 = vmatprep.subr.bf16.mxu0 %v764
      %781 = vmatpush1.bf16.msra.mxu0 %v761
      %782 = vmatprep.subr.bf16.mxu0 0
      %783 = vmatpush2.bf16.msra.mxu0 0
      %784 = vmatprep.subr.bf16.mxu0 0
      %785 = vmatpush2.bf16.msra.mxu0 0
      %786 = vmatprep.subr.bf16.mxu0 0
      %787 = vmatpush2.bf16.msra.mxu0 0
      %788 = vmatprep.subr.bf16.mxu0 0
      %789 = vmatpush2.bf16.msra.mxu0 0
      %790 = vmatprep.subr.bf16.mxu0 0
      %791 = vmatpush2.bf16.msra.mxu0 0
      %792 = vmatprep.subr.bf16.mxu0 0
      %793 = vmatpush2.bf16.msra.mxu0 0
      %794 = vmatprep.subr.bf16.mxu0 0
      %795 = vmatpush2.bf16.msra.mxu0 0
      %796 = vmatprep.subr.bf16.mxu0 0
      %797 = vmatpush2.bf16.msra.mxu0 0
      %798 = vmatprep.mubr.bf16.mxu0 0
      %799 = vmatmul.mubr.bf16.gmra.mxu0 %v758
      %v800 = vpop.f32.mrf.mxu0
      %v801 = vadd.f32 0.0, %v800
      %v802 = vpop.f32.mrf.mxu0
      %v803 = vadd.f32 0.0, %v802
      %v804 = vpop.f32.mrf.mxu0
      %v805 = vpop.f32.mrf.mxu0
      %806 = vdwg.mxu0
      %v807 = vsel %vm248, %v801, 0.0
      %v808 = vsel %vm248, %v803, 0.0
      %v809 = vadd.f32 %v807, %v808
      %810 = vadd.xlane.f32.xlu0 %v809
      %v811 = vpop.xlane.xlu0 %810
      %v812 = vmul.f32 %v811, 0.00390625
      %v813 = vsub.f32 %v801, %v812
      %v814 = vsub.f32 %v803, %v812
      %v815 = vmul.f32 %v813, %v813
      %v816 = vmul.f32 %v814, %v814
      %v817 = vsel %vm248, %v815, 0.0
      %v818 = vsel %vm248, %v816, 0.0
      %v819 = vadd.f32 %v817, %v818
      %820 = vadd.xlane.f32.xlu0 %v819
      %v821 = vpop.xlane.xlu0 %820
      %v822 = vmul.f32 %v821, 0.00390625
      %v823 = vadd.f32 %v822, 1e-05
      %v824 = vrsqrt.pop %v823
      %v825 = vmul.f32 %v813, %v824
      %v826 = vmul.f32 %v814, %v824
      %v827 = vmax.f32 %v825, 0.0
      %v828 = vmax.f32 %v826, 0.0
      %s829 = scalar_lea.vmem %s2, 12
      %v830 = vld [vmem:[%s829] sm:$0xf]
      %v831 = vld [vmem:[%s829 + $0x4] sm:$0xf]
      %v832 = vld [vmem:[%s829 + $0x8] sm:$0x1]
      %v833 = vpack.c.bf16 %v827, %v827
      %v834 = vpack.c.bf16 %v828, %v828
      %v838 = vunpack.c.l.b16 %v830
      %v839 = vunpack.c.l.b16 %v831
      %v840 = vunpack.c.l.b16 %v832
      %v841 = vpack.c.b16 %v839, %v838
      %v842 = vpack.c.b16 %v840, %v840
      %v844 = vsel %vm331, %v841, 0
      %v847 = vsel %vm331, %v842, 0
      %v850 = vsel %vm338, %v833, 0
      %v853 = vsel %vm338, %v834, 0
      %855 = vmatprep.subr.bf16.mxu0 0
      %856 = vmatpush1.bf16.msra.mxu0 0
      %857 = vmatprep.subr.bf16.mxu0 0
      %858 = vmatpush1.bf16.msra.mxu0 0
      %859 = vmatprep.subr.bf16.mxu0 0
      %860 = vmatpush1.bf16.msra.mxu0 0
      %861 = vmatprep.subr.bf16.mxu0 0
      %862 = vmatpush1.bf16.msra.mxu0 0
      %863 = vmatprep.subr.bf16.mxu0 0
      %864 = vmatpush1.bf16.msra.mxu0 0
      %865 = vmatprep.subr.bf16.mxu0 0
      %866 = vmatpush1.bf16.msra.mxu0 0
      %867 = vmatprep.subr.bf16.mxu0 0
      %868 = vmatpush1.bf16.msra.mxu0 0
      %869 = vmatprep.subr.bf16.mxu0 %v853
      %870 = vmatpush1.bf16.msra.mxu0 %v850
      %871 = vmatprep.subr.bf16.mxu0 0
      %872 = vmatpush2.bf16.msra.mxu0 0
      %873 = vmatprep.subr.bf16.mxu0 0
      %874 = vmatpush2.bf16.msra.mxu0 0
      %875 = vmatprep.subr.bf16.mxu0 0
      %876 = vmatpush2.bf16.msra.mxu0 0
      %877 = vmatprep.subr.bf16.mxu0 0
      %878 = vmatpush2.bf16.msra.mxu0 0
      %879 = vmatprep.subr.bf16.mxu0 0
      %880 = vmatpush2.bf16.msra.mxu0 0
      %881 = vmatprep.subr.bf16.mxu0 0
      %882 = vmatpush2.bf16.msra.mxu0 0
      %883 = vmatprep.subr.bf16.mxu0 0
      %884 = vmatpush2.bf16.msra.mxu0 0
      %885 = vmatprep.subr.bf16.mxu0 0
      %886 = vmatpush2.bf16.msra.mxu0 0
      %887 = vmatprep.mubr.bf16.mxu0 0
      %888 = vmatmul.mubr.bf16.gmra.mxu0 %v844
      %v889 = vpop.f32.mrf.mxu0
      %v890 = vadd.f32 0.0, %v889
      %v891 = vpop.f32.mrf.mxu0
      %v892 = vadd.f32 0.0, %v891
      %v893 = vpop.f32.mrf.mxu0
      %v894 = vadd.f32 0.0, %v893
      %v895 = vpop.f32.mrf.mxu0
      %v896 = vadd.f32 0.0, %v895
      %897 = vmatprep.mubr.bf16.mxu0 0
      %898 = vmatmul.mubr.bf16.gmra.mxu0 %v847
      %v899 = vpop.f32.mrf.mxu0
      %v900 = vadd.f32 0.0, %v899
      %v901 = vpop.f32.mrf.mxu0
      %v902 = vadd.f32 0.0, %v901
      %v903 = vpop.f32.mrf.mxu0
      %v904 = vpop.f32.mrf.mxu0
      %905 = vdwg.mxu0
      %912 = vrot.lane.b32.xlu0 %v890, 17
      %v913 = vpop.permute.xlu0 %912
      %914 = vrot.lane.b32.xlu0 %v892, 17
      %v915 = vpop.permute.xlu0 %914
      %916 = vrot.lane.b32.xlu0 %v894, 17
      %v917 = vpop.permute.xlu0 %916
      %918 = vrot.lane.b32.xlu0 %v896, 17
      %v919 = vpop.permute.xlu0 %918
      %920 = vrot.lane.b32.xlu0 %v900, 17
      %v921 = vpop.permute.xlu0 %920
      %922 = vrot.lane.b32.xlu0 %v902, 17
      %v923 = vpop.permute.xlu0 %922
      %v924 = vsel %vm414, %v913, %v915
      %v925 = vsel %vm414, %v917, %v919
      %v926 = vsel %vm414, %v921, %v923
      %936 = vst.msk [vmem:[#allocation2] sm:$0xff] %vm427, %v913
      %937 = vst [vmem:[#allocation2 + $0x8] sm:$0xff] %v924
      %938 = vst.msk [vmem:[#allocation2 + $0x10] sm:$0xff] %vm414, %v915
      %939 = vst.msk [vmem:[#allocation2 + $0x18] sm:$0xff] %vm427, %v917
      %940 = vst [vmem:[#allocation2 + $0x20] sm:$0xff] %v925
      %941 = vst.msk [vmem:[#allocation2 + $0x28] sm:$0xff] %vm414, %v919
      %942 = vst.msk [vmem:[#allocation2 + $0x30] sm:$0x3] %vm434, %v921
      %943 = vst [vmem:[#allocation2 + $0x38] sm:$0x3] %v926
      %944 = vst.msk [vmem:[#allocation2 + $0x40] sm:$0x3] %vm437, %v923
      %v945 = vld [vmem:[#allocation2] sm:$0x3]
      %v946 = vld [vmem:[#allocation2 + $0x8] sm:$0x3]
      %v947 = vsel %vm451, %v945, 0.0
      %v948 = vsel %vm452, %v946, 0.0
      %v949 = vld [vmem:[#allocation2] sm:$0xc]
      %v950 = vld [vmem:[#allocation2 + $0x8] sm:$0xc]
      %v951 = vld [vmem:[#allocation2 + $0x10] sm:$0xc]
      %v955 = vrot.slane %v949, 2
      %v956 = vrot.slane %v950, 2
      %v957 = vrot.slane %v951, 2
      %958 = vrot.lane.b32.xlu0 %v955, 127
      %v959 = vpop.permute.xlu0 %958
      %960 = vrot.lane.b32.xlu0 %v956, 127
      %v961 = vpop.permute.xlu0 %960
      %962 = vrot.lane.b32.xlu0 %v957, 127
      %v963 = vpop.permute.xlu0 %962
      %v964 = vsel %vm470, %v959, %v961
      %v965 = vsel %vm470, %v961, %v963
      %v968 = vadd.f32 %v947, %v964
      %v969 = vadd.f32 %v948, %v965
      %v970 = vld [vmem:[#allocation2] sm:$0x30]
      %v971 = vld [vmem:[#allocation2 + $0x8] sm:$0x30]
      %v972 = vld [vmem:[#allocation2 + $0x10] sm:$0x30]
      %v976 = vrot.slane %v970, 4
      %v977 = vrot.slane %v971, 4
      %v978 = vrot.slane %v972, 4
      %979 = vrot.lane.b32.xlu0 %v976, 126
      %v980 = vpop.permute.xlu0 %979
      %981 = vrot.lane.b32.xlu0 %v977, 126
      %v982 = vpop.permute.xlu0 %981
      %983 = vrot.lane.b32.xlu0 %v978, 126
      %v984 = vpop.permute.xlu0 %983
      %v985 = vsel %vm504, %v980, %v982
      %v986 = vsel %vm504, %v982, %v984
      %v989 = vsel %vm490, %v985, 0.0
      %v990 = vsel %vm491, %v986, 0.0
      %v991 = vadd.f32 %v968, %v989
      %v992 = vadd.f32 %v969, %v990
      %v993 = vld [vmem:[#allocation2] sm:$0xc0]
      %v994 = vld [vmem:[#allocation2 + $0x8] sm:$0xc0]
      %v995 = vld [vmem:[#allocation2 + $0x10] sm:$0xc0]
      %v999 = vrot.slane %v993, 6
      %v1000 = vrot.slane %v994, 6
      %v1001 = vrot.slane %v995, 6
      %1002 = vrot.lane.b32.xlu0 %v999, 112
      %v1003 = vpop.permute.xlu0 %1002
      %1004 = vrot.lane.b32.xlu0 %v1000, 112
      %v1005 = vpop.permute.xlu0 %1004
      %1006 = vrot.lane.b32.xlu0 %v1001, 112
      %v1007 = vpop.permute.xlu0 %1006
      %v1008 = vsel %vm528, %v1003, %v1005
      %v1009 = vsel %vm528, %v1005, %v1007
      %v1012 = vsel %vm451, %v1008, 0.0
      %v1013 = vsel %vm452, %v1009, 0.0
      %v1014 = vadd.f32 %v991, %v1012
      %v1015 = vadd.f32 %v992, %v1013
      %v1016 = vld [vmem:[#allocation2 + $0x18] sm:$0x3]
      %v1017 = vld [vmem:[#allocation2 + $0x20] sm:$0x3]
      %v1018 = vld [vmem:[#allocation2 + $0x28] sm:$0x3]
      %1022 = vrot.lane.b32.xlu0 %v1016, 111
      %v1023 = vpop.permute.xlu0 %1022
      %1024 = vrot.lane.b32.xlu0 %v1017, 111
      %v1025 = vpop.permute.xlu0 %1024
      %1026 = vrot.lane.b32.xlu0 %v1018, 111
      %v1027 = vpop.permute.xlu0 %1026
      %v1028 = vsel %vm549, %v1023, %v1025
      %v1029 = vsel %vm549, %v1025, %v1027
      %v1032 = vadd.f32 %v1014, %v1028
      %v1033 = vadd.f32 %v1015, %v1029
      %v1034 = vld [vmem:[#allocation2 + $0x18] sm:$0xc]
      %v1035 = vld [vmem:[#allocation2 + $0x20] sm:$0xc]
      %v1036 = vld [vmem:[#allocation2 + $0x28] sm:$0xc]
      %v1040 = vrot.slane %v1034, 2
      %v1041 = vrot.slane %v1035, 2
      %v1042 = vrot.slane %v1036, 2
      %1043 = vrot.lane.b32.xlu0 %v1040, 110
      %v1044 = vpop.permute.xlu0 %1043
      %1045 = vrot.lane.b32.xlu0 %v1041, 110
      %v1046 = vpop.permute.xlu0 %1045
      %1047 = vrot.lane.b32.xlu0 %v1042, 110
      %v1048 = vpop.permute.xlu0 %1047
      %v1049 = vsel %vm571, %v1044, %v1046
      %v1050 = vsel %vm571, %v1046, %v1048
      %v1053 = vsel %vm490, %v1049, 0.0
      %v1054 = vsel %vm491, %v1050, 0.0
      %v1055 = vadd.f32 %v1032, %v1053
      %v1056 = vadd.f32 %v1033, %v1054
      %v1057 = vld [vmem:[#allocation2 + $0x18] sm:$0x30]
      %v1058 = vld [vmem:[#allocation2 + $0x20] sm:$0x30]
      %v1059 = vld [vmem:[#allocation2 + $0x28] sm:$0x30]
      %v1063 = vrot.slane %v1057, 4
      %v1064 = vrot.slane %v1058, 4
      %v1065 = vrot.slane %v1059, 4
      %1066 = vrot.lane.b32.xlu0 %v1063, 96
      %v1067 = vpop.permute.xlu0 %1066
      %1068 = vrot.lane.b32.xlu0 %v1064, 96
      %v1069 = vpop.permute.xlu0 %1068
      %1070 = vrot.lane.b32.xlu0 %v1065, 96
      %v1071 = vpop.permute.xlu0 %1070
      %v1072 = vsel %vm595, %v1067, %v1069
      %v1073 = vsel %vm595, %v1069, %v1071
      %v1076 = vsel %vm451, %v1072, 0.0
      %v1077 = vsel %vm452, %v1073, 0.0
      %v1078 = vadd.f32 %v1055, %v1076
      %v1079 = vadd.f32 %v1056, %v1077
      %v1080 = vld [vmem:[#allocation2 + $0x18] sm:$0xc0]
      %v1081 = vld [vmem:[#allocation2 + $0x20] sm:$0xc0]
      %v1082 = vld [vmem:[#allocation2 + $0x28] sm:$0xc0]
      %v1086 = vrot.slane %v1080, 6
      %v1087 = vrot.slane %v1081, 6
      %v1088 = vrot.slane %v1082, 6
      %1089 = vrot.lane.b32.xlu0 %v1086, 95
      %v1090 = vpop.permute.xlu0 %1089
      %1091 = vrot.lane.b32.xlu0 %v1087, 95
      %v1092 = vpop.permute.xlu0 %1091
      %1093 = vrot.lane.b32.xlu0 %v1088, 95
      %v1094 = vpop.permute.xlu0 %1093
      %v1095 = vsel %vm619, %v1090, %v1092
      %v1096 = vsel %vm619, %v1092, %v1094
      %v1099 = vadd.f32 %v1078, %v1095
      %v1100 = vadd.f32 %v1079, %v1096
      %v1101 = vld [vmem:[#allocation2 + $0x30] sm:$0x3]
      %v1102 = vld [vmem:[#allocation2 + $0x38] sm:$0x3]
      %v1103 = vld [vmem:[#allocation2 + $0x40] sm:$0x3]
      %1107 = vrot.lane.b32.xlu0 %v1101, 94
      %v1108 = vpop.permute.xlu0 %1107
      %1109 = vrot.lane.b32.xlu0 %v1102, 94
      %v1110 = vpop.permute.xlu0 %1109
      %1111 = vrot.lane.b32.xlu0 %v1103, 94
      %v1112 = vpop.permute.xlu0 %1111
      %v1113 = vsel %vm638, %v1108, %v1110
      %v1114 = vsel %vm638, %v1110, %v1112
      %v1117 = vsel %vm490, %v1113, 0.0
      %v1118 = vsel %vm491, %v1114, 0.0
      %v1119 = vadd.f32 %v1099, %v1117
      %v1120 = vadd.f32 %v1100, %v1118
      %v1121 = vsel %vm248, %v1119, 0.0
      %v1122 = vsel %vm248, %v1120, 0.0
      %v1123 = vadd.f32 %v1121, %v1122
      %1124 = vadd.xlane.f32.xlu0 %v1123
      %v1125 = vpop.xlane.xlu0 %1124
      %v1126 = vmul.f32 %v1125, 0.00390625
      %v1127 = vsub.f32 %v1119, %v1126
      %v1128 = vsub.f32 %v1120, %v1126
      %v1129 = vmul.f32 %v1127, %v1127
      %v1130 = vmul.f32 %v1128, %v1128
      %v1131 = vsel %vm248, %v1129, 0.0
      %v1132 = vsel %vm248, %v1130, 0.0
      %v1133 = vadd.f32 %v1131, %v1132
      %1134 = vadd.xlane.f32.xlu0 %v1133
      %v1135 = vpop.xlane.xlu0 %1134
      %v1136 = vmul.f32 %v1135, 0.00390625
      %v1137 = vadd.f32 %v1136, 1e-05
      %v1138 = vrsqrt.pop %v1137
      %v1139 = vmul.f32 %v1127, %v1138
      %v1140 = vmul.f32 %v1128, %v1138
      %v1141 = vmax.f32 %v1139, 0.0
      %v1142 = vmax.f32 %v1140, 0.0
      %s1143 = scalar_lea.vmem %s3, 2
      %v1144 = vld [vmem:[%s1143] sm:$0x3]
      %v1145 = vpack.c.bf16 %v1141, %v1141
      %v1146 = vpack.c.bf16 %v1142, %v1142
      %v1148 = vsel %vm331, %v1144, 0
      %v1151 = vsel %vm338, %v1145, 0
      %v1154 = vsel %vm338, %v1146, 0
      %1156 = vmatprep.subr.bf16.mxu0 0
      %1157 = vmatpush1.bf16.msra.mxu0 0
      %1158 = vmatprep.subr.bf16.mxu0 0
      %1159 = vmatpush1.bf16.msra.mxu0 0
      %1160 = vmatprep.subr.bf16.mxu0 0
      %1161 = vmatpush1.bf16.msra.mxu0 0
      %1162 = vmatprep.subr.bf16.mxu0 0
      %1163 = vmatpush1.bf16.msra.mxu0 0
      %1164 = vmatprep.subr.bf16.mxu0 0
      %1165 = vmatpush1.bf16.msra.mxu0 0
      %1166 = vmatprep.subr.bf16.mxu0 0
      %1167 = vmatpush1.bf16.msra.mxu0 0
      %1168 = vmatprep.subr.bf16.mxu0 0
      %1169 = vmatpush1.bf16.msra.mxu0 0
      %1170 = vmatprep.subr.bf16.mxu0 %v1154
      %1171 = vmatpush1.bf16.msra.mxu0 %v1151
      %1172 = vmatprep.subr.bf16.mxu0 0
      %1173 = vmatpush2.bf16.msra.mxu0 0
      %1174 = vmatprep.subr.bf16.mxu0 0
      %1175 = vmatpush2.bf16.msra.mxu0 0
      %1176 = vmatprep.subr.bf16.mxu0 0
      %1177 = vmatpush2.bf16.msra.mxu0 0
      %1178 = vmatprep.subr.bf16.mxu0 0
      %1179 = vmatpush2.bf16.msra.mxu0 0
      %1180 = vmatprep.subr.bf16.mxu0 0
      %1181 = vmatpush2.bf16.msra.mxu0 0
      %1182 = vmatprep.subr.bf16.mxu0 0
      %1183 = vmatpush2.bf16.msra.mxu0 0
      %1184 = vmatprep.subr.bf16.mxu0 0
      %1185 = vmatpush2.bf16.msra.mxu0 0
      %1186 = vmatprep.subr.bf16.mxu0 0
      %1187 = vmatpush2.bf16.msra.mxu0 0
      %1188 = vmatprep.mubr.bf16.mxu0 0
      %1189 = vmatmul.mubr.bf16.gmra.mxu0 %v1148
      %v1190 = vpop.f32.mrf.mxu0
      %v1191 = vadd.f32 0.0, %v1190
      %v1192 = vpop.f32.mrf.mxu0
      %v1193 = vadd.f32 0.0, %v1192
      %v1194 = vpop.f32.mrf.mxu0
      %v1195 = vpop.f32.mrf.mxu0
      %1196 = vdwg.mxu0
      %v1197 = vsel %vm722, %v1191, 0.0
      %v1198 = vsel %vm722, %v1193, 0.0
      %v1199 = vadd.f32 %v1197, %v1198
      %1200 = vadd.xlane.f32.xlu0 %v1199
      %v1201 = vpop.xlane.xlu0 %1200
      %v1202 = vmul.f32 %v1201, 0.00390625
      %v1203 = vsub.f32 %v1191, %v1202
      %v1204 = vsub.f32 %v1193, %v1202
      %v1205 = vmul.f32 %v1203, %v1203
      %v1206 = vmul.f32 %v1204, %v1204
      %v1207 = vsel %vm722, %v1205, 0.0
      %v1208 = vsel %vm722, %v1206, 0.0
      %v1209 = vadd.f32 %v1207, %v1208
      %1210 = vadd.xlane.f32.xlu0 %v1209
      %v1211 = vpop.xlane.xlu0 %1210
      %v1212 = vmul.f32 %v1211, 0.00390625
      %v1213 = vadd.f32 %v1212, 1e-05
      %v1214 = vrsqrt.pop %v1213
      %v1215 = vmul.f32 %v1203, %v1214
      %v1216 = vmul.f32 %v1204, %v1214
      %v1217 = vmax.f32 %v1215, 0.0
      %v1218 = vmax.f32 %v1216, 0.0
      %v1221 = vcombine.low %v1217, %v1218
      %v1223 = vadd.f32 %v749, %v1221
      %1224 = vst [vmem:[%s197] sm:$0xff] %v1223
      %p1225 = scmp.lt.s32.totalorder %s15, 1
      %s1226 = scalar_select %p1225, %s15, 1
      %s1227 = smul.addr %s1226, 2
      %s1228 = smul.addr %s1227, 4
      %s1229 = scalar_lea.vmem %s4, %s1228
      // Predicated region
      $region37: #{hourglass_forward.13} parent=35 // pred_check
        %p1230 = pneg %p122
      $region38: #{hourglass_forward.13} parent=35 // pred_check_branch
        %1232 = sbr.rel (%p1230) target = $region40
      $region39: #{hourglass_forward.13} parent=35 // pred_region
        _
      $region40: #{hourglass_forward.13} parent=35 // pred_fallthru
        _
    $region36: #{hourglass_forward.13} parent=5 // pred_fallthru
      _
    %p1233 = scmp.le.s32.totalorder 2, %s10
    // Predicated region
    $region41: #{hourglass_forward.13} parent=5 // pred_check
      %p1234 = pneg %p1233
    $region42: #{hourglass_forward.13} parent=5 // pred_check_branch
      %1236 = sbr.rel (%p1234) target = $region44
    $region43: #{hourglass_forward.13} parent=5 // pred_region
      %s1237 = ssub.s32 %s10, 2
      // Predicated region
      $region45: #{hourglass_forward.13} parent=43 // pred_check
        %p1238 = pneg %p128
      $region46: #{hourglass_forward.13} parent=43 // pred_check_branch
        %1240 = sbr.rel (%p1238) target = $region48
      $region47: #{hourglass_forward.13} parent=43 // pred_region
        %p1241 = scmp.lt.s32.totalorder %s16, 1
        %s1242 = scalar_select %p1241, %s16, 1
        %s1243 = smul.addr %s1242, 2
        %s1244 = smul.addr %s1243, 4
        %s1245 = scalar_lea.vmem %s4, %s1244
      $region48: #{hourglass_forward.13} parent=43 // pred_fallthru
        _
    $region44: #{hourglass_forward.13} parent=5 // pred_fallthru
      _
  $region6: #{hourglass_forward.13} parent=0 // loop_footer
    %s14 = sadd.s32 1, %s10
  $region7: #{hourglass_forward.13} parent=0 // loop_footer_branch
    %9 = sbr.rel target = $region3
  $region8: #{hourglass_forward.13} parent=0 // loop_exit
    _

</llo_original>
